<compile_context>
chip_gen: v7x
topology: tpu7x:2x2x1
jax: 0.10.0
libtpu: 0.0.40
codegen_flags: <defaults>
</compile_context>

<pallas_src>
import numpy as np

import jax
import jax.numpy as jnp
from jax import lax
from jax.experimental import pallas as pl
from jax.experimental.pallas import tpu as pltpu

EPS = 1e-5  # nn.BatchNorm2d default eps

_VMEM_SPEC = pl.BlockSpec(memory_space=pltpu.MemorySpace.VMEM)


# ----------------------------------------------------------------------------
# Fused kernel (built per static configuration via a closure factory)
# ----------------------------------------------------------------------------
def _make_resnet_kernel(*, n_batch, row, col, m_real, mp, pad,
                        num_blocks, num_hidden, c_head, action_size):
    """Returns the fused kernel closed over all static configuration ints."""
    hw = row * col
    # Row shift of tap (kh, kw) inside the flattened (N*H*W, C) slab.
    offs = [(kh - 1) * col + (kw - 1) for kh in range(3) for kw in range(3)]
    n_pad_rows = mp - m_real          # zero rows padding M up to a multiple of 8
    inv_m = 1.0 / float(m_real)

    def kernel(mask_ref, ws_ref, gs_ref, bts_ref,
               wb_ref, gb_ref, btb_ref,
               wh_ref, gh_ref, bth_ref,
               wfc_ref, bfc_ref, x_ref,
               out_ref,
               xpad_ref, xcat_ref, hscr_ref, fccat_ref):
        # Zero the padded slab once.  The tap masks make every read from the
        # border rows logically irrelevant, but 0 * (uninitialised NaN) != 0,
        # so they must hold real zeros.
        xpad_ref[...] = jnp.zeros_like(xpad_ref)

        # Tiny (MP, 1) border masks, one per tap, reused by every conv layer.
        masks = [mask_ref[:, k:k + 1] for k in range(9)]

        def conv3x3(x_val, c_in, w_bf16):
            """3x3 / pad=1 conv as ONE matmul with a 9*c_in contraction.

            Nine taps = nine statically shifted row slices of the zero-padded
            slab (address math only), masked on the VPU, lane-concatenated
            into the bf16 xcat scratch, contracted on the MXU in one push.
            """
            xpad_ref[pad:pad + mp, :c_in] = x_val
            for k in range(9):
                src = xpad_ref[pad + offs[k]:pad + offs[k] + mp, :c_in]
                xcat_ref[:, k * c_in:(k + 1) * c_in] = (
                    masks[k] * src).astype(jnp.bfloat16)
            return jnp.dot(xcat_ref[:, :9 * c_in], w_bf16,
                           preferred_element_type=jnp.float32)

        def batchnorm(x, gamma, beta):
            """Training-mode BatchNorm2d, folded to one mul+add per element.

            x is always a conv output whose pad rows are exactly zero (masks
            zero their taps), so plain column sums already cover only the M
            real rows; the pad rows' spurious (0-mean)^2 contribution to the
            variance is removed with a (1, C) correction instead of a full
            slab mask multiply.  rsqrt runs on the (otherwise idle) EUP slot.
            """
            mean = jnp.sum(x, axis=0, keepdims=True) * inv_m
            xc = x - mean
            var = (jnp.sum(xc * xc, axis=0, keepdims=True)
                   - float(n_pad_rows) * mean * mean) * inv_m
            scale = gamma * lax.rsqrt(var + EPS)
            return xc * scale + beta

        # ---- startBlock: Conv -> BN -> ReLU (conv bias cancelled by BN) ----
        x = jnp.maximum(
            batchnorm(conv3x3(x_ref[...], x_ref.shape[1], ws_ref[...]),
                      gs_ref[...], bts_ref[...]), 0.0)

        # ---- backBone: ResBlocks -------------------------------------------
        # TODO(synk): for large num_res_blocks switch this static unroll to a
        # lax.fori_loop over the stacked wb/gb/btb refs to bound trace size.
        for i in range(num_blocks):
            residual = x
            y = jnp.maximum(
                batchnorm(conv3x3(x, num_hidden, wb_ref[2 * i]),
                          gb_ref[2 * i], btb_ref[2 * i]), 0.0)
            y = batchnorm(conv3x3(y, num_hidden, wb_ref[2 * i + 1]),
                          gb_ref[2 * i + 1], btb_ref[2 * i + 1])
            x = jnp.maximum(y + residual, 0.0)

        # ---- merged policy(32ch)+value(3ch) head conv -> BN -> ReLU --------
        h = jnp.maximum(
            batchnorm(conv3x3(x, num_hidden, wh_ref[...]),
                      gh_ref[...], bth_ref[...]), 0.0)
        hscr_ref[...] = h                                    # (MP, 32+3) f32

        # ---- merged Flatten + Linear: strided row gather + ONE matmul ------
        # PyTorch's NCHW flatten is pre-folded into the (HW*C, A+1) wfc layout;
        # row n of fccat is batch n's flattened head activation.  No selector
        # matmuls: the gather is pure (strided) address computation.
        for p in range(hw):
            rows = hscr_ref[pl.ds(p, n_batch, stride=hw), :]      # (N, 35)
            fccat_ref[:, p * c_head:(p + 1) * c_head] = rows.astype(jnp.bfloat16)
        out = jnp.dot(fccat_ref[...], wfc_ref[...],
                      preferred_element_type=jnp.float32) + bfc_ref[...]
        out_ref[...] = out                                   # (N, A+1) f32

    return kernel


# ----------------------------------------------------------------------------
# Forward-pass wrapper (one pallas_call, no per-layer glue)
# ----------------------------------------------------------------------------
def resnet_forward(prepared, x_nchw):
    n, cin, row, col = x_nchw.shape
    hw = row * col
    m = n * hw
    mp = prepared["mask"].shape[0]               # M rounded up to 8
    num_hidden = prepared["ws"].shape[1]
    c_head = prepared["wh"].shape[1]             # 32 + 3 merged head channels
    action_size = prepared["bfc"].shape[1] - 1
    num_blocks = prepared["wb"].shape[0] // 2
    ch = max(cin, num_hidden)                    # widest conv input
    pad = ((col + 1 + 7) // 8) * 8               # slab border rows per side

    # Single tiny layout op: NCHW -> channels-last (MP, Cin) slab.
    x2d = jnp.transpose(x_nchw, (0, 2, 3, 1)).reshape(m, cin).astype(jnp.float32)
    if mp > m:
        x2d = jnp.pad(x2d, ((0, mp - m), (0, 0)))

    kernel = _make_resnet_kernel(
        n_batch=n, row=row, col=col, m_real=m, mp=mp, pad=pad,
        num_blocks=num_blocks, num_hidden=num_hidden,
        c_head=c_head, action_size=action_size)

    out = pl.pallas_call(
        kernel,
        out_shape=jax.ShapeDtypeStruct((n, action_size + 1), jnp.float32),
        in_specs=[_VMEM_SPEC] * 13,
        out_specs=_VMEM_SPEC,
        scratch_shapes=[
            pltpu.VMEM((mp + 2 * pad, ch), jnp.float32),    # zero-padded conv input slab
            pltpu.VMEM((mp, 9 * ch), jnp.bfloat16),         # tap-concat MXU operand
            pltpu.VMEM((mp, c_head), jnp.float32),          # head activations (FC gather src)
            pltpu.VMEM((n, hw * c_head), jnp.bfloat16),     # flattened FC MXU operand
        ],
    )(prepared["mask"],
      prepared["ws"], prepared["gs"], prepared["bts"],
      prepared["wb"], prepared["gb"], prepared["btb"],
      prepared["wh"], prepared["gh"], prepared["bth"],
      prepared["wfc"], prepared["bfc"], x2d)

    policy = out[:, :action_size]
    value = jnp.tanh(out[:, action_size:])
    return policy, value


# ----------------------------------------------------------------------------
# One-time parameter preparation (all reshapes / permutations hoisted here)
# ----------------------------------------------------------------------------
def _make_tap_masks(n, h, w, mp):
    """mask[r, k] = 1 iff flat row r (< N*H*W) has a valid source for tap k."""
    m = n * h * w
    mask = np.zeros((mp, 9), np.float32)
    for r in range(m):
        hh = (r % (h * w)) // w
        ww = r % w
        for kh in range(3):
            for kw in range(3):
                if 0 <= hh + kh - 1 < h and 0 <= ww + kw - 1 < w:
                    mask[r, kh * 3 + kw] = 1.0
    return jnp.asarray(mask)


def _conv_cat(w):
    """PyTorch (Cout, Cin, 3, 3) -> bf16 (9*Cin, Cout), row = (kh*3+kw)*Cin + ci."""
    cout, cin = w.shape[0], w.shape[1]
    return jnp.transpose(w, (2, 3, 1, 0)).reshape(9 * cin, cout).astype(jnp.bfloat16)


def _row(v):
    return jnp.reshape(v, (1, -1)).astype(jnp.float32)


def prepare_fused_params(params, batch, row, col):
    """Convert PyTorch-layout params into the fused-kernel layout (done once).

    Conv biases are intentionally dropped: every conv feeds a training-mode
    BatchNorm whose mean subtraction cancels any per-channel constant.
    """
    hw = row * col
    m = batch * hw
    mp = ((m + 7) // 8) * 8
    num_hidden = params["start_conv"]["w"].shape[0]
    c_pol = params["policy_conv"]["w"].shape[0]
    c_val = params["value_conv"]["w"].shape[0]
    c_head = c_pol + c_val
    action_size = params["policy_fc"]["w"].shape[0]

    # Start block.
    ws = _conv_cat(params["start_conv"]["w"])
    gs = _row(params["start_bn"]["gamma"])
    bts = _row(params["start_bn"]["beta"])

    # Residual blocks, stacked layer-major.
    wb_list, gb_list, btb_list = [], [], []
    for blk in params["blocks"]:
        for cname, bname in (("conv1", "bn1"), ("conv2", "bn2")):
            wb_list.append(_conv_cat(blk[cname]["w"]))
            gb_list.append(_row(blk[bname]["gamma"]))
            btb_list.append(_row(blk[bname]["beta"]))
    if wb_list:
        wb = jnp.stack(wb_list, axis=0)                    # (2*NB, 9*H, H) bf16
        gb = jnp.stack(gb_list, axis=0)                    # (2*NB, 1, H) f32
        btb = jnp.stack(btb_list, axis=0)
    else:  # zero res-blocks: harmless dummies (kernel loop never reads them)
        wb = jnp.zeros((1, 9 * num_hidden, num_hidden), jnp.bfloat16)
        gb = jnp.ones((1, 1, num_hidden), jnp.float32)
        btb = jnp.zeros((1, 1, num_hidden), jnp.float32)

    # Merged policy+value head conv (per-channel BN => merging is exact).
    wh = jnp.concatenate([_conv_cat(params["policy_conv"]["w"]),
                          _conv_cat(params["value_conv"]["w"])], axis=1)
    gh = jnp.concatenate([_row(params["policy_bn"]["gamma"]),
                          _row(params["value_bn"]["gamma"])], axis=1)
    bth = jnp.concatenate([_row(params["policy_bn"]["beta"]),
                           _row(params["value_bn"]["beta"])], axis=1)

    # Merged policy+value Linear with PyTorch's NCHW Flatten folded in:
    # wfc[p*C + c, a] with p = spatial position, c = merged channel.
    pw3 = params["policy_fc"]["w"].reshape(action_size, c_pol, hw)   # [a, c, p]
    vw3 = params["value_fc"]["w"].reshape(1, c_val, hw)              # [0, c, p]
    wfc3 = jnp.zeros((hw, c_head, action_size + 1), jnp.float32)
    wfc3 = wfc3.at[:, :c_pol, :action_size].set(jnp.transpose(pw3, (2, 1, 0)))
    wfc3 = wfc3.at[:, c_pol:, action_size:].set(jnp.transpose(vw3, (2, 1, 0)))
    wfc = wfc3.reshape(hw * c_head, action_size + 1).astype(jnp.bfloat16)
    bfc = jnp.concatenate([_row(params["policy_fc"]["b"]),
                           _row(params["value_fc"]["b"])], axis=1)

    return {"mask": _make_tap_masks(batch, row, col, mp),
            "ws": ws, "gs": gs, "bts": bts,
            "wb": wb, "gb": gb, "btb": btb,
            "wh": wh, "gh": gh, "bth": bth,
            "wfc": wfc, "bfc": bfc}


# ----------------------------------------------------------------------------
# Deterministic synthetic parameters (PyTorch layout, mirrors the nn.Module)
# ----------------------------------------------------------------------------
def _conv_params(key, cout, cin):
    k1, k2 = jax.random.split(key)
    return {"w": 0.1 * jax.random.normal(k1, (cout, cin, 3, 3), jnp.float32),
            "b": 0.1 * jax.random.normal(k2, (cout,), jnp.float32)}


def _bn_params(key, c):
    k1, k2 = jax.random.split(key)
    return {"gamma": 1.0 + 0.05 * jax.random.normal(k1, (c,), jnp.float32),
            "beta": 0.05 * jax.random.normal(k2, (c,), jnp.float32)}


def _linear_params(key, dout, din):
    k1, k2 = jax.random.split(key)
    return {"w": 0.1 * jax.random.normal(k1, (dout, din), jnp.float32),
            "b": 0.1 * jax.random.normal(k2, (dout,), jnp.float32)}


def init_resnet_params(key, num_res_blocks, num_hidden, row, col, action_size):
    keys = jax.random.split(key, 6 + 4 * num_res_blocks)
    it = iter(keys)
    params = {
        "start_conv": _conv_params(next(it), num_hidden, 3),
        "start_bn": _bn_params(next(it), num_hidden),
        "blocks": [],
        "policy_conv": _conv_params(next(it), 32, num_hidden),
        "policy_bn": _bn_params(next(it), 32),
        "value_conv": _conv_params(next(it), 3, num_hidden),
        "value_bn": _bn_params(next(it), 3),
    }
    params["policy_fc"] = _linear_params(jax.random.fold_in(key, 101),
                                         action_size, 32 * row * col)
    params["value_fc"] = _linear_params(jax.random.fold_in(key, 202),
                                        1, 3 * row * col)
    for _ in range(num_res_blocks):
        params["blocks"].append({
            "conv1": _conv_params(next(it), num_hidden, num_hidden),
            "bn1": _bn_params(next(it), num_hidden),
            "conv2": _conv_params(next(it), num_hidden, num_hidden),
            "bn2": _bn_params(next(it), num_hidden),
        })
    return params


# ----------------------------------------------------------------------------
if __name__ == "__main__":
    # Tic-Tac-Toe game: row_count = column_count = 3, action_size = 9.
    ROW, COL, ACTION_SIZE = 3, 3, 9
    NUM_RES_BLOCKS = 2
    NUM_HIDDEN = 32
    BATCH = 2

    key = jax.random.PRNGKey(0)
    k_params, k_x = jax.random.split(key)

    torch_layout_params = init_resnet_params(k_params, NUM_RES_BLOCKS,
                                             NUM_HIDDEN, ROW, COL, ACTION_SIZE)
    prepared = prepare_fused_params(torch_layout_params, BATCH, ROW, COL)

    # Input matches PyTorch NCHW: (batch, 3 encoded planes, 3, 3)
    x = jax.random.normal(k_x, (BATCH, 3, ROW, COL), jnp.float32)

    fwd = jax.jit(resnet_forward)
    policy, value = fwd(prepared, x)
    jax.block_until_ready((policy, value))

    assert policy.shape == (BATCH, ACTION_SIZE)
    assert value.shape == (BATCH, 1)
    assert bool(jnp.all(jnp.isfinite(policy))) and bool(jnp.all(jnp.isfinite(value)))
    print("KERNEL_OK")
</pallas_src>

<mosaic_0001>
module attributes {stable_mosaic.version = 11 : i64} {
  func.func @kernel(%arg0: memref<24x9xf32, #tpu.memory_space<vmem>>, %arg1: memref<27x32xbf16, #tpu.memory_space<vmem>>, %arg2: memref<1x32xf32, #tpu.memory_space<vmem>>, %arg3: memref<1x32xf32, #tpu.memory_space<vmem>>, %arg4: memref<4x288x32xbf16, #tpu.memory_space<vmem>>, %arg5: memref<4x1x32xf32, #tpu.memory_space<vmem>>, %arg6: memref<4x1x32xf32, #tpu.memory_space<vmem>>, %arg7: memref<288x35xbf16, #tpu.memory_space<vmem>>, %arg8: memref<1x35xf32, #tpu.memory_space<vmem>>, %arg9: memref<1x35xf32, #tpu.memory_space<vmem>>, %arg10: memref<315x10xbf16, #tpu.memory_space<vmem>>, %arg11: memref<1x10xf32, #tpu.memory_space<vmem>>, %arg12: memref<24x3xf32, #tpu.memory_space<vmem>>, %arg13: memref<2x10xf32, #tpu.memory_space<vmem>>, %arg14: memref<40x32xf32, #tpu.memory_space<vmem>>, %arg15: memref<24x288xbf16, #tpu.memory_space<vmem>>, %arg16: memref<24x35xf32, #tpu.memory_space<vmem>>, %arg17: memref<2x315xbf16, #tpu.memory_space<vmem>>) attributes {dimension_semantics = [], scalar_prefetch = 0 : i64, scratch_operands = 4 : i64, tpu.core_type = #tpu.core_type<tc>} {
    %cst = arith.constant 0.000000e+00 : f32
    %0 = vector.broadcast %cst : f32 to vector<40x32xf32>
    %c0 = arith.constant 0 : index
    %c0_0 = arith.constant 0 : index
    %1 = vector.load %arg14[%c0, %c0_0] : memref<40x32xf32, #tpu.memory_space<vmem>>, vector<40x32xf32>
    tpu.vector_store %arg14[%c0, %c0_0], %0 {strides = array<i32>} : memref<40x32xf32, #tpu.memory_space<vmem>>, vector<40x32xf32>,
    %c0_1 = arith.constant 0 : index
    %c0_2 = arith.constant 0 : index
    %2 = vector.load %arg0[%c0_1, %c0_2] : memref<24x9xf32, #tpu.memory_space<vmem>>, vector<24x1xf32>
    %c0_3 = arith.constant 0 : index
    %c1 = arith.constant 1 : index
    %3 = vector.load %arg0[%c0_3, %c1] : memref<24x9xf32, #tpu.memory_space<vmem>>, vector<24x1xf32>
    %c0_4 = arith.constant 0 : index
    %c2 = arith.constant 2 : index
    %4 = vector.load %arg0[%c0_4, %c2] : memref<24x9xf32, #tpu.memory_space<vmem>>, vector<24x1xf32>
    %c0_5 = arith.constant 0 : index
    %c3 = arith.constant 3 : index
    %5 = vector.load %arg0[%c0_5, %c3] : memref<24x9xf32, #tpu.memory_space<vmem>>, vector<24x1xf32>
    %c0_6 = arith.constant 0 : index
    %c4 = arith.constant 4 : index
    %6 = vector.load %arg0[%c0_6, %c4] : memref<24x9xf32, #tpu.memory_space<vmem>>, vector<24x1xf32>
    %c0_7 = arith.constant 0 : index
    %c5 = arith.constant 5 : index
    %7 = vector.load %arg0[%c0_7, %c5] : memref<24x9xf32, #tpu.memory_space<vmem>>, vector<24x1xf32>
    %c0_8 = arith.constant 0 : index
    %c6 = arith.constant 6 : index
    %8 = vector.load %arg0[%c0_8, %c6] : memref<24x9xf32, #tpu.memory_space<vmem>>, vector<24x1xf32>
    %c0_9 = arith.constant 0 : index
    %c7 = arith.constant 7 : index
    %9 = vector.load %arg0[%c0_9, %c7] : memref<24x9xf32, #tpu.memory_space<vmem>>, vector<24x1xf32>
    %c0_10 = arith.constant 0 : index
    %c8 = arith.constant 8 : index
    %10 = vector.load %arg0[%c0_10, %c8] : memref<24x9xf32, #tpu.memory_space<vmem>>, vector<24x1xf32>
    %c0_11 = arith.constant 0 : index
    %c0_12 = arith.constant 0 : index
    %11 = vector.load %arg12[%c0_11, %c0_12] : memref<24x3xf32, #tpu.memory_space<vmem>>, vector<24x3xf32>
    %c0_13 = arith.constant 0 : index
    %c0_14 = arith.constant 0 : index
    %12 = vector.load %arg1[%c0_13, %c0_14] : memref<27x32xbf16, #tpu.memory_space<vmem>>, vector<27x32xbf16>
    %c8_15 = arith.constant 8 : index
    %c0_16 = arith.constant 0 : index
    %13 = vector.load %arg14[%c8_15, %c0_16] : memref<40x32xf32, #tpu.memory_space<vmem>>, vector<24x3xf32>
    tpu.vector_store %arg14[%c8_15, %c0_16], %11 {strides = array<i32>} : memref<40x32xf32, #tpu.memory_space<vmem>>, vector<24x3xf32>,
    %c4_17 = arith.constant 4 : index
    %c0_18 = arith.constant 0 : index
    %14 = vector.load %arg14[%c4_17, %c0_18] : memref<40x32xf32, #tpu.memory_space<vmem>>, vector<24x3xf32>
    %15 = vector.broadcast %2 : vector<24x1xf32> to vector<24x3xf32>
    %16 = arith.mulf %15, %14 : vector<24x3xf32>
    %17 = arith.truncf %16 : vector<24x3xf32> to vector<24x3xbf16>
    %c0_19 = arith.constant 0 : index
    %c0_20 = arith.constant 0 : index
    %18 = vector.load %arg15[%c0_19, %c0_20] : memref<24x288xbf16, #tpu.memory_space<vmem>>, vector<24x3xbf16>
    tpu.vector_store %arg15[%c0_19, %c0_20], %17 {strides = array<i32>} : memref<24x288xbf16, #tpu.memory_space<vmem>>, vector<24x3xbf16>,
    %c5_21 = arith.constant 5 : index
    %c0_22 = arith.constant 0 : index
    %19 = vector.load %arg14[%c5_21, %c0_22] : memref<40x32xf32, #tpu.memory_space<vmem>>, vector<24x3xf32>
    %20 = vector.broadcast %3 : vector<24x1xf32> to vector<24x3xf32>
    %21 = arith.mulf %20, %19 : vector<24x3xf32>
    %22 = arith.truncf %21 : vector<24x3xf32> to vector<24x3xbf16>
    %c0_23 = arith.constant 0 : index
    %c3_24 = arith.constant 3 : index
    %23 = vector.load %arg15[%c0_23, %c3_24] : memref<24x288xbf16, #tpu.memory_space<vmem>>, vector<24x3xbf16>
    tpu.vector_store %arg15[%c0_23, %c3_24], %22 {strides = array<i32>} : memref<24x288xbf16, #tpu.memory_space<vmem>>, vector<24x3xbf16>,
    %c6_25 = arith.constant 6 : index
    %c0_26 = arith.constant 0 : index
    %24 = vector.load %arg14[%c6_25, %c0_26] : memref<40x32xf32, #tpu.memory_space<vmem>>, vector<24x3xf32>
    %25 = vector.broadcast %4 : vector<24x1xf32> to vector<24x3xf32>
    %26 = arith.mulf %25, %24 : vector<24x3xf32>
    %27 = arith.truncf %26 : vector<24x3xf32> to vector<24x3xbf16>
    %c0_27 = arith.constant 0 : index
    %c6_28 = arith.constant 6 : index
    %28 = vector.load %arg15[%c0_27, %c6_28] : memref<24x288xbf16, #tpu.memory_space<vmem>>, vector<24x3xbf16>
    tpu.vector_store %arg15[%c0_27, %c6_28], %27 {strides = array<i32>} : memref<24x288xbf16, #tpu.memory_space<vmem>>, vector<24x3xbf16>,
    %c7_29 = arith.constant 7 : index
    %c0_30 = arith.constant 0 : index
    %29 = vector.load %arg14[%c7_29, %c0_30] : memref<40x32xf32, #tpu.memory_space<vmem>>, vector<24x3xf32>
    %30 = vector.broadcast %5 : vector<24x1xf32> to vector<24x3xf32>
    %31 = arith.mulf %30, %29 : vector<24x3xf32>
    %32 = arith.truncf %31 : vector<24x3xf32> to vector<24x3xbf16>
    %c0_31 = arith.constant 0 : index
    %c9 = arith.constant 9 : index
    %33 = vector.load %arg15[%c0_31, %c9] : memref<24x288xbf16, #tpu.memory_space<vmem>>, vector<24x3xbf16>
    tpu.vector_store %arg15[%c0_31, %c9], %32 {strides = array<i32>} : memref<24x288xbf16, #tpu.memory_space<vmem>>, vector<24x3xbf16>,
    %c8_32 = arith.constant 8 : index
    %c0_33 = arith.constant 0 : index
    %34 = vector.load %arg14[%c8_32, %c0_33] : memref<40x32xf32, #tpu.memory_space<vmem>>, vector<24x3xf32>
    %35 = vector.broadcast %6 : vector<24x1xf32> to vector<24x3xf32>
    %36 = arith.mulf %35, %34 : vector<24x3xf32>
    %37 = arith.truncf %36 : vector<24x3xf32> to vector<24x3xbf16>
    %c0_34 = arith.constant 0 : index
    %c12 = arith.constant 12 : index
    %38 = vector.load %arg15[%c0_34, %c12] : memref<24x288xbf16, #tpu.memory_space<vmem>>, vector<24x3xbf16>
    tpu.vector_store %arg15[%c0_34, %c12], %37 {strides = array<i32>} : memref<24x288xbf16, #tpu.memory_space<vmem>>, vector<24x3xbf16>,
    %c9_35 = arith.constant 9 : index
    %c0_36 = arith.constant 0 : index
    %39 = vector.load %arg14[%c9_35, %c0_36] : memref<40x32xf32, #tpu.memory_space<vmem>>, vector<24x3xf32>
    %40 = vector.broadcast %7 : vector<24x1xf32> to vector<24x3xf32>
    %41 = arith.mulf %40, %39 : vector<24x3xf32>
    %42 = arith.truncf %41 : vector<24x3xf32> to vector<24x3xbf16>
    %c0_37 = arith.constant 0 : index
    %c15 = arith.constant 15 : index
    %43 = vector.load %arg15[%c0_37, %c15] : memref<24x288xbf16, #tpu.memory_space<vmem>>, vector<24x3xbf16>
    tpu.vector_store %arg15[%c0_37, %c15], %42 {strides = array<i32>} : memref<24x288xbf16, #tpu.memory_space<vmem>>, vector<24x3xbf16>,
    %c10 = arith.constant 10 : index
    %c0_38 = arith.constant 0 : index
    %44 = vector.load %arg14[%c10, %c0_38] : memref<40x32xf32, #tpu.memory_space<vmem>>, vector<24x3xf32>
    %45 = vector.broadcast %8 : vector<24x1xf32> to vector<24x3xf32>
    %46 = arith.mulf %45, %44 : vector<24x3xf32>
    %47 = arith.truncf %46 : vector<24x3xf32> to vector<24x3xbf16>
    %c0_39 = arith.constant 0 : index
    %c18 = arith.constant 18 : index
    %48 = vector.load %arg15[%c0_39, %c18] : memref<24x288xbf16, #tpu.memory_space<vmem>>, vector<24x3xbf16>
    tpu.vector_store %arg15[%c0_39, %c18], %47 {strides = array<i32>} : memref<24x288xbf16, #tpu.memory_space<vmem>>, vector<24x3xbf16>,
    %c11 = arith.constant 11 : index
    %c0_40 = arith.constant 0 : index
    %49 = vector.load %arg14[%c11, %c0_40] : memref<40x32xf32, #tpu.memory_space<vmem>>, vector<24x3xf32>
    %50 = vector.broadcast %9 : vector<24x1xf32> to vector<24x3xf32>
    %51 = arith.mulf %50, %49 : vector<24x3xf32>
    %52 = arith.truncf %51 : vector<24x3xf32> to vector<24x3xbf16>
    %c0_41 = arith.constant 0 : index
    %c21 = arith.constant 21 : index
    %53 = vector.load %arg15[%c0_41, %c21] : memref<24x288xbf16, #tpu.memory_space<vmem>>, vector<24x3xbf16>
    tpu.vector_store %arg15[%c0_41, %c21], %52 {strides = array<i32>} : memref<24x288xbf16, #tpu.memory_space<vmem>>, vector<24x3xbf16>,
    %c12_42 = arith.constant 12 : index
    %c0_43 = arith.constant 0 : index
    %54 = vector.load %arg14[%c12_42, %c0_43] : memref<40x32xf32, #tpu.memory_space<vmem>>, vector<24x3xf32>
    %55 = vector.broadcast %10 : vector<24x1xf32> to vector<24x3xf32>
    %56 = arith.mulf %55, %54 : vector<24x3xf32>
    %57 = arith.truncf %56 : vector<24x3xf32> to vector<24x3xbf16>
    %c0_44 = arith.constant 0 : index
    %c24 = arith.constant 24 : index
    %58 = vector.load %arg15[%c0_44, %c24] : memref<24x288xbf16, #tpu.memory_space<vmem>>, vector<24x3xbf16>
    tpu.vector_store %arg15[%c0_44, %c24], %57 {strides = array<i32>} : memref<24x288xbf16, #tpu.memory_space<vmem>>, vector<24x3xbf16>,
    %c0_45 = arith.constant 0 : index
    %c0_46 = arith.constant 0 : index
    %59 = vector.load %arg15[%c0_45, %c0_46] : memref<24x288xbf16, #tpu.memory_space<vmem>>, vector<24x27xbf16>
    %cst_47 = arith.constant dense<0.000000e+00> : vector<24x32xf32>
    %60 = tpu.matmul %59, %12, %cst_47 {dimension_numbers = #tpu.dot_dimension_numbers<[1], [0], [0], [1], [0, 0, 1, 1], [], []>} : vector<24x27xbf16>, vector<27x32xbf16>, vector<24x32xf32> -> vector<24x32xf32>
    %c0_48 = arith.constant 0 : index
    %c0_49 = arith.constant 0 : index
    %61 = vector.load %arg2[%c0_48, %c0_49] : memref<1x32xf32, #tpu.memory_space<vmem>>, vector<1x32xf32>
    %c0_50 = arith.constant 0 : index
    %c0_51 = arith.constant 0 : index
    %62 = vector.load %arg3[%c0_50, %c0_51] : memref<1x32xf32, #tpu.memory_space<vmem>>, vector<1x32xf32>
    %cst_52 = arith.constant dense<0.000000e+00> : vector<32xf32>
    %63 = vector.multi_reduction <add>, %60, %cst_52 [0] : vector<24x32xf32> to vector<32xf32>
    %64 = vector.shape_cast %63 : vector<32xf32> to vector<1x32xf32>
    %cst_53 = arith.constant 0.055555556 : f32
    %65 = vector.broadcast %cst_53 : f32 to vector<1x32xf32>
    %66 = arith.mulf %64, %65 : vector<1x32xf32>
    %67 = vector.broadcast %66 : vector<1x32xf32> to vector<24x32xf32>
    %68 = arith.subf %60, %67 : vector<24x32xf32>
    %69 = arith.mulf %68, %68 : vector<24x32xf32>
    %cst_54 = arith.constant dense<0.000000e+00> : vector<32xf32>
    %70 = vector.multi_reduction <add>, %69, %cst_54 [0] : vector<24x32xf32> to vector<32xf32>
    %71 = vector.shape_cast %70 : vector<32xf32> to vector<1x32xf32>
    %cst_55 = arith.constant 6.000000e+00 : f32
    %72 = vector.broadcast %cst_55 : f32 to vector<1x32xf32>
    %73 = arith.mulf %72, %66 : vector<1x32xf32>
    %74 = arith.mulf %73, %66 : vector<1x32xf32>
    %75 = arith.subf %71, %74 : vector<1x32xf32>
    %cst_56 = arith.constant 0.055555556 : f32
    %76 = vector.broadcast %cst_56 : f32 to vector<1x32xf32>
    %77 = arith.mulf %75, %76 : vector<1x32xf32>
    %cst_57 = arith.constant 9.99999974E-6 : f32
    %78 = vector.broadcast %cst_57 : f32 to vector<1x32xf32>
    %79 = arith.addf %77, %78 : vector<1x32xf32>
    %80 = math.rsqrt %79 : vector<1x32xf32>
    %81 = arith.mulf %61, %80 : vector<1x32xf32>
    %82 = vector.broadcast %81 : vector<1x32xf32> to vector<24x32xf32>
    %83 = arith.mulf %68, %82 : vector<24x32xf32>
    %84 = vector.broadcast %62 : vector<1x32xf32> to vector<24x32xf32>
    %85 = arith.addf %83, %84 : vector<24x32xf32>
    %cst_58 = arith.constant 0.000000e+00 : f32
    %86 = vector.broadcast %cst_58 : f32 to vector<24x32xf32>
    %87 = arith.maximumf %85, %86 : vector<24x32xf32>
    %c0_59 = arith.constant 0 : index
    %c0_60 = arith.constant 0 : index
    %c0_61 = arith.constant 0 : index
    %88 = vector.load %arg4[%c0_59, %c0_60, %c0_61] : memref<4x288x32xbf16, #tpu.memory_space<vmem>>, vector<1x288x32xbf16>
    %89 = vector.shape_cast %88 : vector<1x288x32xbf16> to vector<288x32xbf16>
    %c8_62 = arith.constant 8 : index
    %c0_63 = arith.constant 0 : index
    %90 = vector.load %arg14[%c8_62, %c0_63] : memref<40x32xf32, #tpu.memory_space<vmem>>, vector<24x32xf32>
    tpu.vector_store %arg14[%c8_62, %c0_63], %87 {strides = array<i32>} : memref<40x32xf32, #tpu.memory_space<vmem>>, vector<24x32xf32>,
    %c4_64 = arith.constant 4 : index
    %c0_65 = arith.constant 0 : index
    %91 = vector.load %arg14[%c4_64, %c0_65] : memref<40x32xf32, #tpu.memory_space<vmem>>, vector<24x32xf32>
    %92 = vector.broadcast %2 : vector<24x1xf32> to vector<24x32xf32>
    %93 = arith.mulf %92, %91 : vector<24x32xf32>
    %94 = arith.truncf %93 : vector<24x32xf32> to vector<24x32xbf16>
    %c0_66 = arith.constant 0 : index
    %c0_67 = arith.constant 0 : index
    %95 = vector.load %arg15[%c0_66, %c0_67] : memref<24x288xbf16, #tpu.memory_space<vmem>>, vector<24x32xbf16>
    tpu.vector_store %arg15[%c0_66, %c0_67], %94 {strides = array<i32>} : memref<24x288xbf16, #tpu.memory_space<vmem>>, vector<24x32xbf16>,
    %c5_68 = arith.constant 5 : index
    %c0_69 = arith.constant 0 : index
    %96 = vector.load %arg14[%c5_68, %c0_69] : memref<40x32xf32, #tpu.memory_space<vmem>>, vector<24x32xf32>
    %97 = vector.broadcast %3 : vector<24x1xf32> to vector<24x32xf32>
    %98 = arith.mulf %97, %96 : vector<24x32xf32>
    %99 = arith.truncf %98 : vector<24x32xf32> to vector<24x32xbf16>
    %c0_70 = arith.constant 0 : index
    %c32 = arith.constant 32 : index
    %100 = vector.load %arg15[%c0_70, %c32] : memref<24x288xbf16, #tpu.memory_space<vmem>>, vector<24x32xbf16>
    tpu.vector_store %arg15[%c0_70, %c32], %99 {strides = array<i32>} : memref<24x288xbf16, #tpu.memory_space<vmem>>, vector<24x32xbf16>,
    %c6_71 = arith.constant 6 : index
    %c0_72 = arith.constant 0 : index
    %101 = vector.load %arg14[%c6_71, %c0_72] : memref<40x32xf32, #tpu.memory_space<vmem>>, vector<24x32xf32>
    %102 = vector.broadcast %4 : vector<24x1xf32> to vector<24x32xf32>
    %103 = arith.mulf %102, %101 : vector<24x32xf32>
    %104 = arith.truncf %103 : vector<24x32xf32> to vector<24x32xbf16>
    %c0_73 = arith.constant 0 : index
    %c64 = arith.constant 64 : index
    %105 = vector.load %arg15[%c0_73, %c64] : memref<24x288xbf16, #tpu.memory_space<vmem>>, vector<24x32xbf16>
    tpu.vector_store %arg15[%c0_73, %c64], %104 {strides = array<i32>} : memref<24x288xbf16, #tpu.memory_space<vmem>>, vector<24x32xbf16>,
    %c7_74 = arith.constant 7 : index
    %c0_75 = arith.constant 0 : index
    %106 = vector.load %arg14[%c7_74, %c0_75] : memref<40x32xf32, #tpu.memory_space<vmem>>, vector<24x32xf32>
    %107 = vector.broadcast %5 : vector<24x1xf32> to vector<24x32xf32>
    %108 = arith.mulf %107, %106 : vector<24x32xf32>
    %109 = arith.truncf %108 : vector<24x32xf32> to vector<24x32xbf16>
    %c0_76 = arith.constant 0 : index
    %c96 = arith.constant 96 : index
    %110 = vector.load %arg15[%c0_76, %c96] : memref<24x288xbf16, #tpu.memory_space<vmem>>, vector<24x32xbf16>
    tpu.vector_store %arg15[%c0_76, %c96], %109 {strides = array<i32>} : memref<24x288xbf16, #tpu.memory_space<vmem>>, vector<24x32xbf16>,
    %c8_77 = arith.constant 8 : index
    %c0_78 = arith.constant 0 : index
    %111 = vector.load %arg14[%c8_77, %c0_78] : memref<40x32xf32, #tpu.memory_space<vmem>>, vector<24x32xf32>
    %112 = vector.broadcast %6 : vector<24x1xf32> to vector<24x32xf32>
    %113 = arith.mulf %112, %111 : vector<24x32xf32>
    %114 = arith.truncf %113 : vector<24x32xf32> to vector<24x32xbf16>
    %c0_79 = arith.constant 0 : index
    %c128 = arith.constant 128 : index
    %115 = vector.load %arg15[%c0_79, %c128] : memref<24x288xbf16, #tpu.memory_space<vmem>>, vector<24x32xbf16>
    tpu.vector_store %arg15[%c0_79, %c128], %114 {strides = array<i32>} : memref<24x288xbf16, #tpu.memory_space<vmem>>, vector<24x32xbf16>,
    %c9_80 = arith.constant 9 : index
    %c0_81 = arith.constant 0 : index
    %116 = vector.load %arg14[%c9_80, %c0_81] : memref<40x32xf32, #tpu.memory_space<vmem>>, vector<24x32xf32>
    %117 = vector.broadcast %7 : vector<24x1xf32> to vector<24x32xf32>
    %118 = arith.mulf %117, %116 : vector<24x32xf32>
    %119 = arith.truncf %118 : vector<24x32xf32> to vector<24x32xbf16>
    %c0_82 = arith.constant 0 : index
    %c160 = arith.constant 160 : index
    %120 = vector.load %arg15[%c0_82, %c160] : memref<24x288xbf16, #tpu.memory_space<vmem>>, vector<24x32xbf16>
    tpu.vector_store %arg15[%c0_82, %c160], %119 {strides = array<i32>} : memref<24x288xbf16, #tpu.memory_space<vmem>>, vector<24x32xbf16>,
    %c10_83 = arith.constant 10 : index
    %c0_84 = arith.constant 0 : index
    %121 = vector.load %arg14[%c10_83, %c0_84] : memref<40x32xf32, #tpu.memory_space<vmem>>, vector<24x32xf32>
    %122 = vector.broadcast %8 : vector<24x1xf32> to vector<24x32xf32>
    %123 = arith.mulf %122, %121 : vector<24x32xf32>
    %124 = arith.truncf %123 : vector<24x32xf32> to vector<24x32xbf16>
    %c0_85 = arith.constant 0 : index
    %c192 = arith.constant 192 : index
    %125 = vector.load %arg15[%c0_85, %c192] : memref<24x288xbf16, #tpu.memory_space<vmem>>, vector<24x32xbf16>
    tpu.vector_store %arg15[%c0_85, %c192], %124 {strides = array<i32>} : memref<24x288xbf16, #tpu.memory_space<vmem>>, vector<24x32xbf16>,
    %c11_86 = arith.constant 11 : index
    %c0_87 = arith.constant 0 : index
    %126 = vector.load %arg14[%c11_86, %c0_87] : memref<40x32xf32, #tpu.memory_space<vmem>>, vector<24x32xf32>
    %127 = vector.broadcast %9 : vector<24x1xf32> to vector<24x32xf32>
    %128 = arith.mulf %127, %126 : vector<24x32xf32>
    %129 = arith.truncf %128 : vector<24x32xf32> to vector<24x32xbf16>
    %c0_88 = arith.constant 0 : index
    %c224 = arith.constant 224 : index
    %130 = vector.load %arg15[%c0_88, %c224] : memref<24x288xbf16, #tpu.memory_space<vmem>>, vector<24x32xbf16>
    tpu.vector_store %arg15[%c0_88, %c224], %129 {strides = array<i32>} : memref<24x288xbf16, #tpu.memory_space<vmem>>, vector<24x32xbf16>,
    %c12_89 = arith.constant 12 : index
    %c0_90 = arith.constant 0 : index
    %131 = vector.load %arg14[%c12_89, %c0_90] : memref<40x32xf32, #tpu.memory_space<vmem>>, vector<24x32xf32>
    %132 = vector.broadcast %10 : vector<24x1xf32> to vector<24x32xf32>
    %133 = arith.mulf %132, %131 : vector<24x32xf32>
    %134 = arith.truncf %133 : vector<24x32xf32> to vector<24x32xbf16>
    %c0_91 = arith.constant 0 : index
    %c256 = arith.constant 256 : index
    %135 = vector.load %arg15[%c0_91, %c256] : memref<24x288xbf16, #tpu.memory_space<vmem>>, vector<24x32xbf16>
    tpu.vector_store %arg15[%c0_91, %c256], %134 {strides = array<i32>} : memref<24x288xbf16, #tpu.memory_space<vmem>>, vector<24x32xbf16>,
    %c0_92 = arith.constant 0 : index
    %c0_93 = arith.constant 0 : index
    %136 = vector.load %arg15[%c0_92, %c0_93] : memref<24x288xbf16, #tpu.memory_space<vmem>>, vector<24x288xbf16>
    %cst_94 = arith.constant dense<0.000000e+00> : vector<24x32xf32>
    %137 = tpu.matmul %136, %89, %cst_94 {dimension_numbers = #tpu.dot_dimension_numbers<[1], [0], [0], [1], [0, 0, 1, 1], [], []>} : vector<24x288xbf16>, vector<288x32xbf16>, vector<24x32xf32> -> vector<24x32xf32>
    %c0_95 = arith.constant 0 : index
    %c0_96 = arith.constant 0 : index
    %c0_97 = arith.constant 0 : index
    %138 = vector.load %arg5[%c0_95, %c0_96, %c0_97] : memref<4x1x32xf32, #tpu.memory_space<vmem>>, vector<1x1x32xf32>
    %139 = vector.shape_cast %138 : vector<1x1x32xf32> to vector<1x32xf32>
    %c0_98 = arith.constant 0 : index
    %c0_99 = arith.constant 0 : index
    %c0_100 = arith.constant 0 : index
    %140 = vector.load %arg6[%c0_98, %c0_99, %c0_100] : memref<4x1x32xf32, #tpu.memory_space<vmem>>, vector<1x1x32xf32>
    %141 = vector.shape_cast %140 : vector<1x1x32xf32> to vector<1x32xf32>
    %cst_101 = arith.constant dense<0.000000e+00> : vector<32xf32>
    %142 = vector.multi_reduction <add>, %137, %cst_101 [0] : vector<24x32xf32> to vector<32xf32>
    %143 = vector.shape_cast %142 : vector<32xf32> to vector<1x32xf32>
    %cst_102 = arith.constant 0.055555556 : f32
    %144 = vector.broadcast %cst_102 : f32 to vector<1x32xf32>
    %145 = arith.mulf %143, %144 : vector<1x32xf32>
    %146 = vector.broadcast %145 : vector<1x32xf32> to vector<24x32xf32>
    %147 = arith.subf %137, %146 : vector<24x32xf32>
    %148 = arith.mulf %147, %147 : vector<24x32xf32>
    %cst_103 = arith.constant dense<0.000000e+00> : vector<32xf32>
    %149 = vector.multi_reduction <add>, %148, %cst_103 [0] : vector<24x32xf32> to vector<32xf32>
    %150 = vector.shape_cast %149 : vector<32xf32> to vector<1x32xf32>
    %cst_104 = arith.constant 6.000000e+00 : f32
    %151 = vector.broadcast %cst_104 : f32 to vector<1x32xf32>
    %152 = arith.mulf %151, %145 : vector<1x32xf32>
    %153 = arith.mulf %152, %145 : vector<1x32xf32>
    %154 = arith.subf %150, %153 : vector<1x32xf32>
    %cst_105 = arith.constant 0.055555556 : f32
    %155 = vector.broadcast %cst_105 : f32 to vector<1x32xf32>
    %156 = arith.mulf %154, %155 : vector<1x32xf32>
    %cst_106 = arith.constant 9.99999974E-6 : f32
    %157 = vector.broadcast %cst_106 : f32 to vector<1x32xf32>
    %158 = arith.addf %156, %157 : vector<1x32xf32>
    %159 = math.rsqrt %158 : vector<1x32xf32>
    %160 = arith.mulf %139, %159 : vector<1x32xf32>
    %161 = vector.broadcast %160 : vector<1x32xf32> to vector<24x32xf32>
    %162 = arith.mulf %147, %161 : vector<24x32xf32>
    %163 = vector.broadcast %141 : vector<1x32xf32> to vector<24x32xf32>
    %164 = arith.addf %162, %163 : vector<24x32xf32>
    %cst_107 = arith.constant 0.000000e+00 : f32
    %165 = vector.broadcast %cst_107 : f32 to vector<24x32xf32>
    %166 = arith.maximumf %164, %165 : vector<24x32xf32>
    %c1_108 = arith.constant 1 : index
    %c0_109 = arith.constant 0 : index
    %c0_110 = arith.constant 0 : index
    %167 = vector.load %arg4[%c1_108, %c0_109, %c0_110] : memref<4x288x32xbf16, #tpu.memory_space<vmem>>, vector<1x288x32xbf16>
    %168 = vector.shape_cast %167 : vector<1x288x32xbf16> to vector<288x32xbf16>
    %c8_111 = arith.constant 8 : index
    %c0_112 = arith.constant 0 : index
    %169 = vector.load %arg14[%c8_111, %c0_112] : memref<40x32xf32, #tpu.memory_space<vmem>>, vector<24x32xf32>
    tpu.vector_store %arg14[%c8_111, %c0_112], %166 {strides = array<i32>} : memref<40x32xf32, #tpu.memory_space<vmem>>, vector<24x32xf32>,
    %c4_113 = arith.constant 4 : index
    %c0_114 = arith.constant 0 : index
    %170 = vector.load %arg14[%c4_113, %c0_114] : memref<40x32xf32, #tpu.memory_space<vmem>>, vector<24x32xf32>
    %171 = vector.broadcast %2 : vector<24x1xf32> to vector<24x32xf32>
    %172 = arith.mulf %171, %170 : vector<24x32xf32>
    %173 = arith.truncf %172 : vector<24x32xf32> to vector<24x32xbf16>
    %c0_115 = arith.constant 0 : index
    %c0_116 = arith.constant 0 : index
    %174 = vector.load %arg15[%c0_115, %c0_116] : memref<24x288xbf16, #tpu.memory_space<vmem>>, vector<24x32xbf16>
    tpu.vector_store %arg15[%c0_115, %c0_116], %173 {strides = array<i32>} : memref<24x288xbf16, #tpu.memory_space<vmem>>, vector<24x32xbf16>,
    %c5_117 = arith.constant 5 : index
    %c0_118 = arith.constant 0 : index
    %175 = vector.load %arg14[%c5_117, %c0_118] : memref<40x32xf32, #tpu.memory_space<vmem>>, vector<24x32xf32>
    %176 = vector.broadcast %3 : vector<24x1xf32> to vector<24x32xf32>
    %177 = arith.mulf %176, %175 : vector<24x32xf32>
    %178 = arith.truncf %177 : vector<24x32xf32> to vector<24x32xbf16>
    %c0_119 = arith.constant 0 : index
    %c32_120 = arith.constant 32 : index
    %179 = vector.load %arg15[%c0_119, %c32_120] : memref<24x288xbf16, #tpu.memory_space<vmem>>, vector<24x32xbf16>
    tpu.vector_store %arg15[%c0_119, %c32_120], %178 {strides = array<i32>} : memref<24x288xbf16, #tpu.memory_space<vmem>>, vector<24x32xbf16>,
    %c6_121 = arith.constant 6 : index
    %c0_122 = arith.constant 0 : index
    %180 = vector.load %arg14[%c6_121, %c0_122] : memref<40x32xf32, #tpu.memory_space<vmem>>, vector<24x32xf32>
    %181 = vector.broadcast %4 : vector<24x1xf32> to vector<24x32xf32>
    %182 = arith.mulf %181, %180 : vector<24x32xf32>
    %183 = arith.truncf %182 : vector<24x32xf32> to vector<24x32xbf16>
    %c0_123 = arith.constant 0 : index
    %c64_124 = arith.constant 64 : index
    %184 = vector.load %arg15[%c0_123, %c64_124] : memref<24x288xbf16, #tpu.memory_space<vmem>>, vector<24x32xbf16>
    tpu.vector_store %arg15[%c0_123, %c64_124], %183 {strides = array<i32>} : memref<24x288xbf16, #tpu.memory_space<vmem>>, vector<24x32xbf16>,
    %c7_125 = arith.constant 7 : index
    %c0_126 = arith.constant 0 : index
    %185 = vector.load %arg14[%c7_125, %c0_126] : memref<40x32xf32, #tpu.memory_space<vmem>>, vector<24x32xf32>
    %186 = vector.broadcast %5 : vector<24x1xf32> to vector<24x32xf32>
    %187 = arith.mulf %186, %185 : vector<24x32xf32>
    %188 = arith.truncf %187 : vector<24x32xf32> to vector<24x32xbf16>
    %c0_127 = arith.constant 0 : index
    %c96_128 = arith.constant 96 : index
    %189 = vector.load %arg15[%c0_127, %c96_128] : memref<24x288xbf16, #tpu.memory_space<vmem>>, vector<24x32xbf16>
    tpu.vector_store %arg15[%c0_127, %c96_128], %188 {strides = array<i32>} : memref<24x288xbf16, #tpu.memory_space<vmem>>, vector<24x32xbf16>,
    %c8_129 = arith.constant 8 : index
    %c0_130 = arith.constant 0 : index
    %190 = vector.load %arg14[%c8_129, %c0_130] : memref<40x32xf32, #tpu.memory_space<vmem>>, vector<24x32xf32>
    %191 = vector.broadcast %6 : vector<24x1xf32> to vector<24x32xf32>
    %192 = arith.mulf %191, %190 : vector<24x32xf32>
    %193 = arith.truncf %192 : vector<24x32xf32> to vector<24x32xbf16>
    %c0_131 = arith.constant 0 : index
    %c128_132 = arith.constant 128 : index
    %194 = vector.load %arg15[%c0_131, %c128_132] : memref<24x288xbf16, #tpu.memory_space<vmem>>, vector<24x32xbf16>
    tpu.vector_store %arg15[%c0_131, %c128_132], %193 {strides = array<i32>} : memref<24x288xbf16, #tpu.memory_space<vmem>>, vector<24x32xbf16>,
    %c9_133 = arith.constant 9 : index
    %c0_134 = arith.constant 0 : index
    %195 = vector.load %arg14[%c9_133, %c0_134] : memref<40x32xf32, #tpu.memory_space<vmem>>, vector<24x32xf32>
    %196 = vector.broadcast %7 : vector<24x1xf32> to vector<24x32xf32>
    %197 = arith.mulf %196, %195 : vector<24x32xf32>
    %198 = arith.truncf %197 : vector<24x32xf32> to vector<24x32xbf16>
    %c0_135 = arith.constant 0 : index
    %c160_136 = arith.constant 160 : index
    %199 = vector.load %arg15[%c0_135, %c160_136] : memref<24x288xbf16, #tpu.memory_space<vmem>>, vector<24x32xbf16>
    tpu.vector_store %arg15[%c0_135, %c160_136], %198 {strides = array<i32>} : memref<24x288xbf16, #tpu.memory_space<vmem>>, vector<24x32xbf16>,
    %c10_137 = arith.constant 10 : index
    %c0_138 = arith.constant 0 : index
    %200 = vector.load %arg14[%c10_137, %c0_138] : memref<40x32xf32, #tpu.memory_space<vmem>>, vector<24x32xf32>
    %201 = vector.broadcast %8 : vector<24x1xf32> to vector<24x32xf32>
    %202 = arith.mulf %201, %200 : vector<24x32xf32>
    %203 = arith.truncf %202 : vector<24x32xf32> to vector<24x32xbf16>
    %c0_139 = arith.constant 0 : index
    %c192_140 = arith.constant 192 : index
    %204 = vector.load %arg15[%c0_139, %c192_140] : memref<24x288xbf16, #tpu.memory_space<vmem>>, vector<24x32xbf16>
    tpu.vector_store %arg15[%c0_139, %c192_140], %203 {strides = array<i32>} : memref<24x288xbf16, #tpu.memory_space<vmem>>, vector<24x32xbf16>,
    %c11_141 = arith.constant 11 : index
    %c0_142 = arith.constant 0 : index
    %205 = vector.load %arg14[%c11_141, %c0_142] : memref<40x32xf32, #tpu.memory_space<vmem>>, vector<24x32xf32>
    %206 = vector.broadcast %9 : vector<24x1xf32> to vector<24x32xf32>
    %207 = arith.mulf %206, %205 : vector<24x32xf32>
    %208 = arith.truncf %207 : vector<24x32xf32> to vector<24x32xbf16>
    %c0_143 = arith.constant 0 : index
    %c224_144 = arith.constant 224 : index
    %209 = vector.load %arg15[%c0_143, %c224_144] : memref<24x288xbf16, #tpu.memory_space<vmem>>, vector<24x32xbf16>
    tpu.vector_store %arg15[%c0_143, %c224_144], %208 {strides = array<i32>} : memref<24x288xbf16, #tpu.memory_space<vmem>>, vector<24x32xbf16>,
    %c12_145 = arith.constant 12 : index
    %c0_146 = arith.constant 0 : index
    %210 = vector.load %arg14[%c12_145, %c0_146] : memref<40x32xf32, #tpu.memory_space<vmem>>, vector<24x32xf32>
    %211 = vector.broadcast %10 : vector<24x1xf32> to vector<24x32xf32>
    %212 = arith.mulf %211, %210 : vector<24x32xf32>
    %213 = arith.truncf %212 : vector<24x32xf32> to vector<24x32xbf16>
    %c0_147 = arith.constant 0 : index
    %c256_148 = arith.constant 256 : index
    %214 = vector.load %arg15[%c0_147, %c256_148] : memref<24x288xbf16, #tpu.memory_space<vmem>>, vector<24x32xbf16>
    tpu.vector_store %arg15[%c0_147, %c256_148], %213 {strides = array<i32>} : memref<24x288xbf16, #tpu.memory_space<vmem>>, vector<24x32xbf16>,
    %c0_149 = arith.constant 0 : index
    %c0_150 = arith.constant 0 : index
    %215 = vector.load %arg15[%c0_149, %c0_150] : memref<24x288xbf16, #tpu.memory_space<vmem>>, vector<24x288xbf16>
    %cst_151 = arith.constant dense<0.000000e+00> : vector<24x32xf32>
    %216 = tpu.matmul %215, %168, %cst_151 {dimension_numbers = #tpu.dot_dimension_numbers<[1], [0], [0], [1], [0, 0, 1, 1], [], []>} : vector<24x288xbf16>, vector<288x32xbf16>, vector<24x32xf32> -> vector<24x32xf32>
    %c1_152 = arith.constant 1 : index
    %c0_153 = arith.constant 0 : index
    %c0_154 = arith.constant 0 : index
    %217 = vector.load %arg5[%c1_152, %c0_153, %c0_154] : memref<4x1x32xf32, #tpu.memory_space<vmem>>, vector<1x1x32xf32>
    %218 = vector.shape_cast %217 : vector<1x1x32xf32> to vector<1x32xf32>
    %c1_155 = arith.constant 1 : index
    %c0_156 = arith.constant 0 : index
    %c0_157 = arith.constant 0 : index
    %219 = vector.load %arg6[%c1_155, %c0_156, %c0_157] : memref<4x1x32xf32, #tpu.memory_space<vmem>>, vector<1x1x32xf32>
    %220 = vector.shape_cast %219 : vector<1x1x32xf32> to vector<1x32xf32>
    %cst_158 = arith.constant dense<0.000000e+00> : vector<32xf32>
    %221 = vector.multi_reduction <add>, %216, %cst_158 [0] : vector<24x32xf32> to vector<32xf32>
    %222 = vector.shape_cast %221 : vector<32xf32> to vector<1x32xf32>
    %cst_159 = arith.constant 0.055555556 : f32
    %223 = vector.broadcast %cst_159 : f32 to vector<1x32xf32>
    %224 = arith.mulf %222, %223 : vector<1x32xf32>
    %225 = vector.broadcast %224 : vector<1x32xf32> to vector<24x32xf32>
    %226 = arith.subf %216, %225 : vector<24x32xf32>
    %227 = arith.mulf %226, %226 : vector<24x32xf32>
    %cst_160 = arith.constant dense<0.000000e+00> : vector<32xf32>
    %228 = vector.multi_reduction <add>, %227, %cst_160 [0] : vector<24x32xf32> to vector<32xf32>
    %229 = vector.shape_cast %228 : vector<32xf32> to vector<1x32xf32>
    %cst_161 = arith.constant 6.000000e+00 : f32
    %230 = vector.broadcast %cst_161 : f32 to vector<1x32xf32>
    %231 = arith.mulf %230, %224 : vector<1x32xf32>
    %232 = arith.mulf %231, %224 : vector<1x32xf32>
    %233 = arith.subf %229, %232 : vector<1x32xf32>
    %cst_162 = arith.constant 0.055555556 : f32
    %234 = vector.broadcast %cst_162 : f32 to vector<1x32xf32>
    %235 = arith.mulf %233, %234 : vector<1x32xf32>
    %cst_163 = arith.constant 9.99999974E-6 : f32
    %236 = vector.broadcast %cst_163 : f32 to vector<1x32xf32>
    %237 = arith.addf %235, %236 : vector<1x32xf32>
    %238 = math.rsqrt %237 : vector<1x32xf32>
    %239 = arith.mulf %218, %238 : vector<1x32xf32>
    %240 = vector.broadcast %239 : vector<1x32xf32> to vector<24x32xf32>
    %241 = arith.mulf %226, %240 : vector<24x32xf32>
    %242 = vector.broadcast %220 : vector<1x32xf32> to vector<24x32xf32>
    %243 = arith.addf %241, %242 : vector<24x32xf32>
    %244 = arith.addf %243, %87 : vector<24x32xf32>
    %cst_164 = arith.constant 0.000000e+00 : f32
    %245 = vector.broadcast %cst_164 : f32 to vector<24x32xf32>
    %246 = arith.maximumf %244, %245 : vector<24x32xf32>
    %c2_165 = arith.constant 2 : index
    %c0_166 = arith.constant 0 : index
    %c0_167 = arith.constant 0 : index
    %247 = vector.load %arg4[%c2_165, %c0_166, %c0_167] : memref<4x288x32xbf16, #tpu.memory_space<vmem>>, vector<1x288x32xbf16>
    %248 = vector.shape_cast %247 : vector<1x288x32xbf16> to vector<288x32xbf16>
    %c8_168 = arith.constant 8 : index
    %c0_169 = arith.constant 0 : index
    %249 = vector.load %arg14[%c8_168, %c0_169] : memref<40x32xf32, #tpu.memory_space<vmem>>, vector<24x32xf32>
    tpu.vector_store %arg14[%c8_168, %c0_169], %246 {strides = array<i32>} : memref<40x32xf32, #tpu.memory_space<vmem>>, vector<24x32xf32>,
    %c4_170 = arith.constant 4 : index
    %c0_171 = arith.constant 0 : index
    %250 = vector.load %arg14[%c4_170, %c0_171] : memref<40x32xf32, #tpu.memory_space<vmem>>, vector<24x32xf32>
    %251 = vector.broadcast %2 : vector<24x1xf32> to vector<24x32xf32>
    %252 = arith.mulf %251, %250 : vector<24x32xf32>
    %253 = arith.truncf %252 : vector<24x32xf32> to vector<24x32xbf16>
    %c0_172 = arith.constant 0 : index
    %c0_173 = arith.constant 0 : index
    %254 = vector.load %arg15[%c0_172, %c0_173] : memref<24x288xbf16, #tpu.memory_space<vmem>>, vector<24x32xbf16>
    tpu.vector_store %arg15[%c0_172, %c0_173], %253 {strides = array<i32>} : memref<24x288xbf16, #tpu.memory_space<vmem>>, vector<24x32xbf16>,
    %c5_174 = arith.constant 5 : index
    %c0_175 = arith.constant 0 : index
    %255 = vector.load %arg14[%c5_174, %c0_175] : memref<40x32xf32, #tpu.memory_space<vmem>>, vector<24x32xf32>
    %256 = vector.broadcast %3 : vector<24x1xf32> to vector<24x32xf32>
    %257 = arith.mulf %256, %255 : vector<24x32xf32>
    %258 = arith.truncf %257 : vector<24x32xf32> to vector<24x32xbf16>
    %c0_176 = arith.constant 0 : index
    %c32_177 = arith.constant 32 : index
    %259 = vector.load %arg15[%c0_176, %c32_177] : memref<24x288xbf16, #tpu.memory_space<vmem>>, vector<24x32xbf16>
    tpu.vector_store %arg15[%c0_176, %c32_177], %258 {strides = array<i32>} : memref<24x288xbf16, #tpu.memory_space<vmem>>, vector<24x32xbf16>,
    %c6_178 = arith.constant 6 : index
    %c0_179 = arith.constant 0 : index
    %260 = vector.load %arg14[%c6_178, %c0_179] : memref<40x32xf32, #tpu.memory_space<vmem>>, vector<24x32xf32>
    %261 = vector.broadcast %4 : vector<24x1xf32> to vector<24x32xf32>
    %262 = arith.mulf %261, %260 : vector<24x32xf32>
    %263 = arith.truncf %262 : vector<24x32xf32> to vector<24x32xbf16>
    %c0_180 = arith.constant 0 : index
    %c64_181 = arith.constant 64 : index
    %264 = vector.load %arg15[%c0_180, %c64_181] : memref<24x288xbf16, #tpu.memory_space<vmem>>, vector<24x32xbf16>
    tpu.vector_store %arg15[%c0_180, %c64_181], %263 {strides = array<i32>} : memref<24x288xbf16, #tpu.memory_space<vmem>>, vector<24x32xbf16>,
    %c7_182 = arith.constant 7 : index
    %c0_183 = arith.constant 0 : index
    %265 = vector.load %arg14[%c7_182, %c0_183] : memref<40x32xf32, #tpu.memory_space<vmem>>, vector<24x32xf32>
    %266 = vector.broadcast %5 : vector<24x1xf32> to vector<24x32xf32>
    %267 = arith.mulf %266, %265 : vector<24x32xf32>
    %268 = arith.truncf %267 : vector<24x32xf32> to vector<24x32xbf16>
    %c0_184 = arith.constant 0 : index
    %c96_185 = arith.constant 96 : index
    %269 = vector.load %arg15[%c0_184, %c96_185] : memref<24x288xbf16, #tpu.memory_space<vmem>>, vector<24x32xbf16>
    tpu.vector_store %arg15[%c0_184, %c96_185], %268 {strides = array<i32>} : memref<24x288xbf16, #tpu.memory_space<vmem>>, vector<24x32xbf16>,
    %c8_186 = arith.constant 8 : index
    %c0_187 = arith.constant 0 : index
    %270 = vector.load %arg14[%c8_186, %c0_187] : memref<40x32xf32, #tpu.memory_space<vmem>>, vector<24x32xf32>
    %271 = vector.broadcast %6 : vector<24x1xf32> to vector<24x32xf32>
    %272 = arith.mulf %271, %270 : vector<24x32xf32>
    %273 = arith.truncf %272 : vector<24x32xf32> to vector<24x32xbf16>
    %c0_188 = arith.constant 0 : index
    %c128_189 = arith.constant 128 : index
    %274 = vector.load %arg15[%c0_188, %c128_189] : memref<24x288xbf16, #tpu.memory_space<vmem>>, vector<24x32xbf16>
    tpu.vector_store %arg15[%c0_188, %c128_189], %273 {strides = array<i32>} : memref<24x288xbf16, #tpu.memory_space<vmem>>, vector<24x32xbf16>,
    %c9_190 = arith.constant 9 : index
    %c0_191 = arith.constant 0 : index
    %275 = vector.load %arg14[%c9_190, %c0_191] : memref<40x32xf32, #tpu.memory_space<vmem>>, vector<24x32xf32>
    %276 = vector.broadcast %7 : vector<24x1xf32> to vector<24x32xf32>
    %277 = arith.mulf %276, %275 : vector<24x32xf32>
    %278 = arith.truncf %277 : vector<24x32xf32> to vector<24x32xbf16>
    %c0_192 = arith.constant 0 : index
    %c160_193 = arith.constant 160 : index
    %279 = vector.load %arg15[%c0_192, %c160_193] : memref<24x288xbf16, #tpu.memory_space<vmem>>, vector<24x32xbf16>
    tpu.vector_store %arg15[%c0_192, %c160_193], %278 {strides = array<i32>} : memref<24x288xbf16, #tpu.memory_space<vmem>>, vector<24x32xbf16>,
    %c10_194 = arith.constant 10 : index
    %c0_195 = arith.constant 0 : index
    %280 = vector.load %arg14[%c10_194, %c0_195] : memref<40x32xf32, #tpu.memory_space<vmem>>, vector<24x32xf32>
    %281 = vector.broadcast %8 : vector<24x1xf32> to vector<24x32xf32>
    %282 = arith.mulf %281, %280 : vector<24x32xf32>
    %283 = arith.truncf %282 : vector<24x32xf32> to vector<24x32xbf16>
    %c0_196 = arith.constant 0 : index
    %c192_197 = arith.constant 192 : index
    %284 = vector.load %arg15[%c0_196, %c192_197] : memref<24x288xbf16, #tpu.memory_space<vmem>>, vector<24x32xbf16>
    tpu.vector_store %arg15[%c0_196, %c192_197], %283 {strides = array<i32>} : memref<24x288xbf16, #tpu.memory_space<vmem>>, vector<24x32xbf16>,
    %c11_198 = arith.constant 11 : index
    %c0_199 = arith.constant 0 : index
    %285 = vector.load %arg14[%c11_198, %c0_199] : memref<40x32xf32, #tpu.memory_space<vmem>>, vector<24x32xf32>
    %286 = vector.broadcast %9 : vector<24x1xf32> to vector<24x32xf32>
    %287 = arith.mulf %286, %285 : vector<24x32xf32>
    %288 = arith.truncf %287 : vector<24x32xf32> to vector<24x32xbf16>
    %c0_200 = arith.constant 0 : index
    %c224_201 = arith.constant 224 : index
    %289 = vector.load %arg15[%c0_200, %c224_201] : memref<24x288xbf16, #tpu.memory_space<vmem>>, vector<24x32xbf16>
    tpu.vector_store %arg15[%c0_200, %c224_201], %288 {strides = array<i32>} : memref<24x288xbf16, #tpu.memory_space<vmem>>, vector<24x32xbf16>,
    %c12_202 = arith.constant 12 : index
    %c0_203 = arith.constant 0 : index
    %290 = vector.load %arg14[%c12_202, %c0_203] : memref<40x32xf32, #tpu.memory_space<vmem>>, vector<24x32xf32>
    %291 = vector.broadcast %10 : vector<24x1xf32> to vector<24x32xf32>
    %292 = arith.mulf %291, %290 : vector<24x32xf32>
    %293 = arith.truncf %292 : vector<24x32xf32> to vector<24x32xbf16>
    %c0_204 = arith.constant 0 : index
    %c256_205 = arith.constant 256 : index
    %294 = vector.load %arg15[%c0_204, %c256_205] : memref<24x288xbf16, #tpu.memory_space<vmem>>, vector<24x32xbf16>
    tpu.vector_store %arg15[%c0_204, %c256_205], %293 {strides = array<i32>} : memref<24x288xbf16, #tpu.memory_space<vmem>>, vector<24x32xbf16>,
    %c0_206 = arith.constant 0 : index
    %c0_207 = arith.constant 0 : index
    %295 = vector.load %arg15[%c0_206, %c0_207] : memref<24x288xbf16, #tpu.memory_space<vmem>>, vector<24x288xbf16>
    %cst_208 = arith.constant dense<0.000000e+00> : vector<24x32xf32>
    %296 = tpu.matmul %295, %248, %cst_208 {dimension_numbers = #tpu.dot_dimension_numbers<[1], [0], [0], [1], [0, 0, 1, 1], [], []>} : vector<24x288xbf16>, vector<288x32xbf16>, vector<24x32xf32> -> vector<24x32xf32>
    %c2_209 = arith.constant 2 : index
    %c0_210 = arith.constant 0 : index
    %c0_211 = arith.constant 0 : index
    %297 = vector.load %arg5[%c2_209, %c0_210, %c0_211] : memref<4x1x32xf32, #tpu.memory_space<vmem>>, vector<1x1x32xf32>
    %298 = vector.shape_cast %297 : vector<1x1x32xf32> to vector<1x32xf32>
    %c2_212 = arith.constant 2 : index
    %c0_213 = arith.constant 0 : index
    %c0_214 = arith.constant 0 : index
    %299 = vector.load %arg6[%c2_212, %c0_213, %c0_214] : memref<4x1x32xf32, #tpu.memory_space<vmem>>, vector<1x1x32xf32>
    %300 = vector.shape_cast %299 : vector<1x1x32xf32> to vector<1x32xf32>
    %cst_215 = arith.constant dense<0.000000e+00> : vector<32xf32>
    %301 = vector.multi_reduction <add>, %296, %cst_215 [0] : vector<24x32xf32> to vector<32xf32>
    %302 = vector.shape_cast %301 : vector<32xf32> to vector<1x32xf32>
    %cst_216 = arith.constant 0.055555556 : f32
    %303 = vector.broadcast %cst_216 : f32 to vector<1x32xf32>
    %304 = arith.mulf %302, %303 : vector<1x32xf32>
    %305 = vector.broadcast %304 : vector<1x32xf32> to vector<24x32xf32>
    %306 = arith.subf %296, %305 : vector<24x32xf32>
    %307 = arith.mulf %306, %306 : vector<24x32xf32>
    %cst_217 = arith.constant dense<0.000000e+00> : vector<32xf32>
    %308 = vector.multi_reduction <add>, %307, %cst_217 [0] : vector<24x32xf32> to vector<32xf32>
    %309 = vector.shape_cast %308 : vector<32xf32> to vector<1x32xf32>
    %cst_218 = arith.constant 6.000000e+00 : f32
    %310 = vector.broadcast %cst_218 : f32 to vector<1x32xf32>
    %311 = arith.mulf %310, %304 : vector<1x32xf32>
    %312 = arith.mulf %311, %304 : vector<1x32xf32>
    %313 = arith.subf %309, %312 : vector<1x32xf32>
    %cst_219 = arith.constant 0.055555556 : f32
    %314 = vector.broadcast %cst_219 : f32 to vector<1x32xf32>
    %315 = arith.mulf %313, %314 : vector<1x32xf32>
    %cst_220 = arith.constant 9.99999974E-6 : f32
    %316 = vector.broadcast %cst_220 : f32 to vector<1x32xf32>
    %317 = arith.addf %315, %316 : vector<1x32xf32>
    %318 = math.rsqrt %317 : vector<1x32xf32>
    %319 = arith.mulf %298, %318 : vector<1x32xf32>
    %320 = vector.broadcast %319 : vector<1x32xf32> to vector<24x32xf32>
    %321 = arith.mulf %306, %320 : vector<24x32xf32>
    %322 = vector.broadcast %300 : vector<1x32xf32> to vector<24x32xf32>
    %323 = arith.addf %321, %322 : vector<24x32xf32>
    %cst_221 = arith.constant 0.000000e+00 : f32
    %324 = vector.broadcast %cst_221 : f32 to vector<24x32xf32>
    %325 = arith.maximumf %323, %324 : vector<24x32xf32>
    %c3_222 = arith.constant 3 : index
    %c0_223 = arith.constant 0 : index
    %c0_224 = arith.constant 0 : index
    %326 = vector.load %arg4[%c3_222, %c0_223, %c0_224] : memref<4x288x32xbf16, #tpu.memory_space<vmem>>, vector<1x288x32xbf16>
    %327 = vector.shape_cast %326 : vector<1x288x32xbf16> to vector<288x32xbf16>
    %c8_225 = arith.constant 8 : index
    %c0_226 = arith.constant 0 : index
    %328 = vector.load %arg14[%c8_225, %c0_226] : memref<40x32xf32, #tpu.memory_space<vmem>>, vector<24x32xf32>
    tpu.vector_store %arg14[%c8_225, %c0_226], %325 {strides = array<i32>} : memref<40x32xf32, #tpu.memory_space<vmem>>, vector<24x32xf32>,
    %c4_227 = arith.constant 4 : index
    %c0_228 = arith.constant 0 : index
    %329 = vector.load %arg14[%c4_227, %c0_228] : memref<40x32xf32, #tpu.memory_space<vmem>>, vector<24x32xf32>
    %330 = vector.broadcast %2 : vector<24x1xf32> to vector<24x32xf32>
    %331 = arith.mulf %330, %329 : vector<24x32xf32>
    %332 = arith.truncf %331 : vector<24x32xf32> to vector<24x32xbf16>
    %c0_229 = arith.constant 0 : index
    %c0_230 = arith.constant 0 : index
    %333 = vector.load %arg15[%c0_229, %c0_230] : memref<24x288xbf16, #tpu.memory_space<vmem>>, vector<24x32xbf16>
    tpu.vector_store %arg15[%c0_229, %c0_230], %332 {strides = array<i32>} : memref<24x288xbf16, #tpu.memory_space<vmem>>, vector<24x32xbf16>,
    %c5_231 = arith.constant 5 : index
    %c0_232 = arith.constant 0 : index
    %334 = vector.load %arg14[%c5_231, %c0_232] : memref<40x32xf32, #tpu.memory_space<vmem>>, vector<24x32xf32>
    %335 = vector.broadcast %3 : vector<24x1xf32> to vector<24x32xf32>
    %336 = arith.mulf %335, %334 : vector<24x32xf32>
    %337 = arith.truncf %336 : vector<24x32xf32> to vector<24x32xbf16>
    %c0_233 = arith.constant 0 : index
    %c32_234 = arith.constant 32 : index
    %338 = vector.load %arg15[%c0_233, %c32_234] : memref<24x288xbf16, #tpu.memory_space<vmem>>, vector<24x32xbf16>
    tpu.vector_store %arg15[%c0_233, %c32_234], %337 {strides = array<i32>} : memref<24x288xbf16, #tpu.memory_space<vmem>>, vector<24x32xbf16>,
    %c6_235 = arith.constant 6 : index
    %c0_236 = arith.constant 0 : index
    %339 = vector.load %arg14[%c6_235, %c0_236] : memref<40x32xf32, #tpu.memory_space<vmem>>, vector<24x32xf32>
    %340 = vector.broadcast %4 : vector<24x1xf32> to vector<24x32xf32>
    %341 = arith.mulf %340, %339 : vector<24x32xf32>
    %342 = arith.truncf %341 : vector<24x32xf32> to vector<24x32xbf16>
    %c0_237 = arith.constant 0 : index
    %c64_238 = arith.constant 64 : index
    %343 = vector.load %arg15[%c0_237, %c64_238] : memref<24x288xbf16, #tpu.memory_space<vmem>>, vector<24x32xbf16>
    tpu.vector_store %arg15[%c0_237, %c64_238], %342 {strides = array<i32>} : memref<24x288xbf16, #tpu.memory_space<vmem>>, vector<24x32xbf16>,
    %c7_239 = arith.constant 7 : index
    %c0_240 = arith.constant 0 : index
    %344 = vector.load %arg14[%c7_239, %c0_240] : memref<40x32xf32, #tpu.memory_space<vmem>>, vector<24x32xf32>
    %345 = vector.broadcast %5 : vector<24x1xf32> to vector<24x32xf32>
    %346 = arith.mulf %345, %344 : vector<24x32xf32>
    %347 = arith.truncf %346 : vector<24x32xf32> to vector<24x32xbf16>
    %c0_241 = arith.constant 0 : index
    %c96_242 = arith.constant 96 : index
    %348 = vector.load %arg15[%c0_241, %c96_242] : memref<24x288xbf16, #tpu.memory_space<vmem>>, vector<24x32xbf16>
    tpu.vector_store %arg15[%c0_241, %c96_242], %347 {strides = array<i32>} : memref<24x288xbf16, #tpu.memory_space<vmem>>, vector<24x32xbf16>,
    %c8_243 = arith.constant 8 : index
    %c0_244 = arith.constant 0 : index
    %349 = vector.load %arg14[%c8_243, %c0_244] : memref<40x32xf32, #tpu.memory_space<vmem>>, vector<24x32xf32>
    %350 = vector.broadcast %6 : vector<24x1xf32> to vector<24x32xf32>
    %351 = arith.mulf %350, %349 : vector<24x32xf32>
    %352 = arith.truncf %351 : vector<24x32xf32> to vector<24x32xbf16>
    %c0_245 = arith.constant 0 : index
    %c128_246 = arith.constant 128 : index
    %353 = vector.load %arg15[%c0_245, %c128_246] : memref<24x288xbf16, #tpu.memory_space<vmem>>, vector<24x32xbf16>
    tpu.vector_store %arg15[%c0_245, %c128_246], %352 {strides = array<i32>} : memref<24x288xbf16, #tpu.memory_space<vmem>>, vector<24x32xbf16>,
    %c9_247 = arith.constant 9 : index
    %c0_248 = arith.constant 0 : index
    %354 = vector.load %arg14[%c9_247, %c0_248] : memref<40x32xf32, #tpu.memory_space<vmem>>, vector<24x32xf32>
    %355 = vector.broadcast %7 : vector<24x1xf32> to vector<24x32xf32>
    %356 = arith.mulf %355, %354 : vector<24x32xf32>
    %357 = arith.truncf %356 : vector<24x32xf32> to vector<24x32xbf16>
    %c0_249 = arith.constant 0 : index
    %c160_250 = arith.constant 160 : index
    %358 = vector.load %arg15[%c0_249, %c160_250] : memref<24x288xbf16, #tpu.memory_space<vmem>>, vector<24x32xbf16>
    tpu.vector_store %arg15[%c0_249, %c160_250], %357 {strides = array<i32>} : memref<24x288xbf16, #tpu.memory_space<vmem>>, vector<24x32xbf16>,
    %c10_251 = arith.constant 10 : index
    %c0_252 = arith.constant 0 : index
    %359 = vector.load %arg14[%c10_251, %c0_252] : memref<40x32xf32, #tpu.memory_space<vmem>>, vector<24x32xf32>
    %360 = vector.broadcast %8 : vector<24x1xf32> to vector<24x32xf32>
    %361 = arith.mulf %360, %359 : vector<24x32xf32>
    %362 = arith.truncf %361 : vector<24x32xf32> to vector<24x32xbf16>
    %c0_253 = arith.constant 0 : index
    %c192_254 = arith.constant 192 : index
    %363 = vector.load %arg15[%c0_253, %c192_254] : memref<24x288xbf16, #tpu.memory_space<vmem>>, vector<24x32xbf16>
    tpu.vector_store %arg15[%c0_253, %c192_254], %362 {strides = array<i32>} : memref<24x288xbf16, #tpu.memory_space<vmem>>, vector<24x32xbf16>,
    %c11_255 = arith.constant 11 : index
    %c0_256 = arith.constant 0 : index
    %364 = vector.load %arg14[%c11_255, %c0_256] : memref<40x32xf32, #tpu.memory_space<vmem>>, vector<24x32xf32>
    %365 = vector.broadcast %9 : vector<24x1xf32> to vector<24x32xf32>
    %366 = arith.mulf %365, %364 : vector<24x32xf32>
    %367 = arith.truncf %366 : vector<24x32xf32> to vector<24x32xbf16>
    %c0_257 = arith.constant 0 : index
    %c224_258 = arith.constant 224 : index
    %368 = vector.load %arg15[%c0_257, %c224_258] : memref<24x288xbf16, #tpu.memory_space<vmem>>, vector<24x32xbf16>
    tpu.vector_store %arg15[%c0_257, %c224_258], %367 {strides = array<i32>} : memref<24x288xbf16, #tpu.memory_space<vmem>>, vector<24x32xbf16>,
    %c12_259 = arith.constant 12 : index
    %c0_260 = arith.constant 0 : index
    %369 = vector.load %arg14[%c12_259, %c0_260] : memref<40x32xf32, #tpu.memory_space<vmem>>, vector<24x32xf32>
    %370 = vector.broadcast %10 : vector<24x1xf32> to vector<24x32xf32>
    %371 = arith.mulf %370, %369 : vector<24x32xf32>
    %372 = arith.truncf %371 : vector<24x32xf32> to vector<24x32xbf16>
    %c0_261 = arith.constant 0 : index
    %c256_262 = arith.constant 256 : index
    %373 = vector.load %arg15[%c0_261, %c256_262] : memref<24x288xbf16, #tpu.memory_space<vmem>>, vector<24x32xbf16>
    tpu.vector_store %arg15[%c0_261, %c256_262], %372 {strides = array<i32>} : memref<24x288xbf16, #tpu.memory_space<vmem>>, vector<24x32xbf16>,
    %c0_263 = arith.constant 0 : index
    %c0_264 = arith.constant 0 : index
    %374 = vector.load %arg15[%c0_263, %c0_264] : memref<24x288xbf16, #tpu.memory_space<vmem>>, vector<24x288xbf16>
    %cst_265 = arith.constant dense<0.000000e+00> : vector<24x32xf32>
    %375 = tpu.matmul %374, %327, %cst_265 {dimension_numbers = #tpu.dot_dimension_numbers<[1], [0], [0], [1], [0, 0, 1, 1], [], []>} : vector<24x288xbf16>, vector<288x32xbf16>, vector<24x32xf32> -> vector<24x32xf32>
    %c3_266 = arith.constant 3 : index
    %c0_267 = arith.constant 0 : index
    %c0_268 = arith.constant 0 : index
    %376 = vector.load %arg5[%c3_266, %c0_267, %c0_268] : memref<4x1x32xf32, #tpu.memory_space<vmem>>, vector<1x1x32xf32>
    %377 = vector.shape_cast %376 : vector<1x1x32xf32> to vector<1x32xf32>
    %c3_269 = arith.constant 3 : index
    %c0_270 = arith.constant 0 : index
    %c0_271 = arith.constant 0 : index
    %378 = vector.load %arg6[%c3_269, %c0_270, %c0_271] : memref<4x1x32xf32, #tpu.memory_space<vmem>>, vector<1x1x32xf32>
    %379 = vector.shape_cast %378 : vector<1x1x32xf32> to vector<1x32xf32>
    %cst_272 = arith.constant dense<0.000000e+00> : vector<32xf32>
    %380 = vector.multi_reduction <add>, %375, %cst_272 [0] : vector<24x32xf32> to vector<32xf32>
    %381 = vector.shape_cast %380 : vector<32xf32> to vector<1x32xf32>
    %cst_273 = arith.constant 0.055555556 : f32
    %382 = vector.broadcast %cst_273 : f32 to vector<1x32xf32>
    %383 = arith.mulf %381, %382 : vector<1x32xf32>
    %384 = vector.broadcast %383 : vector<1x32xf32> to vector<24x32xf32>
    %385 = arith.subf %375, %384 : vector<24x32xf32>
    %386 = arith.mulf %385, %385 : vector<24x32xf32>
    %cst_274 = arith.constant dense<0.000000e+00> : vector<32xf32>
    %387 = vector.multi_reduction <add>, %386, %cst_274 [0] : vector<24x32xf32> to vector<32xf32>
    %388 = vector.shape_cast %387 : vector<32xf32> to vector<1x32xf32>
    %cst_275 = arith.constant 6.000000e+00 : f32
    %389 = vector.broadcast %cst_275 : f32 to vector<1x32xf32>
    %390 = arith.mulf %389, %383 : vector<1x32xf32>
    %391 = arith.mulf %390, %383 : vector<1x32xf32>
    %392 = arith.subf %388, %391 : vector<1x32xf32>
    %cst_276 = arith.constant 0.055555556 : f32
    %393 = vector.broadcast %cst_276 : f32 to vector<1x32xf32>
    %394 = arith.mulf %392, %393 : vector<1x32xf32>
    %cst_277 = arith.constant 9.99999974E-6 : f32
    %395 = vector.broadcast %cst_277 : f32 to vector<1x32xf32>
    %396 = arith.addf %394, %395 : vector<1x32xf32>
    %397 = math.rsqrt %396 : vector<1x32xf32>
    %398 = arith.mulf %377, %397 : vector<1x32xf32>
    %399 = vector.broadcast %398 : vector<1x32xf32> to vector<24x32xf32>
    %400 = arith.mulf %385, %399 : vector<24x32xf32>
    %401 = vector.broadcast %379 : vector<1x32xf32> to vector<24x32xf32>
    %402 = arith.addf %400, %401 : vector<24x32xf32>
    %403 = arith.addf %402, %246 : vector<24x32xf32>
    %cst_278 = arith.constant 0.000000e+00 : f32
    %404 = vector.broadcast %cst_278 : f32 to vector<24x32xf32>
    %405 = arith.maximumf %403, %404 : vector<24x32xf32>
    %c0_279 = arith.constant 0 : index
    %c0_280 = arith.constant 0 : index
    %406 = vector.load %arg7[%c0_279, %c0_280] : memref<288x35xbf16, #tpu.memory_space<vmem>>, vector<288x35xbf16>
    %c8_281 = arith.constant 8 : index
    %c0_282 = arith.constant 0 : index
    %407 = vector.load %arg14[%c8_281, %c0_282] : memref<40x32xf32, #tpu.memory_space<vmem>>, vector<24x32xf32>
    tpu.vector_store %arg14[%c8_281, %c0_282], %405 {strides = array<i32>} : memref<40x32xf32, #tpu.memory_space<vmem>>, vector<24x32xf32>,
    %c4_283 = arith.constant 4 : index
    %c0_284 = arith.constant 0 : index
    %408 = vector.load %arg14[%c4_283, %c0_284] : memref<40x32xf32, #tpu.memory_space<vmem>>, vector<24x32xf32>
    %409 = vector.broadcast %2 : vector<24x1xf32> to vector<24x32xf32>
    %410 = arith.mulf %409, %408 : vector<24x32xf32>
    %411 = arith.truncf %410 : vector<24x32xf32> to vector<24x32xbf16>
    %c0_285 = arith.constant 0 : index
    %c0_286 = arith.constant 0 : index
    %412 = vector.load %arg15[%c0_285, %c0_286] : memref<24x288xbf16, #tpu.memory_space<vmem>>, vector<24x32xbf16>
    tpu.vector_store %arg15[%c0_285, %c0_286], %411 {strides = array<i32>} : memref<24x288xbf16, #tpu.memory_space<vmem>>, vector<24x32xbf16>,
    %c5_287 = arith.constant 5 : index
    %c0_288 = arith.constant 0 : index
    %413 = vector.load %arg14[%c5_287, %c0_288] : memref<40x32xf32, #tpu.memory_space<vmem>>, vector<24x32xf32>
    %414 = vector.broadcast %3 : vector<24x1xf32> to vector<24x32xf32>
    %415 = arith.mulf %414, %413 : vector<24x32xf32>
    %416 = arith.truncf %415 : vector<24x32xf32> to vector<24x32xbf16>
    %c0_289 = arith.constant 0 : index
    %c32_290 = arith.constant 32 : index
    %417 = vector.load %arg15[%c0_289, %c32_290] : memref<24x288xbf16, #tpu.memory_space<vmem>>, vector<24x32xbf16>
    tpu.vector_store %arg15[%c0_289, %c32_290], %416 {strides = array<i32>} : memref<24x288xbf16, #tpu.memory_space<vmem>>, vector<24x32xbf16>,
    %c6_291 = arith.constant 6 : index
    %c0_292 = arith.constant 0 : index
    %418 = vector.load %arg14[%c6_291, %c0_292] : memref<40x32xf32, #tpu.memory_space<vmem>>, vector<24x32xf32>
    %419 = vector.broadcast %4 : vector<24x1xf32> to vector<24x32xf32>
    %420 = arith.mulf %419, %418 : vector<24x32xf32>
    %421 = arith.truncf %420 : vector<24x32xf32> to vector<24x32xbf16>
    %c0_293 = arith.constant 0 : index
    %c64_294 = arith.constant 64 : index
    %422 = vector.load %arg15[%c0_293, %c64_294] : memref<24x288xbf16, #tpu.memory_space<vmem>>, vector<24x32xbf16>
    tpu.vector_store %arg15[%c0_293, %c64_294], %421 {strides = array<i32>} : memref<24x288xbf16, #tpu.memory_space<vmem>>, vector<24x32xbf16>,
    %c7_295 = arith.constant 7 : index
    %c0_296 = arith.constant 0 : index
    %423 = vector.load %arg14[%c7_295, %c0_296] : memref<40x32xf32, #tpu.memory_space<vmem>>, vector<24x32xf32>
    %424 = vector.broadcast %5 : vector<24x1xf32> to vector<24x32xf32>
    %425 = arith.mulf %424, %423 : vector<24x32xf32>
    %426 = arith.truncf %425 : vector<24x32xf32> to vector<24x32xbf16>
    %c0_297 = arith.constant 0 : index
    %c96_298 = arith.constant 96 : index
    %427 = vector.load %arg15[%c0_297, %c96_298] : memref<24x288xbf16, #tpu.memory_space<vmem>>, vector<24x32xbf16>
    tpu.vector_store %arg15[%c0_297, %c96_298], %426 {strides = array<i32>} : memref<24x288xbf16, #tpu.memory_space<vmem>>, vector<24x32xbf16>,
    %c8_299 = arith.constant 8 : index
    %c0_300 = arith.constant 0 : index
    %428 = vector.load %arg14[%c8_299, %c0_300] : memref<40x32xf32, #tpu.memory_space<vmem>>, vector<24x32xf32>
    %429 = vector.broadcast %6 : vector<24x1xf32> to vector<24x32xf32>
    %430 = arith.mulf %429, %428 : vector<24x32xf32>
    %431 = arith.truncf %430 : vector<24x32xf32> to vector<24x32xbf16>
    %c0_301 = arith.constant 0 : index
    %c128_302 = arith.constant 128 : index
    %432 = vector.load %arg15[%c0_301, %c128_302] : memref<24x288xbf16, #tpu.memory_space<vmem>>, vector<24x32xbf16>
    tpu.vector_store %arg15[%c0_301, %c128_302], %431 {strides = array<i32>} : memref<24x288xbf16, #tpu.memory_space<vmem>>, vector<24x32xbf16>,
    %c9_303 = arith.constant 9 : index
    %c0_304 = arith.constant 0 : index
    %433 = vector.load %arg14[%c9_303, %c0_304] : memref<40x32xf32, #tpu.memory_space<vmem>>, vector<24x32xf32>
    %434 = vector.broadcast %7 : vector<24x1xf32> to vector<24x32xf32>
    %435 = arith.mulf %434, %433 : vector<24x32xf32>
    %436 = arith.truncf %435 : vector<24x32xf32> to vector<24x32xbf16>
    %c0_305 = arith.constant 0 : index
    %c160_306 = arith.constant 160 : index
    %437 = vector.load %arg15[%c0_305, %c160_306] : memref<24x288xbf16, #tpu.memory_space<vmem>>, vector<24x32xbf16>
    tpu.vector_store %arg15[%c0_305, %c160_306], %436 {strides = array<i32>} : memref<24x288xbf16, #tpu.memory_space<vmem>>, vector<24x32xbf16>,
    %c10_307 = arith.constant 10 : index
    %c0_308 = arith.constant 0 : index
    %438 = vector.load %arg14[%c10_307, %c0_308] : memref<40x32xf32, #tpu.memory_space<vmem>>, vector<24x32xf32>
    %439 = vector.broadcast %8 : vector<24x1xf32> to vector<24x32xf32>
    %440 = arith.mulf %439, %438 : vector<24x32xf32>
    %441 = arith.truncf %440 : vector<24x32xf32> to vector<24x32xbf16>
    %c0_309 = arith.constant 0 : index
    %c192_310 = arith.constant 192 : index
    %442 = vector.load %arg15[%c0_309, %c192_310] : memref<24x288xbf16, #tpu.memory_space<vmem>>, vector<24x32xbf16>
    tpu.vector_store %arg15[%c0_309, %c192_310], %441 {strides = array<i32>} : memref<24x288xbf16, #tpu.memory_space<vmem>>, vector<24x32xbf16>,
    %c11_311 = arith.constant 11 : index
    %c0_312 = arith.constant 0 : index
    %443 = vector.load %arg14[%c11_311, %c0_312] : memref<40x32xf32, #tpu.memory_space<vmem>>, vector<24x32xf32>
    %444 = vector.broadcast %9 : vector<24x1xf32> to vector<24x32xf32>
    %445 = arith.mulf %444, %443 : vector<24x32xf32>
    %446 = arith.truncf %445 : vector<24x32xf32> to vector<24x32xbf16>
    %c0_313 = arith.constant 0 : index
    %c224_314 = arith.constant 224 : index
    %447 = vector.load %arg15[%c0_313, %c224_314] : memref<24x288xbf16, #tpu.memory_space<vmem>>, vector<24x32xbf16>
    tpu.vector_store %arg15[%c0_313, %c224_314], %446 {strides = array<i32>} : memref<24x288xbf16, #tpu.memory_space<vmem>>, vector<24x32xbf16>,
    %c12_315 = arith.constant 12 : index
    %c0_316 = arith.constant 0 : index
    %448 = vector.load %arg14[%c12_315, %c0_316] : memref<40x32xf32, #tpu.memory_space<vmem>>, vector<24x32xf32>
    %449 = vector.broadcast %10 : vector<24x1xf32> to vector<24x32xf32>
    %450 = arith.mulf %449, %448 : vector<24x32xf32>
    %451 = arith.truncf %450 : vector<24x32xf32> to vector<24x32xbf16>
    %c0_317 = arith.constant 0 : index
    %c256_318 = arith.constant 256 : index
    %452 = vector.load %arg15[%c0_317, %c256_318] : memref<24x288xbf16, #tpu.memory_space<vmem>>, vector<24x32xbf16>
    tpu.vector_store %arg15[%c0_317, %c256_318], %451 {strides = array<i32>} : memref<24x288xbf16, #tpu.memory_space<vmem>>, vector<24x32xbf16>,
    %c0_319 = arith.constant 0 : index
    %c0_320 = arith.constant 0 : index
    %453 = vector.load %arg15[%c0_319, %c0_320] : memref<24x288xbf16, #tpu.memory_space<vmem>>, vector<24x288xbf16>
    %cst_321 = arith.constant dense<0.000000e+00> : vector<24x35xf32>
    %454 = tpu.matmul %453, %406, %cst_321 {dimension_numbers = #tpu.dot_dimension_numbers<[1], [0], [0], [1], [0, 0, 1, 1], [], []>} : vector<24x288xbf16>, vector<288x35xbf16>, vector<24x35xf32> -> vector<24x35xf32>
    %c0_322 = arith.constant 0 : index
    %c0_323 = arith.constant 0 : index
    %455 = vector.load %arg8[%c0_322, %c0_323] : memref<1x35xf32, #tpu.memory_space<vmem>>, vector<1x35xf32>
    %c0_324 = arith.constant 0 : index
    %c0_325 = arith.constant 0 : index
    %456 = vector.load %arg9[%c0_324, %c0_325] : memref<1x35xf32, #tpu.memory_space<vmem>>, vector<1x35xf32>
    %cst_326 = arith.constant dense<0.000000e+00> : vector<35xf32>
    %457 = vector.multi_reduction <add>, %454, %cst_326 [0] : vector<24x35xf32> to vector<35xf32>
    %458 = vector.shape_cast %457 : vector<35xf32> to vector<1x35xf32>
    %cst_327 = arith.constant 0.055555556 : f32
    %459 = vector.broadcast %cst_327 : f32 to vector<1x35xf32>
    %460 = arith.mulf %458, %459 : vector<1x35xf32>
    %461 = vector.broadcast %460 : vector<1x35xf32> to vector<24x35xf32>
    %462 = arith.subf %454, %461 : vector<24x35xf32>
    %463 = arith.mulf %462, %462 : vector<24x35xf32>
    %cst_328 = arith.constant dense<0.000000e+00> : vector<35xf32>
    %464 = vector.multi_reduction <add>, %463, %cst_328 [0] : vector<24x35xf32> to vector<35xf32>
    %465 = vector.shape_cast %464 : vector<35xf32> to vector<1x35xf32>
    %cst_329 = arith.constant 6.000000e+00 : f32
    %466 = vector.broadcast %cst_329 : f32 to vector<1x35xf32>
    %467 = arith.mulf %466, %460 : vector<1x35xf32>
    %468 = arith.mulf %467, %460 : vector<1x35xf32>
    %469 = arith.subf %465, %468 : vector<1x35xf32>
    %cst_330 = arith.constant 0.055555556 : f32
    %470 = vector.broadcast %cst_330 : f32 to vector<1x35xf32>
    %471 = arith.mulf %469, %470 : vector<1x35xf32>
    %cst_331 = arith.constant 9.99999974E-6 : f32
    %472 = vector.broadcast %cst_331 : f32 to vector<1x35xf32>
    %473 = arith.addf %471, %472 : vector<1x35xf32>
    %474 = math.rsqrt %473 : vector<1x35xf32>
    %475 = arith.mulf %455, %474 : vector<1x35xf32>
    %476 = vector.broadcast %475 : vector<1x35xf32> to vector<24x35xf32>
    %477 = arith.mulf %462, %476 : vector<24x35xf32>
    %478 = vector.broadcast %456 : vector<1x35xf32> to vector<24x35xf32>
    %479 = arith.addf %477, %478 : vector<24x35xf32>
    %cst_332 = arith.constant 0.000000e+00 : f32
    %480 = vector.broadcast %cst_332 : f32 to vector<24x35xf32>
    %481 = arith.maximumf %479, %480 : vector<24x35xf32>
    %c0_333 = arith.constant 0 : index
    %c0_334 = arith.constant 0 : index
    %482 = vector.load %arg16[%c0_333, %c0_334] : memref<24x35xf32, #tpu.memory_space<vmem>>, vector<24x35xf32>
    tpu.vector_store %arg16[%c0_333, %c0_334], %481 {strides = array<i32>} : memref<24x35xf32, #tpu.memory_space<vmem>>, vector<24x35xf32>,
    %c0_335 = arith.constant 0 : index
    %c0_336 = arith.constant 0 : index
    %483 = tpu.strided_load %arg16[%c0_335, %c0_336] {strides = array<i32: 9, 1>} : memref<24x35xf32, #tpu.memory_space<vmem>>, vector<2x35xf32>
    %484 = arith.truncf %483 : vector<2x35xf32> to vector<2x35xbf16>
    %c0_337 = arith.constant 0 : index
    %c0_338 = arith.constant 0 : index
    %485 = vector.load %arg17[%c0_337, %c0_338] : memref<2x315xbf16, #tpu.memory_space<vmem>>, vector<2x35xbf16>
    tpu.vector_store %arg17[%c0_337, %c0_338], %484 {strides = array<i32>} : memref<2x315xbf16, #tpu.memory_space<vmem>>, vector<2x35xbf16>,
    %c1_339 = arith.constant 1 : index
    %c0_340 = arith.constant 0 : index
    %486 = tpu.strided_load %arg16[%c1_339, %c0_340] {strides = array<i32: 9, 1>} : memref<24x35xf32, #tpu.memory_space<vmem>>, vector<2x35xf32>
    %487 = arith.truncf %486 : vector<2x35xf32> to vector<2x35xbf16>
    %c0_341 = arith.constant 0 : index
    %c35 = arith.constant 35 : index
    %488 = vector.load %arg17[%c0_341, %c35] : memref<2x315xbf16, #tpu.memory_space<vmem>>, vector<2x35xbf16>
    tpu.vector_store %arg17[%c0_341, %c35], %487 {strides = array<i32>} : memref<2x315xbf16, #tpu.memory_space<vmem>>, vector<2x35xbf16>,
    %c2_342 = arith.constant 2 : index
    %c0_343 = arith.constant 0 : index
    %489 = tpu.strided_load %arg16[%c2_342, %c0_343] {strides = array<i32: 9, 1>} : memref<24x35xf32, #tpu.memory_space<vmem>>, vector<2x35xf32>
    %490 = arith.truncf %489 : vector<2x35xf32> to vector<2x35xbf16>
    %c0_344 = arith.constant 0 : index
    %c70 = arith.constant 70 : index
    %491 = vector.load %arg17[%c0_344, %c70] : memref<2x315xbf16, #tpu.memory_space<vmem>>, vector<2x35xbf16>
    tpu.vector_store %arg17[%c0_344, %c70], %490 {strides = array<i32>} : memref<2x315xbf16, #tpu.memory_space<vmem>>, vector<2x35xbf16>,
    %c3_345 = arith.constant 3 : index
    %c0_346 = arith.constant 0 : index
    %492 = tpu.strided_load %arg16[%c3_345, %c0_346] {strides = array<i32: 9, 1>} : memref<24x35xf32, #tpu.memory_space<vmem>>, vector<2x35xf32>
    %493 = arith.truncf %492 : vector<2x35xf32> to vector<2x35xbf16>
    %c0_347 = arith.constant 0 : index
    %c105 = arith.constant 105 : index
    %494 = vector.load %arg17[%c0_347, %c105] : memref<2x315xbf16, #tpu.memory_space<vmem>>, vector<2x35xbf16>
    tpu.vector_store %arg17[%c0_347, %c105], %493 {strides = array<i32>} : memref<2x315xbf16, #tpu.memory_space<vmem>>, vector<2x35xbf16>,
    %c4_348 = arith.constant 4 : index
    %c0_349 = arith.constant 0 : index
    %495 = tpu.strided_load %arg16[%c4_348, %c0_349] {strides = array<i32: 9, 1>} : memref<24x35xf32, #tpu.memory_space<vmem>>, vector<2x35xf32>
    %496 = arith.truncf %495 : vector<2x35xf32> to vector<2x35xbf16>
    %c0_350 = arith.constant 0 : index
    %c140 = arith.constant 140 : index
    %497 = vector.load %arg17[%c0_350, %c140] : memref<2x315xbf16, #tpu.memory_space<vmem>>, vector<2x35xbf16>
    tpu.vector_store %arg17[%c0_350, %c140], %496 {strides = array<i32>} : memref<2x315xbf16, #tpu.memory_space<vmem>>, vector<2x35xbf16>,
    %c5_351 = arith.constant 5 : index
    %c0_352 = arith.constant 0 : index
    %498 = tpu.strided_load %arg16[%c5_351, %c0_352] {strides = array<i32: 9, 1>} : memref<24x35xf32, #tpu.memory_space<vmem>>, vector<2x35xf32>
    %499 = arith.truncf %498 : vector<2x35xf32> to vector<2x35xbf16>
    %c0_353 = arith.constant 0 : index
    %c175 = arith.constant 175 : index
    %500 = vector.load %arg17[%c0_353, %c175] : memref<2x315xbf16, #tpu.memory_space<vmem>>, vector<2x35xbf16>
    tpu.vector_store %arg17[%c0_353, %c175], %499 {strides = array<i32>} : memref<2x315xbf16, #tpu.memory_space<vmem>>, vector<2x35xbf16>,
    %c6_354 = arith.constant 6 : index
    %c0_355 = arith.constant 0 : index
    %501 = tpu.strided_load %arg16[%c6_354, %c0_355] {strides = array<i32: 9, 1>} : memref<24x35xf32, #tpu.memory_space<vmem>>, vector<2x35xf32>
    %502 = arith.truncf %501 : vector<2x35xf32> to vector<2x35xbf16>
    %c0_356 = arith.constant 0 : index
    %c210 = arith.constant 210 : index
    %503 = vector.load %arg17[%c0_356, %c210] : memref<2x315xbf16, #tpu.memory_space<vmem>>, vector<2x35xbf16>
    tpu.vector_store %arg17[%c0_356, %c210], %502 {strides = array<i32>} : memref<2x315xbf16, #tpu.memory_space<vmem>>, vector<2x35xbf16>,
    %c7_357 = arith.constant 7 : index
    %c0_358 = arith.constant 0 : index
    %504 = tpu.strided_load %arg16[%c7_357, %c0_358] {strides = array<i32: 9, 1>} : memref<24x35xf32, #tpu.memory_space<vmem>>, vector<2x35xf32>
    %505 = arith.truncf %504 : vector<2x35xf32> to vector<2x35xbf16>
    %c0_359 = arith.constant 0 : index
    %c245 = arith.constant 245 : index
    %506 = vector.load %arg17[%c0_359, %c245] : memref<2x315xbf16, #tpu.memory_space<vmem>>, vector<2x35xbf16>
    tpu.vector_store %arg17[%c0_359, %c245], %505 {strides = array<i32>} : memref<2x315xbf16, #tpu.memory_space<vmem>>, vector<2x35xbf16>,
    %c8_360 = arith.constant 8 : index
    %c0_361 = arith.constant 0 : index
    %507 = tpu.strided_load %arg16[%c8_360, %c0_361] {strides = array<i32: 9, 1>} : memref<24x35xf32, #tpu.memory_space<vmem>>, vector<2x35xf32>
    %508 = arith.truncf %507 : vector<2x35xf32> to vector<2x35xbf16>
    %c0_362 = arith.constant 0 : index
    %c280 = arith.constant 280 : index
    %509 = vector.load %arg17[%c0_362, %c280] : memref<2x315xbf16, #tpu.memory_space<vmem>>, vector<2x35xbf16>
    tpu.vector_store %arg17[%c0_362, %c280], %508 {strides = array<i32>} : memref<2x315xbf16, #tpu.memory_space<vmem>>, vector<2x35xbf16>,
    %c0_363 = arith.constant 0 : index
    %c0_364 = arith.constant 0 : index
    %510 = vector.load %arg17[%c0_363, %c0_364] : memref<2x315xbf16, #tpu.memory_space<vmem>>, vector<2x315xbf16>
    %c0_365 = arith.constant 0 : index
    %c0_366 = arith.constant 0 : index
    %511 = vector.load %arg10[%c0_365, %c0_366] : memref<315x10xbf16, #tpu.memory_space<vmem>>, vector<315x10xbf16>
    %cst_367 = arith.constant dense<0.000000e+00> : vector<2x10xf32>
    %512 = tpu.matmul %510, %511, %cst_367 {dimension_numbers = #tpu.dot_dimension_numbers<[1], [0], [0], [1], [0, 0, 1, 1], [], []>} : vector<2x315xbf16>, vector<315x10xbf16>, vector<2x10xf32> -> vector<2x10xf32>
    %c0_368 = arith.constant 0 : index
    %c0_369 = arith.constant 0 : index
    %513 = vector.load %arg11[%c0_368, %c0_369] : memref<1x10xf32, #tpu.memory_space<vmem>>, vector<1x10xf32>
    %514 = vector.broadcast %513 : vector<1x10xf32> to vector<2x10xf32>
    %515 = arith.addf %512, %514 : vector<2x10xf32>
    %c0_370 = arith.constant 0 : index
    %c0_371 = arith.constant 0 : index
    %516 = vector.load %arg13[%c0_370, %c0_371] : memref<2x10xf32, #tpu.memory_space<vmem>>, vector<2x10xf32>
    tpu.vector_store %arg13[%c0_370, %c0_371], %515 {strides = array<i32>} : memref<2x10xf32, #tpu.memory_space<vmem>>, vector<2x10xf32>,
    return
  }
}

</mosaic_0001>

<llo_original>
// kernel: resnet_forward.1
$region0: #{resnet_forward.1}
  #allocation0 [shape = 'u32[]', space=smem, size = 0x4, offset = 0x4, fixed_abs, tag = 'smem constant byte address 0x4 - core index']
  #allocation1 [shape = 'u32[144,128]{1,0:T(1,128)}', space=vmem, size = 0x12000, scoped, tag = 'internal scratch']
  #allocation2 [shape = 'f32[40,32]{1,0:T(8,128)}', space=vmem, size = 0x5000, scoped, tag = 'scratch operand']
  #allocation3 [shape = 'bf16[24,288]{1,0:T(8,128)(2,1)}', space=vmem, size = 0x4800, scoped, tag = 'scratch operand']
  #allocation4 [shape = 'f32[24,35]{1,0:T(8,128)}', space=vmem, size = 0x3000, scoped, tag = 'scratch operand']
  #allocation5 [shape = 'bf16[2,315]{1,0:T(2,128)(2,1)}', space=vmem, size = 0x600, scoped, tag = 'scratch operand']
  %s0 = inlined_call_operand.vmem [shape: f32[24,9], index: 0, kind: input, shape index: {}]
  %s1 = inlined_call_operand.vmem [shape: bf16[27,32], index: 1, kind: input, shape index: {}]
  %s2 = inlined_call_operand.vmem [shape: f32[1,32], index: 2, kind: input, shape index: {}]
  %s3 = inlined_call_operand.vmem [shape: f32[1,32], index: 3, kind: input, shape index: {}]
  %s4 = inlined_call_operand.vmem [shape: bf16[4,288,32], index: 4, kind: input, shape index: {}]
  %s5 = inlined_call_operand.vmem [shape: f32[4,1,32], index: 5, kind: input, shape index: {}]
  %s6 = inlined_call_operand.vmem [shape: f32[4,1,32], index: 6, kind: input, shape index: {}]
  %s7 = inlined_call_operand.vmem [shape: bf16[288,35], index: 7, kind: input, shape index: {}]
  %s8 = inlined_call_operand.vmem [shape: f32[1,35], index: 8, kind: input, shape index: {}]
  %s9 = inlined_call_operand.vmem [shape: f32[1,35], index: 9, kind: input, shape index: {}]
  %s10 = inlined_call_operand.vmem [shape: bf16[315,10], index: 10, kind: input, shape index: {}]
  %s11 = inlined_call_operand.vmem [shape: f32[1,10], index: 11, kind: input, shape index: {}]
  %s12 = inlined_call_operand.vmem [shape: f32[24,3], index: 12, kind: input, shape index: {}]
  %s13 = inlined_call_operand.vmem [shape: f32[2,10], index: 13, kind: output, shape index: {}]
  %s14 = sld [smem:[#allocation0]]
  $region62: #{resnet_forward.1} parent=0
    _
  %s16 = ssub.s32 1, %s14
  %s17 = scalar_select 0, %s16, %s14
  // Predicated region
  $region2: #{resnet_forward.1} parent=0 // pred_check
    _
  $region3: #{resnet_forward.1} parent=0 // pred_check_branch
    %19 = sbr.rel (0) target = $region5
  $region4: #{resnet_forward.1} parent=0 // pred_region
    _
  $region5: #{resnet_forward.1} parent=0 // pred_fallthru
    _
  // Predicated region
  $region6: #{resnet_forward.1} parent=0 // pred_check
    _
  $region7: #{resnet_forward.1} parent=0 // pred_check_branch
    %21 = sbr.rel (0) target = $region9
  $region8: #{resnet_forward.1} parent=0 // pred_region
    _
  $region9: #{resnet_forward.1} parent=0 // pred_fallthru
    _
  // Predicated region
  $region10: #{resnet_forward.1} parent=0 // pred_check
    _
  $region11: #{resnet_forward.1} parent=0 // pred_check_branch
    %23 = sbr.rel (0) target = $region13
  $region12: #{resnet_forward.1} parent=0 // pred_region
    _
  $region13: #{resnet_forward.1} parent=0 // pred_fallthru
    _
  // Predicated region
  $region14: #{resnet_forward.1} parent=0 // pred_check
    _
  $region15: #{resnet_forward.1} parent=0 // pred_check_branch
    %25 = sbr.rel (0) target = $region17
  $region16: #{resnet_forward.1} parent=0 // pred_region
    _
  $region17: #{resnet_forward.1} parent=0 // pred_fallthru
    _
  // Predicated region
  $region18: #{resnet_forward.1} parent=0 // pred_check
    _
  $region19: #{resnet_forward.1} parent=0 // pred_check_branch
    %27 = sbr.rel (0) target = $region21
  $region20: #{resnet_forward.1} parent=0 // pred_region
    _
  $region21: #{resnet_forward.1} parent=0 // pred_fallthru
    _
  // Predicated region
  $region22: #{resnet_forward.1} parent=0 // pred_check
    _
  $region23: #{resnet_forward.1} parent=0 // pred_check_branch
    %29 = sbr.rel (0) target = $region25
  $region24: #{resnet_forward.1} parent=0 // pred_region
    _
  $region25: #{resnet_forward.1} parent=0 // pred_fallthru
    _
  // Predicated region
  $region26: #{resnet_forward.1} parent=0 // pred_check
    _
  $region27: #{resnet_forward.1} parent=0 // pred_check_branch
    %31 = sbr.rel (0) target = $region29
  $region28: #{resnet_forward.1} parent=0 // pred_region
    _
  $region29: #{resnet_forward.1} parent=0 // pred_fallthru
    _
  // Predicated region
  $region30: #{resnet_forward.1} parent=0 // pred_check
    _
  $region31: #{resnet_forward.1} parent=0 // pred_check_branch
    %33 = sbr.rel (0) target = $region33
  $region32: #{resnet_forward.1} parent=0 // pred_region
    _
  $region33: #{resnet_forward.1} parent=0 // pred_fallthru
    _
  // Predicated region
  $region34: #{resnet_forward.1} parent=0 // pred_check
    _
  $region35: #{resnet_forward.1} parent=0 // pred_check_branch
    %35 = sbr.rel (0) target = $region37
  $region36: #{resnet_forward.1} parent=0 // pred_region
    _
  $region37: #{resnet_forward.1} parent=0 // pred_fallthru
    _
  // Predicated region
  $region38: #{resnet_forward.1} parent=0 // pred_check
    _
  $region39: #{resnet_forward.1} parent=0 // pred_check_branch
    %37 = sbr.rel (0) target = $region41
  $region40: #{resnet_forward.1} parent=0 // pred_region
    _
  $region41: #{resnet_forward.1} parent=0 // pred_fallthru
    _
  // Predicated region
  $region42: #{resnet_forward.1} parent=0 // pred_check
    _
  $region43: #{resnet_forward.1} parent=0 // pred_check_branch
    %39 = sbr.rel (0) target = $region45
  $region44: #{resnet_forward.1} parent=0 // pred_region
    _
  $region45: #{resnet_forward.1} parent=0 // pred_fallthru
    _
  // Predicated region
  $region46: #{resnet_forward.1} parent=0 // pred_check
    _
  $region47: #{resnet_forward.1} parent=0 // pred_check_branch
    %41 = sbr.rel (0) target = $region49
  $region48: #{resnet_forward.1} parent=0 // pred_region
    _
  $region49: #{resnet_forward.1} parent=0 // pred_fallthru
    _
  // Predicated region
  $region50: #{resnet_forward.1} parent=0 // pred_check
    _
  $region51: #{resnet_forward.1} parent=0 // pred_check_branch
    %43 = sbr.rel (0) target = $region53
  $region52: #{resnet_forward.1} parent=0 // pred_region
    _
  $region53: #{resnet_forward.1} parent=0 // pred_fallthru
    _
  %vm45 = vcmask 261120
  %46 = vst.msk [vmem:[#allocation2] sm:$0xff] %vm45, 0.0
  %47 = vst.msk [vmem:[#allocation2 + $0x8] sm:$0xff] %vm45, 0.0
  %48 = vst.msk [vmem:[#allocation2 + $0x10] sm:$0xff] %vm45, 0.0
  %49 = vst.msk [vmem:[#allocation2 + $0x18] sm:$0xff] %vm45, 0.0
  %50 = vst.msk [vmem:[#allocation2 + $0x20] sm:$0xff] %vm45, 0.0
  %v51 = vld [vmem:[%s0] sm:$0xff]
  %v52 = vld [vmem:[%s0 + $0x8] sm:$0xff]
  %v53 = vld [vmem:[%s0 + $0x10] sm:$0xff]
  %v54 = vld [vmem:[%s12] sm:$0xff]
  %v55 = vld [vmem:[%s12 + $0x8] sm:$0xff]
  %v56 = vld [vmem:[%s12 + $0x10] sm:$0xff]
  %v57 = vld [vmem:[%s1] sm:$0xf]
  %v58 = vld [vmem:[%s1 + $0x4] sm:$0xf]
  %v59 = vld [vmem:[%s1 + $0x8] sm:$0xf]
  %v60 = vld [vmem:[%s1 + $0xc] sm:$0x3]
  %vm61 = vcmask 23552
  %62 = vst.msk [vmem:[#allocation2 + $0x8] sm:$0xff] %vm61, %v54
  %63 = vst.msk [vmem:[#allocation2 + $0x10] sm:$0xff] %vm61, %v55
  %64 = vst.msk [vmem:[#allocation2 + $0x18] sm:$0xff] %vm61, %v56
  %v65 = vld [vmem:[#allocation2 + $0x4] sm:$0xff]
  %v66 = vld [vmem:[#allocation2 + $0xc] sm:$0xff]
  %v67 = vld [vmem:[#allocation2 + $0x14] sm:$0xff]
  %69 = vset.pattern.permute.xlu0 0
  %70 = vperm.xlu0 %69, %v51
  %v71 = vpop.permute.xlu0 %70
  %74 = vset.pattern.permute.xlu0 0
  %75 = vperm.xlu0 %74, %v52
  %v76 = vpop.permute.xlu0 %75
  %79 = vset.pattern.permute.xlu0 0
  %80 = vperm.xlu0 %79, %v53
  %v81 = vpop.permute.xlu0 %80
  %v83 = vmul.f32 %v71, %v65
  %v84 = vmul.f32 %v76, %v66
  %v85 = vmul.f32 %v81, %v67
  %v86 = vpack.c.bf16 %v84, %v83
  %v87 = vpack.c.bf16 %v85, %v85
  %v90 = vunpack.c.l.b16 %v86
  %v91 = vunpack.c.h.b16 %v86
  %v92 = vunpack.c.l.b16 %v87
  %v93 = vpack.c.b16 %v90, %v90
  %v94 = vpack.c.b16 %v91, %v91
  %v95 = vpack.c.b16 %v92, %v92
  %vm99 = vcmask 19456
  %100 = vst.msk [vmem:[#allocation3] sm:$0xf] %vm99, %v93
  %101 = vst.msk [vmem:[#allocation3 + $0xc] sm:$0xf] %vm99, %v94
  %102 = vst.msk [vmem:[#allocation3 + $0x18] sm:$0xf] %vm99, %v95
  %v103 = vld [vmem:[#allocation2 + $0x5] sm:$0xff]
  %v104 = vld [vmem:[#allocation2 + $0xd] sm:$0xff]
  %v105 = vld [vmem:[#allocation2 + $0x15] sm:$0xff]
  %106 = vset.pattern.permute.xlu0 1
  %107 = vperm.xlu0 %106, %v51
  %v108 = vpop.permute.xlu0 %107
  %110 = vset.pattern.permute.xlu0 1
  %111 = vperm.xlu0 %110, %v52
  %v112 = vpop.permute.xlu0 %111
  %114 = vset.pattern.permute.xlu0 1
  %115 = vperm.xlu0 %114, %v53
  %v116 = vpop.permute.xlu0 %115
  %v118 = vmul.f32 %v108, %v103
  %v119 = vmul.f32 %v112, %v104
  %v120 = vmul.f32 %v116, %v105
  %v121 = vpack.c.bf16 %v119, %v118
  %v122 = vpack.c.bf16 %v120, %v120
  %v125 = vunpack.c.l.b16 %v121
  %v126 = vunpack.c.h.b16 %v121
  %v127 = vunpack.c.l.b16 %v122
  %v128 = vpack.c.b16 %v125, %v125
  %v129 = vpack.c.b16 %v126, %v126
  %v130 = vpack.c.b16 %v127, %v127
  %131 = vrot.lane.b32.xlu0 %v128, 3
  %v132 = vpop.permute.xlu0 %131
  %133 = vrot.lane.b32.xlu0 %v129, 3
  %v134 = vpop.permute.xlu0 %133
  %135 = vrot.lane.b32.xlu0 %v130, 3
  %v136 = vpop.permute.xlu0 %135
  %vm140 = vcmask 44056
  %141 = vst.msk [vmem:[#allocation3] sm:$0xf] %vm140, %v132
  %142 = vst.msk [vmem:[#allocation3 + $0xc] sm:$0xf] %vm140, %v134
  %143 = vst.msk [vmem:[#allocation3 + $0x18] sm:$0xf] %vm140, %v136
  %v144 = vld [vmem:[#allocation2 + $0x6] sm:$0xff]
  %v145 = vld [vmem:[#allocation2 + $0xe] sm:$0xff]
  %v146 = vld [vmem:[#allocation2 + $0x16] sm:$0xff]
  %147 = vset.pattern.permute.xlu0 2
  %148 = vperm.xlu0 %147, %v51
  %v149 = vpop.permute.xlu0 %148
  %151 = vset.pattern.permute.xlu0 2
  %152 = vperm.xlu0 %151, %v52
  %v153 = vpop.permute.xlu0 %152
  %155 = vset.pattern.permute.xlu0 2
  %156 = vperm.xlu0 %155, %v53
  %v157 = vpop.permute.xlu0 %156
  %v159 = vmul.f32 %v149, %v144
  %v160 = vmul.f32 %v153, %v145
  %v161 = vmul.f32 %v157, %v146
  %v162 = vpack.c.bf16 %v160, %v159
  %v163 = vpack.c.bf16 %v161, %v161
  %v166 = vunpack.c.l.b16 %v162
  %v167 = vunpack.c.h.b16 %v162
  %v168 = vunpack.c.l.b16 %v163
  %v169 = vpack.c.b16 %v166, %v166
  %v170 = vpack.c.b16 %v167, %v167
  %v171 = vpack.c.b16 %v168, %v168
  %172 = vrot.lane.b32.xlu0 %v169, 6
  %v173 = vpop.permute.xlu0 %172
  %174 = vrot.lane.b32.xlu0 %v170, 6
  %v175 = vpop.permute.xlu0 %174
  %176 = vrot.lane.b32.xlu0 %v171, 6
  %v177 = vpop.permute.xlu0 %176
  %vm181 = vcmask 68656
  %182 = vst.msk [vmem:[#allocation3] sm:$0xf] %vm181, %v173
  %183 = vst.msk [vmem:[#allocation3 + $0xc] sm:$0xf] %vm181, %v175
  %184 = vst.msk [vmem:[#allocation3 + $0x18] sm:$0xf] %vm181, %v177
  %v185 = vld [vmem:[#allocation2 + $0x7] sm:$0xff]
  %v186 = vld [vmem:[#allocation2 + $0xf] sm:$0xff]
  %v187 = vld [vmem:[#allocation2 + $0x17] sm:$0xff]
  %188 = vset.pattern.permute.xlu0 3
  %189 = vperm.xlu0 %188, %v51
  %v190 = vpop.permute.xlu0 %189
  %192 = vset.pattern.permute.xlu0 3
  %193 = vperm.xlu0 %192, %v52
  %v194 = vpop.permute.xlu0 %193
  %196 = vset.pattern.permute.xlu0 3
  %197 = vperm.xlu0 %196, %v53
  %v198 = vpop.permute.xlu0 %197
  %v200 = vmul.f32 %v190, %v185
  %v201 = vmul.f32 %v194, %v186
  %v202 = vmul.f32 %v198, %v187
  %v203 = vpack.c.bf16 %v201, %v200
  %v204 = vpack.c.bf16 %v202, %v202
  %v207 = vunpack.c.l.b16 %v203
  %v208 = vunpack.c.h.b16 %v203
  %v209 = vunpack.c.l.b16 %v204
  %v210 = vpack.c.b16 %v207, %v207
  %v211 = vpack.c.b16 %v208, %v208
  %v212 = vpack.c.b16 %v209, %v209
  %213 = vrot.lane.b32.xlu0 %v210, 9
  %v214 = vpop.permute.xlu0 %213
  %215 = vrot.lane.b32.xlu0 %v211, 9
  %v216 = vpop.permute.xlu0 %215
  %217 = vrot.lane.b32.xlu0 %v212, 9
  %v218 = vpop.permute.xlu0 %217
  %vm222 = vcmask 93256
  %223 = vst.msk [vmem:[#allocation3] sm:$0xf] %vm222, %v214
  %224 = vst.msk [vmem:[#allocation3 + $0xc] sm:$0xf] %vm222, %v216
  %225 = vst.msk [vmem:[#allocation3 + $0x18] sm:$0xf] %vm222, %v218
  %v226 = vld [vmem:[#allocation2 + $0x8] sm:$0xff]
  %v227 = vld [vmem:[#allocation2 + $0x10] sm:$0xff]
  %v228 = vld [vmem:[#allocation2 + $0x18] sm:$0xff]
  %229 = vset.pattern.permute.xlu0 4
  %230 = vperm.xlu0 %229, %v51
  %v231 = vpop.permute.xlu0 %230
  %233 = vset.pattern.permute.xlu0 4
  %234 = vperm.xlu0 %233, %v52
  %v235 = vpop.permute.xlu0 %234
  %237 = vset.pattern.permute.xlu0 4
  %238 = vperm.xlu0 %237, %v53
  %v239 = vpop.permute.xlu0 %238
  %v241 = vmul.f32 %v231, %v226
  %v242 = vmul.f32 %v235, %v227
  %v243 = vmul.f32 %v239, %v228
  %v244 = vpack.c.bf16 %v242, %v241
  %v245 = vpack.c.bf16 %v243, %v243
  %v248 = vunpack.c.l.b16 %v244
  %v249 = vunpack.c.h.b16 %v244
  %v250 = vunpack.c.l.b16 %v245
  %v251 = vpack.c.b16 %v248, %v248
  %v252 = vpack.c.b16 %v249, %v249
  %v253 = vpack.c.b16 %v250, %v250
  %254 = vrot.lane.b32.xlu0 %v251, 12
  %v255 = vpop.permute.xlu0 %254
  %256 = vrot.lane.b32.xlu0 %v252, 12
  %v257 = vpop.permute.xlu0 %256
  %258 = vrot.lane.b32.xlu0 %v253, 12
  %v259 = vpop.permute.xlu0 %258
  %vm263 = vcmask 117856
  %264 = vst.msk [vmem:[#allocation3] sm:$0xf] %vm263, %v255
  %265 = vst.msk [vmem:[#allocation3 + $0xc] sm:$0xf] %vm263, %v257
  %266 = vst.msk [vmem:[#allocation3 + $0x18] sm:$0xf] %vm263, %v259
  %v267 = vld [vmem:[#allocation2 + $0x9] sm:$0xff]
  %v268 = vld [vmem:[#allocation2 + $0x11] sm:$0xff]
  %v269 = vld [vmem:[#allocation2 + $0x19] sm:$0xff]
  %270 = vset.pattern.permute.xlu0 5
  %271 = vperm.xlu0 %270, %v51
  %v272 = vpop.permute.xlu0 %271
  %274 = vset.pattern.permute.xlu0 5
  %275 = vperm.xlu0 %274, %v52
  %v276 = vpop.permute.xlu0 %275
  %278 = vset.pattern.permute.xlu0 5
  %279 = vperm.xlu0 %278, %v53
  %v280 = vpop.permute.xlu0 %279
  %v282 = vmul.f32 %v272, %v267
  %v283 = vmul.f32 %v276, %v268
  %v284 = vmul.f32 %v280, %v269
  %v285 = vpack.c.bf16 %v283, %v282
  %v286 = vpack.c.bf16 %v284, %v284
  %v289 = vunpack.c.l.b16 %v285
  %v290 = vunpack.c.h.b16 %v285
  %v291 = vunpack.c.l.b16 %v286
  %v292 = vpack.c.b16 %v289, %v289
  %v293 = vpack.c.b16 %v290, %v290
  %v294 = vpack.c.b16 %v291, %v291
  %295 = vrot.lane.b32.xlu0 %v292, 15
  %v296 = vpop.permute.xlu0 %295
  %297 = vrot.lane.b32.xlu0 %v293, 15
  %v298 = vpop.permute.xlu0 %297
  %299 = vrot.lane.b32.xlu0 %v294, 15
  %v300 = vpop.permute.xlu0 %299
  %vm304 = vcmask 142456
  %305 = vst.msk [vmem:[#allocation3] sm:$0xf] %vm304, %v296
  %306 = vst.msk [vmem:[#allocation3 + $0xc] sm:$0xf] %vm304, %v298
  %307 = vst.msk [vmem:[#allocation3 + $0x18] sm:$0xf] %vm304, %v300
  %v308 = vld [vmem:[#allocation2 + $0xa] sm:$0xff]
  %v309 = vld [vmem:[#allocation2 + $0x12] sm:$0xff]
  %v310 = vld [vmem:[#allocation2 + $0x1a] sm:$0xff]
  %311 = vset.pattern.permute.xlu0 6
  %312 = vperm.xlu0 %311, %v51
  %v313 = vpop.permute.xlu0 %312
  %315 = vset.pattern.permute.xlu0 6
  %316 = vperm.xlu0 %315, %v52
  %v317 = vpop.permute.xlu0 %316
  %319 = vset.pattern.permute.xlu0 6
  %320 = vperm.xlu0 %319, %v53
  %v321 = vpop.permute.xlu0 %320
  %v323 = vmul.f32 %v313, %v308
  %v324 = vmul.f32 %v317, %v309
  %v325 = vmul.f32 %v321, %v310
  %v326 = vpack.c.bf16 %v324, %v323
  %v327 = vpack.c.bf16 %v325, %v325
  %v330 = vunpack.c.l.b16 %v326
  %v331 = vunpack.c.h.b16 %v326
  %v332 = vunpack.c.l.b16 %v327
  %v333 = vpack.c.b16 %v330, %v330
  %v334 = vpack.c.b16 %v331, %v331
  %v335 = vpack.c.b16 %v332, %v332
  %336 = vrot.lane.b32.xlu0 %v333, 18
  %v337 = vpop.permute.xlu0 %336
  %338 = vrot.lane.b32.xlu0 %v334, 18
  %v339 = vpop.permute.xlu0 %338
  %340 = vrot.lane.b32.xlu0 %v335, 18
  %v341 = vpop.permute.xlu0 %340
  %vm345 = vcmask 167056
  %346 = vst.msk [vmem:[#allocation3] sm:$0xf] %vm345, %v337
  %347 = vst.msk [vmem:[#allocation3 + $0xc] sm:$0xf] %vm345, %v339
  %348 = vst.msk [vmem:[#allocation3 + $0x18] sm:$0xf] %vm345, %v341
  %v349 = vld [vmem:[#allocation2 + $0xb] sm:$0xff]
  %v350 = vld [vmem:[#allocation2 + $0x13] sm:$0xff]
  %v351 = vld [vmem:[#allocation2 + $0x1b] sm:$0xff]
  %352 = vset.pattern.permute.xlu0 7
  %353 = vperm.xlu0 %352, %v51
  %v354 = vpop.permute.xlu0 %353
  %356 = vset.pattern.permute.xlu0 7
  %357 = vperm.xlu0 %356, %v52
  %v358 = vpop.permute.xlu0 %357
  %360 = vset.pattern.permute.xlu0 7
  %361 = vperm.xlu0 %360, %v53
  %v362 = vpop.permute.xlu0 %361
  %v364 = vmul.f32 %v354, %v349
  %v365 = vmul.f32 %v358, %v350
  %v366 = vmul.f32 %v362, %v351
  %v367 = vpack.c.bf16 %v365, %v364
  %v368 = vpack.c.bf16 %v366, %v366
  %v371 = vunpack.c.l.b16 %v367
  %v372 = vunpack.c.h.b16 %v367
  %v373 = vunpack.c.l.b16 %v368
  %v374 = vpack.c.b16 %v371, %v371
  %v375 = vpack.c.b16 %v372, %v372
  %v376 = vpack.c.b16 %v373, %v373
  %377 = vrot.lane.b32.xlu0 %v374, 21
  %v378 = vpop.permute.xlu0 %377
  %379 = vrot.lane.b32.xlu0 %v375, 21
  %v380 = vpop.permute.xlu0 %379
  %381 = vrot.lane.b32.xlu0 %v376, 21
  %v382 = vpop.permute.xlu0 %381
  %vm386 = vcmask 191656
  %387 = vst.msk [vmem:[#allocation3] sm:$0xf] %vm386, %v378
  %388 = vst.msk [vmem:[#allocation3 + $0xc] sm:$0xf] %vm386, %v380
  %389 = vst.msk [vmem:[#allocation3 + $0x18] sm:$0xf] %vm386, %v382
  %v390 = vld [vmem:[#allocation2 + $0xc] sm:$0xff]
  %v391 = vld [vmem:[#allocation2 + $0x14] sm:$0xff]
  %v392 = vld [vmem:[#allocation2 + $0x1c] sm:$0xff]
  %393 = vset.pattern.permute.xlu0 8
  %394 = vperm.xlu0 %393, %v51
  %v395 = vpop.permute.xlu0 %394
  %397 = vset.pattern.permute.xlu0 8
  %398 = vperm.xlu0 %397, %v52
  %v399 = vpop.permute.xlu0 %398
  %401 = vset.pattern.permute.xlu0 8
  %402 = vperm.xlu0 %401, %v53
  %v403 = vpop.permute.xlu0 %402
  %v405 = vmul.f32 %v395, %v390
  %v406 = vmul.f32 %v399, %v391
  %v407 = vmul.f32 %v403, %v392
  %v408 = vpack.c.bf16 %v406, %v405
  %v409 = vpack.c.bf16 %v407, %v407
  %v412 = vunpack.c.l.b16 %v408
  %v413 = vunpack.c.h.b16 %v408
  %v414 = vunpack.c.l.b16 %v409
  %v415 = vpack.c.b16 %v412, %v412
  %v416 = vpack.c.b16 %v413, %v413
  %v417 = vpack.c.b16 %v414, %v414
  %418 = vrot.lane.b32.xlu0 %v415, 24
  %v419 = vpop.permute.xlu0 %418
  %420 = vrot.lane.b32.xlu0 %v416, 24
  %v421 = vpop.permute.xlu0 %420
  %422 = vrot.lane.b32.xlu0 %v417, 24
  %v423 = vpop.permute.xlu0 %422
  %vm427 = vcmask 216256
  %428 = vst.msk [vmem:[#allocation3] sm:$0xf] %vm427, %v419
  %429 = vst.msk [vmem:[#allocation3 + $0xc] sm:$0xf] %vm427, %v421
  %430 = vst.msk [vmem:[#allocation3 + $0x18] sm:$0xf] %vm427, %v423
  %v431 = vld [vmem:[#allocation3] sm:$0xf]
  %v432 = vld [vmem:[#allocation3 + $0xc] sm:$0xf]
  %v433 = vld [vmem:[#allocation3 + $0x18] sm:$0xf]
  %v437 = vunpack.c.l.b16 %v431
  %v438 = vunpack.c.l.b16 %v432
  %v439 = vunpack.c.l.b16 %v433
  %v440 = vpack.c.b16 %v438, %v437
  %v441 = vpack.c.b16 %v439, %v439
  %v446 = vunpack.c.l.b16 %v57
  %v447 = vunpack.c.l.b16 %v58
  %v448 = vunpack.c.l.b16 %v59
  %v449 = vunpack.c.l.b16 %v60
  %v450 = vpack.c.b16 %v447, %v446
  %v451 = vpack.c.b16 %v449, %v448
  %vm453 = vcmask 220160
  %v455 = vsel %vm453, %v440, 0
  %v458 = vsel %vm453, %v441, 0
  %vm460 = vcmask 1044480
  %vm461 = vcmask 1045504
  %v462 = vsel %vm460, 4294967295, 65535
  %v463 = vsel %vm461, %v462, 0
  %v465 = vand.u32 %v451, %v463
  %467 = vmatprep.subr.bf16.mxu0 0
  %468 = vmatpush1.bf16.msra.mxu0 %v450
  %469 = vmatprep.subr.bf16.mxu0 0
  %470 = vmatpush1.bf16.msra.mxu0 %v465
  %471 = vmatprep.subr.bf16.mxu0 0
  %472 = vmatpush1.bf16.msra.mxu0 0
  %473 = vmatprep.subr.bf16.mxu0 0
  %474 = vmatpush1.bf16.msra.mxu0 0
  %475 = vmatprep.subr.bf16.mxu0 0
  %476 = vmatpush1.bf16.msra.mxu0 0
  %477 = vmatprep.subr.bf16.mxu0 0
  %478 = vmatpush1.bf16.msra.mxu0 0
  %479 = vmatprep.subr.bf16.mxu0 0
  %480 = vmatpush1.bf16.msra.mxu0 0
  %481 = vmatprep.subr.bf16.mxu0 0
  %482 = vmatpush1.bf16.msra.mxu0 0
  %483 = vmatprep.subr.bf16.mxu0 0
  %484 = vmatpush1.bf16.msra.mxu0 0
  %485 = vmatprep.subr.bf16.mxu0 0
  %486 = vmatpush1.bf16.msra.mxu0 0
  %487 = vmatprep.subr.bf16.mxu0 0
  %488 = vmatpush1.bf16.msra.mxu0 0
  %489 = vmatprep.subr.bf16.mxu0 0
  %490 = vmatpush1.bf16.msra.mxu0 0
  %491 = vmatprep.subr.bf16.mxu0 0
  %492 = vmatpush1.bf16.msra.mxu0 0
  %493 = vmatprep.subr.bf16.mxu0 0
  %494 = vmatpush1.bf16.msra.mxu0 0
  %495 = vmatprep.subr.bf16.mxu0 0
  %496 = vmatpush1.bf16.msra.mxu0 0
  %497 = vmatprep.subr.bf16.mxu0 0
  %498 = vmatpush1.bf16.msra.mxu0 0
  %499 = vmatprep.mubr.bf16.mxu0 0
  %500 = vmatmul.mubr.bf16.gmra.mrb[0].mxu0 %v455
  %v501 = vpop.f32.mrb[0].mxu0
  %v502 = vadd.f32 0.0, %v501
  %v503 = vpop.f32.mrb[0].mxu0
  %v504 = vpop.f32.mrb[0].mxu0
  %v505 = vadd.f32 0.0, %v504
  %v506 = vpop.f32.mrb[0].mxu0
  %507 = vmatprep.mubr.bf16.mxu0 0
  %508 = vmatmul.mubr.bf16.gmra.mrb[0].mxu0 %v458
  %v509 = vpop.f32.mrb[0].mxu0
  %v510 = vadd.f32 0.0, %v509
  %v511 = vpop.f32.mrb[0].mxu0
  %v512 = vpop.f32.mrb[0].mxu0
  %v513 = vpop.f32.mrb[0].mxu0
  %514 = vdwg.mxu0
  %v515 = vld [vmem:[%s2] sm:$0x1]
  %v516 = vld [vmem:[%s3] sm:$0x1]
  %v517 = vsel %vm45, %v502, 0.0
  %v518 = vsel %vm45, %v505, 0.0
  %v519 = vadd.f32 %v517, %v518
  %v520 = vsel %vm45, %v510, 0.0
  %v521 = vadd.f32 %v519, %v520
  %v522 = vrot.slane %v521, 4
  %v523 = vadd.f32 %v521, %v522
  %v524 = vrot.slane %v523, 2
  %v525 = vadd.f32 %v523, %v524
  %v526 = vrot.slane %v525, 1
  %v527 = vadd.f32 %v525, %v526
  %v528 = vmul.f32 %v527, 0.055555556
  %v529 = vsub.f32 %v502, %v528
  %v530 = vsub.f32 %v505, %v528
  %v531 = vsub.f32 %v510, %v528
  %v532 = vmul.f32 %v529, %v529
  %v533 = vmul.f32 %v530, %v530
  %v534 = vmul.f32 %v531, %v531
  %v535 = vsel %vm45, %v532, 0.0
  %v536 = vsel %vm45, %v533, 0.0
  %v537 = vadd.f32 %v535, %v536
  %v538 = vsel %vm45, %v534, 0.0
  %v539 = vadd.f32 %v537, %v538
  %v540 = vrot.slane %v539, 4
  %v541 = vadd.f32 %v539, %v540
  %v542 = vrot.slane %v541, 2
  %v543 = vadd.f32 %v541, %v542
  %v544 = vrot.slane %v543, 1
  %v545 = vadd.f32 %v543, %v544
  %v546 = vmul.f32 %v528, 6.0
  %v547 = vmul.f32 %v546, %v528
  %v548 = vsub.f32 %v545, %v547
  %v549 = vmul.f32 %v548, 0.055555556
  %v550 = vadd.f32 %v549, 1e-05
  %v551 = vrsqrt.pop %v550
  %v552 = vmul.f32 %v515, %v551
  %v554 = vlaneseq
  %v555 = vshrl.u32 %v554, 7
  %v556 = vsub.s32 0, %v555
  %v557 = vrot.slane %v552, %v556
  %v559 = vmul.f32 %v529, %v557
  %v560 = vmul.f32 %v530, %v557
  %v561 = vmul.f32 %v531, %v557
  %v563 = vlaneseq
  %v564 = vshrl.u32 %v563, 7
  %v565 = vsub.s32 0, %v564
  %v566 = vrot.slane %v516, %v565
  %v568 = vadd.f32 %v559, %v566
  %v569 = vadd.f32 %v560, %v566
  %v570 = vadd.f32 %v561, %v566
  %v571 = vmax.f32 %v568, 0.0
  %v572 = vmax.f32 %v569, 0.0
  %v573 = vmax.f32 %v570, 0.0
  %v574 = vld [vmem:[%s4] sm:$0xf]
  %v575 = vld [vmem:[%s4 + $0x4] sm:$0xf]
  %v576 = vld [vmem:[%s4 + $0x8] sm:$0xf]
  %v577 = vld [vmem:[%s4 + $0xc] sm:$0xf]
  %v578 = vld [vmem:[%s4 + $0x10] sm:$0xf]
  %v579 = vld [vmem:[%s4 + $0x14] sm:$0xf]
  %v580 = vld [vmem:[%s4 + $0x18] sm:$0xf]
  %v581 = vld [vmem:[%s4 + $0x1c] sm:$0xf]
  %v582 = vld [vmem:[%s4 + $0x20] sm:$0xf]
  %v583 = vld [vmem:[%s4 + $0x24] sm:$0xf]
  %v584 = vld [vmem:[%s4 + $0x28] sm:$0xf]
  %v585 = vld [vmem:[%s4 + $0x2c] sm:$0xf]
  %v586 = vld [vmem:[%s4 + $0x30] sm:$0xf]
  %v587 = vld [vmem:[%s4 + $0x34] sm:$0xf]
  %v588 = vld [vmem:[%s4 + $0x38] sm:$0xf]
  %v589 = vld [vmem:[%s4 + $0x3c] sm:$0xf]
  %v590 = vld [vmem:[%s4 + $0x40] sm:$0xf]
  %v591 = vld [vmem:[%s4 + $0x44] sm:$0xf]
  %v592 = vld [vmem:[%s4 + $0x48] sm:$0xf]
  %v593 = vld [vmem:[%s4 + $0x4c] sm:$0xf]
  %v594 = vld [vmem:[%s4 + $0x50] sm:$0xf]
  %v595 = vld [vmem:[%s4 + $0x54] sm:$0xf]
  %v596 = vld [vmem:[%s4 + $0x58] sm:$0xf]
  %v597 = vld [vmem:[%s4 + $0x5c] sm:$0xf]
  %v598 = vld [vmem:[%s4 + $0x60] sm:$0xf]
  %v599 = vld [vmem:[%s4 + $0x64] sm:$0xf]
  %v600 = vld [vmem:[%s4 + $0x68] sm:$0xf]
  %v601 = vld [vmem:[%s4 + $0x6c] sm:$0xf]
  %v602 = vld [vmem:[%s4 + $0x70] sm:$0xf]
  %v603 = vld [vmem:[%s4 + $0x74] sm:$0xf]
  %v604 = vld [vmem:[%s4 + $0x78] sm:$0xf]
  %v605 = vld [vmem:[%s4 + $0x7c] sm:$0xf]
  %v606 = vld [vmem:[%s4 + $0x80] sm:$0xf]
  %v607 = vld [vmem:[%s4 + $0x84] sm:$0xf]
  %v608 = vld [vmem:[%s4 + $0x88] sm:$0xf]
  %v609 = vld [vmem:[%s4 + $0x8c] sm:$0xf]
  %610 = vst.msk [vmem:[#allocation2 + $0x8] sm:$0xff] %vm45, %v571
  %611 = vst.msk [vmem:[#allocation2 + $0x10] sm:$0xff] %vm45, %v572
  %612 = vst.msk [vmem:[#allocation2 + $0x18] sm:$0xff] %vm45, %v573
  %v613 = vld [vmem:[#allocation2 + $0x4] sm:$0xff]
  %v614 = vld [vmem:[#allocation2 + $0xc] sm:$0xff]
  %v615 = vld [vmem:[#allocation2 + $0x14] sm:$0xff]
  %v616 = vmul.f32 %v71, %v613
  %v617 = vmul.f32 %v76, %v614
  %v618 = vmul.f32 %v81, %v615
  %v619 = vpack.c.bf16 %v617, %v616
  %v620 = vpack.c.bf16 %v618, %v618
  %v623 = vunpack.c.l.b16 %v619
  %v624 = vunpack.c.h.b16 %v619
  %v625 = vunpack.c.l.b16 %v620
  %v626 = vpack.c.b16 %v623, %v623
  %v627 = vpack.c.b16 %v624, %v624
  %v628 = vpack.c.b16 %v625, %v625
  %vm632 = vcmask 257024
  %633 = vst.msk [vmem:[#allocation3] sm:$0xf] %vm632, %v626
  %634 = vst.msk [vmem:[#allocation3 + $0xc] sm:$0xf] %vm632, %v627
  %635 = vst.msk [vmem:[#allocation3 + $0x18] sm:$0xf] %vm632, %v628
  %v636 = vld [vmem:[#allocation2 + $0x5] sm:$0xff]
  %v637 = vld [vmem:[#allocation2 + $0xd] sm:$0xff]
  %v638 = vld [vmem:[#allocation2 + $0x15] sm:$0xff]
  %v639 = vmul.f32 %v108, %v636
  %v640 = vmul.f32 %v112, %v637
  %v641 = vmul.f32 %v116, %v638
  %v642 = vpack.c.bf16 %v640, %v639
  %v643 = vpack.c.bf16 %v641, %v641
  %v646 = vunpack.c.l.b16 %v642
  %v647 = vunpack.c.h.b16 %v642
  %v648 = vunpack.c.l.b16 %v643
  %v649 = vpack.c.b16 %v646, %v646
  %v650 = vpack.c.b16 %v647, %v647
  %v651 = vpack.c.b16 %v648, %v648
  %652 = vrot.lane.b32.xlu0 %v649, 32
  %v653 = vpop.permute.xlu0 %652
  %654 = vrot.lane.b32.xlu0 %v650, 32
  %v655 = vpop.permute.xlu0 %654
  %656 = vrot.lane.b32.xlu0 %v651, 32
  %v657 = vpop.permute.xlu0 %656
  %vm661 = vcmask 519424
  %662 = vst.msk [vmem:[#allocation3] sm:$0xf] %vm661, %v653
  %663 = vst.msk [vmem:[#allocation3 + $0xc] sm:$0xf] %vm661, %v655
  %664 = vst.msk [vmem:[#allocation3 + $0x18] sm:$0xf] %vm661, %v657
  %v665 = vld [vmem:[#allocation2 + $0x6] sm:$0xff]
  %v666 = vld [vmem:[#allocation2 + $0xe] sm:$0xff]
  %v667 = vld [vmem:[#allocation2 + $0x16] sm:$0xff]
  %v668 = vmul.f32 %v149, %v665
  %v669 = vmul.f32 %v153, %v666
  %v670 = vmul.f32 %v157, %v667
  %v671 = vpack.c.bf16 %v669, %v668
  %v672 = vpack.c.bf16 %v670, %v670
  %v675 = vunpack.c.l.b16 %v671
  %v676 = vunpack.c.h.b16 %v671
  %v677 = vunpack.c.l.b16 %v672
  %v678 = vpack.c.b16 %v675, %v675
  %v679 = vpack.c.b16 %v676, %v676
  %v680 = vpack.c.b16 %v677, %v677
  %681 = vrot.lane.b32.xlu0 %v678, 64
  %v682 = vpop.permute.xlu0 %681
  %683 = vrot.lane.b32.xlu0 %v679, 64
  %v684 = vpop.permute.xlu0 %683
  %685 = vrot.lane.b32.xlu0 %v680, 64
  %v686 = vpop.permute.xlu0 %685
  %vm690 = vcmask 781824
  %691 = vst.msk [vmem:[#allocation3] sm:$0xf] %vm690, %v682
  %692 = vst.msk [vmem:[#allocation3 + $0xc] sm:$0xf] %vm690, %v684
  %693 = vst.msk [vmem:[#allocation3 + $0x18] sm:$0xf] %vm690, %v686
  %v694 = vld [vmem:[#allocation2 + $0x7] sm:$0xff]
  %v695 = vld [vmem:[#allocation2 + $0xf] sm:$0xff]
  %v696 = vld [vmem:[#allocation2 + $0x17] sm:$0xff]
  %v697 = vmul.f32 %v190, %v694
  %v698 = vmul.f32 %v194, %v695
  %v699 = vmul.f32 %v198, %v696
  %v700 = vpack.c.bf16 %v698, %v697
  %v701 = vpack.c.bf16 %v699, %v699
  %v704 = vunpack.c.l.b16 %v700
  %v705 = vunpack.c.h.b16 %v700
  %v706 = vunpack.c.l.b16 %v701
  %v707 = vpack.c.b16 %v704, %v704
  %v708 = vpack.c.b16 %v705, %v705
  %v709 = vpack.c.b16 %v706, %v706
  %710 = vrot.lane.b32.xlu0 %v707, 96
  %v711 = vpop.permute.xlu0 %710
  %712 = vrot.lane.b32.xlu0 %v708, 96
  %v713 = vpop.permute.xlu0 %712
  %714 = vrot.lane.b32.xlu0 %v709, 96
  %v715 = vpop.permute.xlu0 %714
  %vm719 = vcmask 1044224
  %720 = vst.msk [vmem:[#allocation3] sm:$0xf] %vm719, %v711
  %721 = vst.msk [vmem:[#allocation3 + $0xc] sm:$0xf] %vm719, %v713
  %722 = vst.msk [vmem:[#allocation3 + $0x18] sm:$0xf] %vm719, %v715
  %v723 = vld [vmem:[#allocation2 + $0x8] sm:$0xff]
  %v724 = vld [vmem:[#allocation2 + $0x10] sm:$0xff]
  %v725 = vld [vmem:[#allocation2 + $0x18] sm:$0xff]
  %v726 = vmul.f32 %v231, %v723
  %v727 = vmul.f32 %v235, %v724
  %v728 = vmul.f32 %v239, %v725
  %v729 = vpack.c.bf16 %v727, %v726
  %v730 = vpack.c.bf16 %v728, %v728
  %v733 = vunpack.c.l.b16 %v729
  %v734 = vunpack.c.h.b16 %v729
  %v735 = vunpack.c.l.b16 %v730
  %v736 = vpack.c.b16 %v733, %v733
  %v737 = vpack.c.b16 %v734, %v734
  %v738 = vpack.c.b16 %v735, %v735
  %742 = vst.msk [vmem:[#allocation3 + $0x4] sm:$0xf] %vm632, %v736
  %743 = vst.msk [vmem:[#allocation3 + $0x10] sm:$0xf] %vm632, %v737
  %744 = vst.msk [vmem:[#allocation3 + $0x1c] sm:$0xf] %vm632, %v738
  %v745 = vld [vmem:[#allocation2 + $0x9] sm:$0xff]
  %v746 = vld [vmem:[#allocation2 + $0x11] sm:$0xff]
  %v747 = vld [vmem:[#allocation2 + $0x19] sm:$0xff]
  %v748 = vmul.f32 %v272, %v745
  %v749 = vmul.f32 %v276, %v746
  %v750 = vmul.f32 %v280, %v747
  %v751 = vpack.c.bf16 %v749, %v748
  %v752 = vpack.c.bf16 %v750, %v750
  %v755 = vunpack.c.l.b16 %v751
  %v756 = vunpack.c.h.b16 %v751
  %v757 = vunpack.c.l.b16 %v752
  %v758 = vpack.c.b16 %v755, %v755
  %v759 = vpack.c.b16 %v756, %v756
  %v760 = vpack.c.b16 %v757, %v757
  %761 = vrot.lane.b32.xlu0 %v758, 32
  %v762 = vpop.permute.xlu0 %761
  %763 = vrot.lane.b32.xlu0 %v759, 32
  %v764 = vpop.permute.xlu0 %763
  %765 = vrot.lane.b32.xlu0 %v760, 32
  %v766 = vpop.permute.xlu0 %765
  %770 = vst.msk [vmem:[#allocation3 + $0x4] sm:$0xf] %vm661, %v762
  %771 = vst.msk [vmem:[#allocation3 + $0x10] sm:$0xf] %vm661, %v764
  %772 = vst.msk [vmem:[#allocation3 + $0x1c] sm:$0xf] %vm661, %v766
  %v773 = vld [vmem:[#allocation2 + $0xa] sm:$0xff]
  %v774 = vld [vmem:[#allocation2 + $0x12] sm:$0xff]
  %v775 = vld [vmem:[#allocation2 + $0x1a] sm:$0xff]
  %v776 = vmul.f32 %v313, %v773
  %v777 = vmul.f32 %v317, %v774
  %v778 = vmul.f32 %v321, %v775
  %v779 = vpack.c.bf16 %v777, %v776
  %v780 = vpack.c.bf16 %v778, %v778
  %v783 = vunpack.c.l.b16 %v779
  %v784 = vunpack.c.h.b16 %v779
  %v785 = vunpack.c.l.b16 %v780
  %v786 = vpack.c.b16 %v783, %v783
  %v787 = vpack.c.b16 %v784, %v784
  %v788 = vpack.c.b16 %v785, %v785
  %789 = vrot.lane.b32.xlu0 %v786, 64
  %v790 = vpop.permute.xlu0 %789
  %791 = vrot.lane.b32.xlu0 %v787, 64
  %v792 = vpop.permute.xlu0 %791
  %793 = vrot.lane.b32.xlu0 %v788, 64
  %v794 = vpop.permute.xlu0 %793
  %798 = vst.msk [vmem:[#allocation3 + $0x4] sm:$0xf] %vm690, %v790
  %799 = vst.msk [vmem:[#allocation3 + $0x10] sm:$0xf] %vm690, %v792
  %800 = vst.msk [vmem:[#allocation3 + $0x1c] sm:$0xf] %vm690, %v794
  %v801 = vld [vmem:[#allocation2 + $0xb] sm:$0xff]
  %v802 = vld [vmem:[#allocation2 + $0x13] sm:$0xff]
  %v803 = vld [vmem:[#allocation2 + $0x1b] sm:$0xff]
  %v804 = vmul.f32 %v354, %v801
  %v805 = vmul.f32 %v358, %v802
  %v806 = vmul.f32 %v362, %v803
  %v807 = vpack.c.bf16 %v805, %v804
  %v808 = vpack.c.bf16 %v806, %v806
  %v811 = vunpack.c.l.b16 %v807
  %v812 = vunpack.c.h.b16 %v807
  %v813 = vunpack.c.l.b16 %v808
  %v814 = vpack.c.b16 %v811, %v811
  %v815 = vpack.c.b16 %v812, %v812
  %v816 = vpack.c.b16 %v813, %v813
  %817 = vrot.lane.b32.xlu0 %v814, 96
  %v818 = vpop.permute.xlu0 %817
  %819 = vrot.lane.b32.xlu0 %v815, 96
  %v820 = vpop.permute.xlu0 %819
  %821 = vrot.lane.b32.xlu0 %v816, 96
  %v822 = vpop.permute.xlu0 %821
  %826 = vst.msk [vmem:[#allocation3 + $0x4] sm:$0xf] %vm719, %v818
  %827 = vst.msk [vmem:[#allocation3 + $0x10] sm:$0xf] %vm719, %v820
  %828 = vst.msk [vmem:[#allocation3 + $0x1c] sm:$0xf] %vm719, %v822
  %v829 = vld [vmem:[#allocation2 + $0xc] sm:$0xff]
  %v830 = vld [vmem:[#allocation2 + $0x14] sm:$0xff]
  %v831 = vld [vmem:[#allocation2 + $0x1c] sm:$0xff]
  %v832 = vmul.f32 %v395, %v829
  %v833 = vmul.f32 %v399, %v830
  %v834 = vmul.f32 %v403, %v831
  %v835 = vpack.c.bf16 %v833, %v832
  %v836 = vpack.c.bf16 %v834, %v834
  %v839 = vunpack.c.l.b16 %v835
  %v840 = vunpack.c.h.b16 %v835
  %v841 = vunpack.c.l.b16 %v836
  %v842 = vpack.c.b16 %v839, %v839
  %v843 = vpack.c.b16 %v840, %v840
  %v844 = vpack.c.b16 %v841, %v841
  %848 = vst.msk [vmem:[#allocation3 + $0x8] sm:$0xf] %vm632, %v842
  %849 = vst.msk [vmem:[#allocation3 + $0x14] sm:$0xf] %vm632, %v843
  %850 = vst.msk [vmem:[#allocation3 + $0x20] sm:$0xf] %vm632, %v844
  %v851 = vld [vmem:[#allocation3] sm:$0xff]
  %v852 = vld [vmem:[#allocation3 + $0x8] sm:$0xf]
  %v853 = vld [vmem:[#allocation3 + $0xc] sm:$0xff]
  %v854 = vld [vmem:[#allocation3 + $0x14] sm:$0xf]
  %v855 = vld [vmem:[#allocation3 + $0x18] sm:$0xff]
  %v856 = vld [vmem:[#allocation3 + $0x20] sm:$0xf]
  %v863 = vunpack.c.l.b16 %v851
  %v864 = vunpack.c.h.b16 %v851
  %v865 = vunpack.c.l.b16 %v852
  %v866 = vunpack.c.l.b16 %v853
  %v867 = vunpack.c.h.b16 %v853
  %v868 = vunpack.c.l.b16 %v854
  %v869 = vunpack.c.l.b16 %v855
  %v870 = vunpack.c.h.b16 %v855
  %v871 = vunpack.c.l.b16 %v856
  %v872 = vpack.c.b16 %v866, %v863
  %v873 = vpack.c.b16 %v867, %v864
  %v874 = vpack.c.b16 %v868, %v865
  %v875 = vpack.c.b16 %v869, %v869
  %v876 = vpack.c.b16 %v870, %v870
  %v877 = vpack.c.b16 %v871, %v871
  %v918 = vunpack.c.l.b16 %v574
  %v919 = vunpack.c.l.b16 %v575
  %v920 = vunpack.c.l.b16 %v576
  %v921 = vunpack.c.l.b16 %v577
  %v922 = vunpack.c.l.b16 %v578
  %v923 = vunpack.c.l.b16 %v579
  %v924 = vunpack.c.l.b16 %v580
  %v925 = vunpack.c.l.b16 %v581
  %v926 = vunpack.c.l.b16 %v582
  %v927 = vunpack.c.l.b16 %v583
  %v928 = vunpack.c.l.b16 %v584
  %v929 = vunpack.c.l.b16 %v585
  %v930 = vunpack.c.l.b16 %v586
  %v931 = vunpack.c.l.b16 %v587
  %v932 = vunpack.c.l.b16 %v588
  %v933 = vunpack.c.l.b16 %v589
  %v934 = vunpack.c.l.b16 %v590
  %v935 = vunpack.c.l.b16 %v591
  %v936 = vunpack.c.l.b16 %v592
  %v937 = vunpack.c.l.b16 %v593
  %v938 = vunpack.c.l.b16 %v594
  %v939 = vunpack.c.l.b16 %v595
  %v940 = vunpack.c.l.b16 %v596
  %v941 = vunpack.c.l.b16 %v597
  %v942 = vunpack.c.l.b16 %v598
  %v943 = vunpack.c.l.b16 %v599
  %v944 = vunpack.c.l.b16 %v600
  %v945 = vunpack.c.l.b16 %v601
  %v946 = vunpack.c.l.b16 %v602
  %v947 = vunpack.c.l.b16 %v603
  %v948 = vunpack.c.l.b16 %v604
  %v949 = vunpack.c.l.b16 %v605
  %v950 = vunpack.c.l.b16 %v606
  %v951 = vunpack.c.l.b16 %v607
  %v952 = vunpack.c.l.b16 %v608
  %v953 = vunpack.c.l.b16 %v609
  %v954 = vpack.c.b16 %v919, %v918
  %v955 = vpack.c.b16 %v921, %v920
  %v956 = vpack.c.b16 %v923, %v922
  %v957 = vpack.c.b16 %v925, %v924
  %v958 = vpack.c.b16 %v927, %v926
  %v959 = vpack.c.b16 %v929, %v928
  %v960 = vpack.c.b16 %v931, %v930
  %v961 = vpack.c.b16 %v933, %v932
  %v962 = vpack.c.b16 %v935, %v934
  %v963 = vpack.c.b16 %v937, %v936
  %v964 = vpack.c.b16 %v939, %v938
  %v965 = vpack.c.b16 %v941, %v940
  %v966 = vpack.c.b16 %v943, %v942
  %v967 = vpack.c.b16 %v945, %v944
  %v968 = vpack.c.b16 %v947, %v946
  %v969 = vpack.c.b16 %v949, %v948
  %v970 = vpack.c.b16 %v951, %v950
  %v971 = vpack.c.b16 %v953, %v952
  %v991 = vsel %vm45, %v874, 0
  %v994 = vsel %vm45, %v877, 0
  %996 = vmatprep.subr.bf16.mxu0 0
  %997 = vmatpush1.bf16.msra.mxu0 %v954
  %998 = vmatprep.subr.bf16.mxu0 0
  %999 = vmatpush1.bf16.msra.mxu0 %v955
  %1000 = vmatprep.subr.bf16.mxu0 0
  %1001 = vmatpush1.bf16.msra.mxu0 %v956
  %1002 = vmatprep.subr.bf16.mxu0 0
  %1003 = vmatpush1.bf16.msra.mxu0 %v957
  %1004 = vmatprep.subr.bf16.mxu0 0
  %1005 = vmatpush1.bf16.msra.mxu0 %v958
  %1006 = vmatprep.subr.bf16.mxu0 0
  %1007 = vmatpush1.bf16.msra.mxu0 %v959
  %1008 = vmatprep.subr.bf16.mxu0 0
  %1009 = vmatpush1.bf16.msra.mxu0 %v960
  %1010 = vmatprep.subr.bf16.mxu0 0
  %1011 = vmatpush1.bf16.msra.mxu0 %v961
  %1012 = vmatprep.subr.bf16.mxu0 0
  %1013 = vmatpush1.bf16.msra.mxu0 %v962
  %1014 = vmatprep.subr.bf16.mxu0 0
  %1015 = vmatpush1.bf16.msra.mxu0 %v963
  %1016 = vmatprep.subr.bf16.mxu0 0
  %1017 = vmatpush1.bf16.msra.mxu0 %v964
  %1018 = vmatprep.subr.bf16.mxu0 0
  %1019 = vmatpush1.bf16.msra.mxu0 %v965
  %1020 = vmatprep.subr.bf16.mxu0 0
  %1021 = vmatpush1.bf16.msra.mxu0 %v966
  %1022 = vmatprep.subr.bf16.mxu0 0
  %1023 = vmatpush1.bf16.msra.mxu0 %v967
  %1024 = vmatprep.subr.bf16.mxu0 0
  %1025 = vmatpush1.bf16.msra.mxu0 %v968
  %1026 = vmatprep.subr.bf16.mxu0 0
  %1027 = vmatpush1.bf16.msra.mxu0 %v969
  %1028 = vmatprep.mubr.bf16.mxu0 %v873
  %1029 = vmatmul.mubr.bf16.gmra.mrb[0].mxu0 %v872
  %v1030 = vpop.f32.mrb[0].mxu0
  %v1031 = vadd.f32 0.0, %v1030
  %v1032 = vpop.f32.mrb[0].mxu0
  %v1033 = vpop.f32.mrb[0].mxu0
  %v1034 = vadd.f32 0.0, %v1033
  %v1035 = vpop.f32.mrb[0].mxu0
  %1036 = vmatprep.mubr.bf16.mxu0 %v876
  %1037 = vmatmul.mubr.bf16.gmra.mrb[0].mxu0 %v875
  %v1038 = vpop.f32.mrb[0].mxu0
  %v1039 = vadd.f32 0.0, %v1038
  %v1040 = vpop.f32.mrb[0].mxu0
  %v1041 = vpop.f32.mrb[0].mxu0
  %v1042 = vpop.f32.mrb[0].mxu0
  %1043 = vdwg.mxu0
  %1044 = vmatprep.subr.bf16.mxu0 0
  %1045 = vmatpush1.bf16.msra.mxu0 %v970
  %1046 = vmatprep.subr.bf16.mxu0 0
  %1047 = vmatpush1.bf16.msra.mxu0 %v971
  %1048 = vmatprep.subr.bf16.mxu0 0
  %1049 = vmatpush1.bf16.msra.mxu0 0
  %1050 = vmatprep.subr.bf16.mxu0 0
  %1051 = vmatpush1.bf16.msra.mxu0 0
  %1052 = vmatprep.subr.bf16.mxu0 0
  %1053 = vmatpush1.bf16.msra.mxu0 0
  %1054 = vmatprep.subr.bf16.mxu0 0
  %1055 = vmatpush1.bf16.msra.mxu0 0
  %1056 = vmatprep.subr.bf16.mxu0 0
  %1057 = vmatpush1.bf16.msra.mxu0 0
  %1058 = vmatprep.subr.bf16.mxu0 0
  %1059 = vmatpush1.bf16.msra.mxu0 0
  %1060 = vmatprep.subr.bf16.mxu0 0
  %1061 = vmatpush1.bf16.msra.mxu0 0
  %1062 = vmatprep.subr.bf16.mxu0 0
  %1063 = vmatpush1.bf16.msra.mxu0 0
  %1064 = vmatprep.subr.bf16.mxu0 0
  %1065 = vmatpush1.bf16.msra.mxu0 0
  %1066 = vmatprep.subr.bf16.mxu0 0
  %1067 = vmatpush1.bf16.msra.mxu0 0
  %1068 = vmatprep.subr.bf16.mxu0 0
  %1069 = vmatpush1.bf16.msra.mxu0 0
  %1070 = vmatprep.subr.bf16.mxu0 0
  %1071 = vmatpush1.bf16.msra.mxu0 0
  %1072 = vmatprep.subr.bf16.mxu0 0
  %1073 = vmatpush1.bf16.msra.mxu0 0
  %1074 = vmatprep.subr.bf16.mxu0 0
  %1075 = vmatpush1.bf16.msra.mxu0 0
  %1076 = vmatprep.mubr.bf16.mxu0 0
  %1077 = vmatmul.mubr.bf16.gmra.mrb[0].mxu0 %v991
  %v1078 = vpop.f32.mrb[0].mxu0
  %v1079 = vadd.f32 %v1031, %v1078
  %v1080 = vpop.f32.mrb[0].mxu0
  %v1081 = vpop.f32.mrb[0].mxu0
  %v1082 = vadd.f32 %v1034, %v1081
  %v1083 = vpop.f32.mrb[0].mxu0
  %1084 = vmatprep.mubr.bf16.mxu0 0
  %1085 = vmatmul.mubr.bf16.gmra.mrb[0].mxu0 %v994
  %v1086 = vpop.f32.mrb[0].mxu0
  %v1087 = vadd.f32 %v1039, %v1086
  %v1088 = vpop.f32.mrb[0].mxu0
  %v1089 = vpop.f32.mrb[0].mxu0
  %v1090 = vpop.f32.mrb[0].mxu0
  %1091 = vdwg.mxu0
  %v1092 = vld [vmem:[%s5] sm:$0x1]
  %v1093 = vld [vmem:[%s6] sm:$0x1]
  %v1094 = vsel %vm45, %v1079, 0.0
  %v1095 = vsel %vm45, %v1082, 0.0
  %v1096 = vadd.f32 %v1094, %v1095
  %v1097 = vsel %vm45, %v1087, 0.0
  %v1098 = vadd.f32 %v1096, %v1097
  %v1099 = vrot.slane %v1098, 4
  %v1100 = vadd.f32 %v1098, %v1099
  %v1101 = vrot.slane %v1100, 2
  %v1102 = vadd.f32 %v1100, %v1101
  %v1103 = vrot.slane %v1102, 1
  %v1104 = vadd.f32 %v1102, %v1103
  %v1105 = vmul.f32 %v1104, 0.055555556
  %v1106 = vsub.f32 %v1079, %v1105
  %v1107 = vsub.f32 %v1082, %v1105
  %v1108 = vsub.f32 %v1087, %v1105
  %v1109 = vmul.f32 %v1106, %v1106
  %v1110 = vmul.f32 %v1107, %v1107
  %v1111 = vmul.f32 %v1108, %v1108
  %v1112 = vsel %vm45, %v1109, 0.0
  %v1113 = vsel %vm45, %v1110, 0.0
  %v1114 = vadd.f32 %v1112, %v1113
  %v1115 = vsel %vm45, %v1111, 0.0
  %v1116 = vadd.f32 %v1114, %v1115
  %v1117 = vrot.slane %v1116, 4
  %v1118 = vadd.f32 %v1116, %v1117
  %v1119 = vrot.slane %v1118, 2
  %v1120 = vadd.f32 %v1118, %v1119
  %v1121 = vrot.slane %v1120, 1
  %v1122 = vadd.f32 %v1120, %v1121
  %v1123 = vmul.f32 %v1105, 6.0
  %v1124 = vmul.f32 %v1123, %v1105
  %v1125 = vsub.f32 %v1122, %v1124
  %v1126 = vmul.f32 %v1125, 0.055555556
  %v1127 = vadd.f32 %v1126, 1e-05
  %v1128 = vrsqrt.pop %v1127
  %v1129 = vmul.f32 %v1092, %v1128
  %v1131 = vlaneseq
  %v1132 = vshrl.u32 %v1131, 7
  %v1133 = vsub.s32 0, %v1132
  %v1134 = vrot.slane %v1129, %v1133
  %v1136 = vmul.f32 %v1106, %v1134
  %v1137 = vmul.f32 %v1107, %v1134
  %v1138 = vmul.f32 %v1108, %v1134
  %v1140 = vlaneseq
  %v1141 = vshrl.u32 %v1140, 7
  %v1142 = vsub.s32 0, %v1141
  %v1143 = vrot.slane %v1093, %v1142
  %v1145 = vadd.f32 %v1136, %v1143
  %v1146 = vadd.f32 %v1137, %v1143
  %v1147 = vadd.f32 %v1138, %v1143
  %v1148 = vmax.f32 %v1145, 0.0
  %v1149 = vmax.f32 %v1146, 0.0
  %v1150 = vmax.f32 %v1147, 0.0
  %s1151 = scalar_lea.vmem %s4, 144
  %v1152 = vld [vmem:[%s1151] sm:$0xf]
  %v1153 = vld [vmem:[%s1151 + $0x4] sm:$0xf]
  %v1154 = vld [vmem:[%s1151 + $0x8] sm:$0xf]
  %v1155 = vld [vmem:[%s1151 + $0xc] sm:$0xf]
  %v1156 = vld [vmem:[%s1151 + $0x10] sm:$0xf]
  %v1157 = vld [vmem:[%s1151 + $0x14] sm:$0xf]
  %v1158 = vld [vmem:[%s1151 + $0x18] sm:$0xf]
  %v1159 = vld [vmem:[%s1151 + $0x1c] sm:$0xf]
  %v1160 = vld [vmem:[%s1151 + $0x20] sm:$0xf]
  %v1161 = vld [vmem:[%s1151 + $0x24] sm:$0xf]
  %v1162 = vld [vmem:[%s1151 + $0x28] sm:$0xf]
  %v1163 = vld [vmem:[%s1151 + $0x2c] sm:$0xf]
  %v1164 = vld [vmem:[%s1151 + $0x30] sm:$0xf]
  %v1165 = vld [vmem:[%s1151 + $0x34] sm:$0xf]
  %v1166 = vld [vmem:[%s1151 + $0x38] sm:$0xf]
  %v1167 = vld [vmem:[%s1151 + $0x3c] sm:$0xf]
  %v1168 = vld [vmem:[%s1151 + $0x40] sm:$0xf]
  %v1169 = vld [vmem:[%s1151 + $0x44] sm:$0xf]
  %v1170 = vld [vmem:[%s1151 + $0x48] sm:$0xf]
  %v1171 = vld [vmem:[%s1151 + $0x4c] sm:$0xf]
  %v1172 = vld [vmem:[%s1151 + $0x50] sm:$0xf]
  %v1173 = vld [vmem:[%s1151 + $0x54] sm:$0xf]
  %v1174 = vld [vmem:[%s1151 + $0x58] sm:$0xf]
  %v1175 = vld [vmem:[%s1151 + $0x5c] sm:$0xf]
  %v1176 = vld [vmem:[%s1151 + $0x60] sm:$0xf]
  %v1177 = vld [vmem:[%s1151 + $0x64] sm:$0xf]
  %v1178 = vld [vmem:[%s1151 + $0x68] sm:$0xf]
  %v1179 = vld [vmem:[%s1151 + $0x6c] sm:$0xf]
  %v1180 = vld [vmem:[%s1151 + $0x70] sm:$0xf]
  %v1181 = vld [vmem:[%s1151 + $0x74] sm:$0xf]
  %v1182 = vld [vmem:[%s1151 + $0x78] sm:$0xf]
  %v1183 = vld [vmem:[%s1151 + $0x7c] sm:$0xf]
  %v1184 = vld [vmem:[%s1151 + $0x80] sm:$0xf]
  %v1185 = vld [vmem:[%s1151 + $0x84] sm:$0xf]
  %v1186 = vld [vmem:[%s1151 + $0x88] sm:$0xf]
  %v1187 = vld [vmem:[%s1151 + $0x8c] sm:$0xf]
  %1188 = vst.msk [vmem:[#allocation2 + $0x8] sm:$0xff] %vm45, %v1148
  %1189 = vst.msk [vmem:[#allocation2 + $0x10] sm:$0xff] %vm45, %v1149
  %1190 = vst.msk [vmem:[#allocation2 + $0x18] sm:$0xff] %vm45, %v1150
  %v1191 = vld [vmem:[#allocation2 + $0x4] sm:$0xff]
  %v1192 = vld [vmem:[#allocation2 + $0xc] sm:$0xff]
  %v1193 = vld [vmem:[#allocation2 + $0x14] sm:$0xff]
  %v1194 = vmul.f32 %v71, %v1191
  %v1195 = vmul.f32 %v76, %v1192
  %v1196 = vmul.f32 %v81, %v1193
  %v1197 = vpack.c.bf16 %v1195, %v1194
  %v1198 = vpack.c.bf16 %v1196, %v1196
  %v1201 = vunpack.c.l.b16 %v1197
  %v1202 = vunpack.c.h.b16 %v1197
  %v1203 = vunpack.c.l.b16 %v1198
  %v1204 = vpack.c.b16 %v1201, %v1201
  %v1205 = vpack.c.b16 %v1202, %v1202
  %v1206 = vpack.c.b16 %v1203, %v1203
  %1210 = vst.msk [vmem:[#allocation3] sm:$0xf] %vm632, %v1204
  %1211 = vst.msk [vmem:[#allocation3 + $0xc] sm:$0xf] %vm632, %v1205
  %1212 = vst.msk [vmem:[#allocation3 + $0x18] sm:$0xf] %vm632, %v1206
  %v1213 = vld [vmem:[#allocation2 + $0x5] sm:$0xff]
  %v1214 = vld [vmem:[#allocation2 + $0xd] sm:$0xff]
  %v1215 = vld [vmem:[#allocation2 + $0x15] sm:$0xff]
  %v1216 = vmul.f32 %v108, %v1213
  %v1217 = vmul.f32 %v112, %v1214
  %v1218 = vmul.f32 %v116, %v1215
  %v1219 = vpack.c.bf16 %v1217, %v1216
  %v1220 = vpack.c.bf16 %v1218, %v1218
  %v1223 = vunpack.c.l.b16 %v1219
  %v1224 = vunpack.c.h.b16 %v1219
  %v1225 = vunpack.c.l.b16 %v1220
  %v1226 = vpack.c.b16 %v1223, %v1223
  %v1227 = vpack.c.b16 %v1224, %v1224
  %v1228 = vpack.c.b16 %v1225, %v1225
  %1229 = vrot.lane.b32.xlu0 %v1226, 32
  %v1230 = vpop.permute.xlu0 %1229
  %1231 = vrot.lane.b32.xlu0 %v1227, 32
  %v1232 = vpop.permute.xlu0 %1231
  %1233 = vrot.lane.b32.xlu0 %v1228, 32
  %v1234 = vpop.permute.xlu0 %1233
  %1238 = vst.msk [vmem:[#allocation3] sm:$0xf] %vm661, %v1230
  %1239 = vst.msk [vmem:[#allocation3 + $0xc] sm:$0xf] %vm661, %v1232
  %1240 = vst.msk [vmem:[#allocation3 + $0x18] sm:$0xf] %vm661, %v1234
  %v1241 = vld [vmem:[#allocation2 + $0x6] sm:$0xff]
  %v1242 = vld [vmem:[#allocation2 + $0xe] sm:$0xff]
  %v1243 = vld [vmem:[#allocation2 + $0x16] sm:$0xff]
  %v1244 = vmul.f32 %v149, %v1241
  %v1245 = vmul.f32 %v153, %v1242
  %v1246 = vmul.f32 %v157, %v1243
  %v1247 = vpack.c.bf16 %v1245, %v1244
  %v1248 = vpack.c.bf16 %v1246, %v1246
  %v1251 = vunpack.c.l.b16 %v1247
  %v1252 = vunpack.c.h.b16 %v1247
  %v1253 = vunpack.c.l.b16 %v1248
  %v1254 = vpack.c.b16 %v1251, %v1251
  %v1255 = vpack.c.b16 %v1252, %v1252
  %v1256 = vpack.c.b16 %v1253, %v1253
  %1257 = vrot.lane.b32.xlu0 %v1254, 64
  %v1258 = vpop.permute.xlu0 %1257
  %1259 = vrot.lane.b32.xlu0 %v1255, 64
  %v1260 = vpop.permute.xlu0 %1259
  %1261 = vrot.lane.b32.xlu0 %v1256, 64
  %v1262 = vpop.permute.xlu0 %1261
  %1266 = vst.msk [vmem:[#allocation3] sm:$0xf] %vm690, %v1258
  %1267 = vst.msk [vmem:[#allocation3 + $0xc] sm:$0xf] %vm690, %v1260
  %1268 = vst.msk [vmem:[#allocation3 + $0x18] sm:$0xf] %vm690, %v1262
  %v1269 = vld [vmem:[#allocation2 + $0x7] sm:$0xff]
  %v1270 = vld [vmem:[#allocation2 + $0xf] sm:$0xff]
  %v1271 = vld [vmem:[#allocation2 + $0x17] sm:$0xff]
  %v1272 = vmul.f32 %v190, %v1269
  %v1273 = vmul.f32 %v194, %v1270
  %v1274 = vmul.f32 %v198, %v1271
  %v1275 = vpack.c.bf16 %v1273, %v1272
  %v1276 = vpack.c.bf16 %v1274, %v1274
  %v1279 = vunpack.c.l.b16 %v1275
  %v1280 = vunpack.c.h.b16 %v1275
  %v1281 = vunpack.c.l.b16 %v1276
  %v1282 = vpack.c.b16 %v1279, %v1279
  %v1283 = vpack.c.b16 %v1280, %v1280
  %v1284 = vpack.c.b16 %v1281, %v1281
  %1285 = vrot.lane.b32.xlu0 %v1282, 96
  %v1286 = vpop.permute.xlu0 %1285
  %1287 = vrot.lane.b32.xlu0 %v1283, 96
  %v1288 = vpop.permute.xlu0 %1287
  %1289 = vrot.lane.b32.xlu0 %v1284, 96
  %v1290 = vpop.permute.xlu0 %1289
  %1294 = vst.msk [vmem:[#allocation3] sm:$0xf] %vm719, %v1286
  %1295 = vst.msk [vmem:[#allocation3 + $0xc] sm:$0xf] %vm719, %v1288
  %1296 = vst.msk [vmem:[#allocation3 + $0x18] sm:$0xf] %vm719, %v1290
  %v1297 = vld [vmem:[#allocation2 + $0x8] sm:$0xff]
  %v1298 = vld [vmem:[#allocation2 + $0x10] sm:$0xff]
  %v1299 = vld [vmem:[#allocation2 + $0x18] sm:$0xff]
  %v1300 = vmul.f32 %v231, %v1297
  %v1301 = vmul.f32 %v235, %v1298
  %v1302 = vmul.f32 %v239, %v1299
  %v1303 = vpack.c.bf16 %v1301, %v1300
  %v1304 = vpack.c.bf16 %v1302, %v1302
  %v1307 = vunpack.c.l.b16 %v1303
  %v1308 = vunpack.c.h.b16 %v1303
  %v1309 = vunpack.c.l.b16 %v1304
  %v1310 = vpack.c.b16 %v1307, %v1307
  %v1311 = vpack.c.b16 %v1308, %v1308
  %v1312 = vpack.c.b16 %v1309, %v1309
  %1316 = vst.msk [vmem:[#allocation3 + $0x4] sm:$0xf] %vm632, %v1310
  %1317 = vst.msk [vmem:[#allocation3 + $0x10] sm:$0xf] %vm632, %v1311
  %1318 = vst.msk [vmem:[#allocation3 + $0x1c] sm:$0xf] %vm632, %v1312
  %v1319 = vld [vmem:[#allocation2 + $0x9] sm:$0xff]
  %v1320 = vld [vmem:[#allocation2 + $0x11] sm:$0xff]
  %v1321 = vld [vmem:[#allocation2 + $0x19] sm:$0xff]
  %v1322 = vmul.f32 %v272, %v1319
  %v1323 = vmul.f32 %v276, %v1320
  %v1324 = vmul.f32 %v280, %v1321
  %v1325 = vpack.c.bf16 %v1323, %v1322
  %v1326 = vpack.c.bf16 %v1324, %v1324
  %v1329 = vunpack.c.l.b16 %v1325
  %v1330 = vunpack.c.h.b16 %v1325
  %v1331 = vunpack.c.l.b16 %v1326
  %v1332 = vpack.c.b16 %v1329, %v1329
  %v1333 = vpack.c.b16 %v1330, %v1330
  %v1334 = vpack.c.b16 %v1331, %v1331
  %1335 = vrot.lane.b32.xlu0 %v1332, 32
  %v1336 = vpop.permute.xlu0 %1335
  %1337 = vrot.lane.b32.xlu0 %v1333, 32
  %v1338 = vpop.permute.xlu0 %1337
  %1339 = vrot.lane.b32.xlu0 %v1334, 32
  %v1340 = vpop.permute.xlu0 %1339
  %1344 = vst.msk [vmem:[#allocation3 + $0x4] sm:$0xf] %vm661, %v1336
  %1345 = vst.msk [vmem:[#allocation3 + $0x10] sm:$0xf] %vm661, %v1338
  %1346 = vst.msk [vmem:[#allocation3 + $0x1c] sm:$0xf] %vm661, %v1340
  %v1347 = vld [vmem:[#allocation2 + $0xa] sm:$0xff]
  %v1348 = vld [vmem:[#allocation2 + $0x12] sm:$0xff]
  %v1349 = vld [vmem:[#allocation2 + $0x1a] sm:$0xff]
  %v1350 = vmul.f32 %v313, %v1347
  %v1351 = vmul.f32 %v317, %v1348
  %v1352 = vmul.f32 %v321, %v1349
  %v1353 = vpack.c.bf16 %v1351, %v1350
  %v1354 = vpack.c.bf16 %v1352, %v1352
  %v1357 = vunpack.c.l.b16 %v1353
  %v1358 = vunpack.c.h.b16 %v1353
  %v1359 = vunpack.c.l.b16 %v1354
  %v1360 = vpack.c.b16 %v1357, %v1357
  %v1361 = vpack.c.b16 %v1358, %v1358
  %v1362 = vpack.c.b16 %v1359, %v1359
  %1363 = vrot.lane.b32.xlu0 %v1360, 64
  %v1364 = vpop.permute.xlu0 %1363
  %1365 = vrot.lane.b32.xlu0 %v1361, 64
  %v1366 = vpop.permute.xlu0 %1365
  %1367 = vrot.lane.b32.xlu0 %v1362, 64
  %v1368 = vpop.permute.xlu0 %1367
  %1372 = vst.msk [vmem:[#allocation3 + $0x4] sm:$0xf] %vm690, %v1364
  %1373 = vst.msk [vmem:[#allocation3 + $0x10] sm:$0xf] %vm690, %v1366
  %1374 = vst.msk [vmem:[#allocation3 + $0x1c] sm:$0xf] %vm690, %v1368
  %v1375 = vld [vmem:[#allocation2 + $0xb] sm:$0xff]
  %v1376 = vld [vmem:[#allocation2 + $0x13] sm:$0xff]
  %v1377 = vld [vmem:[#allocation2 + $0x1b] sm:$0xff]
  %v1378 = vmul.f32 %v354, %v1375
  %v1379 = vmul.f32 %v358, %v1376
  %v1380 = vmul.f32 %v362, %v1377
  %v1381 = vpack.c.bf16 %v1379, %v1378
  %v1382 = vpack.c.bf16 %v1380, %v1380
  %v1385 = vunpack.c.l.b16 %v1381
  %v1386 = vunpack.c.h.b16 %v1381
  %v1387 = vunpack.c.l.b16 %v1382
  %v1388 = vpack.c.b16 %v1385, %v1385
  %v1389 = vpack.c.b16 %v1386, %v1386
  %v1390 = vpack.c.b16 %v1387, %v1387
  %1391 = vrot.lane.b32.xlu0 %v1388, 96
  %v1392 = vpop.permute.xlu0 %1391
  %1393 = vrot.lane.b32.xlu0 %v1389, 96
  %v1394 = vpop.permute.xlu0 %1393
  %1395 = vrot.lane.b32.xlu0 %v1390, 96
  %v1396 = vpop.permute.xlu0 %1395
  %1400 = vst.msk [vmem:[#allocation3 + $0x4] sm:$0xf] %vm719, %v1392
  %1401 = vst.msk [vmem:[#allocation3 + $0x10] sm:$0xf] %vm719, %v1394
  %1402 = vst.msk [vmem:[#allocation3 + $0x1c] sm:$0xf] %vm719, %v1396
  %v1403 = vld [vmem:[#allocation2 + $0xc] sm:$0xff]
  %v1404 = vld [vmem:[#allocation2 + $0x14] sm:$0xff]
  %v1405 = vld [vmem:[#allocation2 + $0x1c] sm:$0xff]
  %v1406 = vmul.f32 %v395, %v1403
  %v1407 = vmul.f32 %v399, %v1404
  %v1408 = vmul.f32 %v403, %v1405
  %v1409 = vpack.c.bf16 %v1407, %v1406
  %v1410 = vpack.c.bf16 %v1408, %v1408
  %v1413 = vunpack.c.l.b16 %v1409
  %v1414 = vunpack.c.h.b16 %v1409
  %v1415 = vunpack.c.l.b16 %v1410
  %v1416 = vpack.c.b16 %v1413, %v1413
  %v1417 = vpack.c.b16 %v1414, %v1414
  %v1418 = vpack.c.b16 %v1415, %v1415
  %1422 = vst.msk [vmem:[#allocation3 + $0x8] sm:$0xf] %vm632, %v1416
  %1423 = vst.msk [vmem:[#allocation3 + $0x14] sm:$0xf] %vm632, %v1417
  %1424 = vst.msk [vmem:[#allocation3 + $0x20] sm:$0xf] %vm632, %v1418
  %v1425 = vld [vmem:[#allocation3] sm:$0xff]
  %v1426 = vld [vmem:[#allocation3 + $0x8] sm:$0xf]
  %v1427 = vld [vmem:[#allocation3 + $0xc] sm:$0xff]
  %v1428 = vld [vmem:[#allocation3 + $0x14] sm:$0xf]
  %v1429 = vld [vmem:[#allocation3 + $0x18] sm:$0xff]
  %v1430 = vld [vmem:[#allocation3 + $0x20] sm:$0xf]
  %v1437 = vunpack.c.l.b16 %v1425
  %v1438 = vunpack.c.h.b16 %v1425
  %v1439 = vunpack.c.l.b16 %v1426
  %v1440 = vunpack.c.l.b16 %v1427
  %v1441 = vunpack.c.h.b16 %v1427
  %v1442 = vunpack.c.l.b16 %v1428
  %v1443 = vunpack.c.l.b16 %v1429
  %v1444 = vunpack.c.h.b16 %v1429
  %v1445 = vunpack.c.l.b16 %v1430
  %v1446 = vpack.c.b16 %v1440, %v1437
  %v1447 = vpack.c.b16 %v1441, %v1438
  %v1448 = vpack.c.b16 %v1442, %v1439
  %v1449 = vpack.c.b16 %v1443, %v1443
  %v1450 = vpack.c.b16 %v1444, %v1444
  %v1451 = vpack.c.b16 %v1445, %v1445
  %v1492 = vunpack.c.l.b16 %v1152
  %v1493 = vunpack.c.l.b16 %v1153
  %v1494 = vunpack.c.l.b16 %v1154
  %v1495 = vunpack.c.l.b16 %v1155
  %v1496 = vunpack.c.l.b16 %v1156
  %v1497 = vunpack.c.l.b16 %v1157
  %v1498 = vunpack.c.l.b16 %v1158
  %v1499 = vunpack.c.l.b16 %v1159
  %v1500 = vunpack.c.l.b16 %v1160
  %v1501 = vunpack.c.l.b16 %v1161
  %v1502 = vunpack.c.l.b16 %v1162
  %v1503 = vunpack.c.l.b16 %v1163
  %v1504 = vunpack.c.l.b16 %v1164
  %v1505 = vunpack.c.l.b16 %v1165
  %v1506 = vunpack.c.l.b16 %v1166
  %v1507 = vunpack.c.l.b16 %v1167
  %v1508 = vunpack.c.l.b16 %v1168
  %v1509 = vunpack.c.l.b16 %v1169
  %v1510 = vunpack.c.l.b16 %v1170
  %v1511 = vunpack.c.l.b16 %v1171
  %v1512 = vunpack.c.l.b16 %v1172
  %v1513 = vunpack.c.l.b16 %v1173
  %v1514 = vunpack.c.l.b16 %v1174
  %v1515 = vunpack.c.l.b16 %v1175
  %v1516 = vunpack.c.l.b16 %v1176
  %v1517 = vunpack.c.l.b16 %v1177
  %v1518 = vunpack.c.l.b16 %v1178
  %v1519 = vunpack.c.l.b16 %v1179
  %v1520 = vunpack.c.l.b16 %v1180
  %v1521 = vunpack.c.l.b16 %v1181
  %v1522 = vunpack.c.l.b16 %v1182
  %v1523 = vunpack.c.l.b16 %v1183
  %v1524 = vunpack.c.l.b16 %v1184
  %v1525 = vunpack.c.l.b16 %v1185
  %v1526 = vunpack.c.l.b16 %v1186
  %v1527 = vunpack.c.l.b16 %v1187
  %v1528 = vpack.c.b16 %v1493, %v1492
  %v1529 = vpack.c.b16 %v1495, %v1494
  %v1530 = vpack.c.b16 %v1497, %v1496
  %v1531 = vpack.c.b16 %v1499, %v1498
  %v1532 = vpack.c.b16 %v1501, %v1500
  %v1533 = vpack.c.b16 %v1503, %v1502
  %v1534 = vpack.c.b16 %v1505, %v1504
  %v1535 = vpack.c.b16 %v1507, %v1506
  %v1536 = vpack.c.b16 %v1509, %v1508
  %v1537 = vpack.c.b16 %v1511, %v1510
  %v1538 = vpack.c.b16 %v1513, %v1512
  %v1539 = vpack.c.b16 %v1515, %v1514
  %v1540 = vpack.c.b16 %v1517, %v1516
  %v1541 = vpack.c.b16 %v1519, %v1518
  %v1542 = vpack.c.b16 %v1521, %v1520
  %v1543 = vpack.c.b16 %v1523, %v1522
  %v1544 = vpack.c.b16 %v1525, %v1524
  %v1545 = vpack.c.b16 %v1527, %v1526
  %v1565 = vsel %vm45, %v1448, 0
  %v1568 = vsel %vm45, %v1451, 0
  %1570 = vmatprep.subr.bf16.mxu0 0
  %1571 = vmatpush1.bf16.msra.mxu0 %v1528
  %1572 = vmatprep.subr.bf16.mxu0 0
  %1573 = vmatpush1.bf16.msra.mxu0 %v1529
  %1574 = vmatprep.subr.bf16.mxu0 0
  %1575 = vmatpush1.bf16.msra.mxu0 %v1530
  %1576 = vmatprep.subr.bf16.mxu0 0
  %1577 = vmatpush1.bf16.msra.mxu0 %v1531
  %1578 = vmatprep.subr.bf16.mxu0 0
  %1579 = vmatpush1.bf16.msra.mxu0 %v1532
  %1580 = vmatprep.subr.bf16.mxu0 0
  %1581 = vmatpush1.bf16.msra.mxu0 %v1533
  %1582 = vmatprep.subr.bf16.mxu0 0
  %1583 = vmatpush1.bf16.msra.mxu0 %v1534
  %1584 = vmatprep.subr.bf16.mxu0 0
  %1585 = vmatpush1.bf16.msra.mxu0 %v1535
  %1586 = vmatprep.subr.bf16.mxu0 0
  %1587 = vmatpush1.bf16.msra.mxu0 %v1536
  %1588 = vmatprep.subr.bf16.mxu0 0
  %1589 = vmatpush1.bf16.msra.mxu0 %v1537
  %1590 = vmatprep.subr.bf16.mxu0 0
  %1591 = vmatpush1.bf16.msra.mxu0 %v1538
  %1592 = vmatprep.subr.bf16.mxu0 0
  %1593 = vmatpush1.bf16.msra.mxu0 %v1539
  %1594 = vmatprep.subr.bf16.mxu0 0
  %1595 = vmatpush1.bf16.msra.mxu0 %v1540
  %1596 = vmatprep.subr.bf16.mxu0 0
  %1597 = vmatpush1.bf16.msra.mxu0 %v1541
  %1598 = vmatprep.subr.bf16.mxu0 0
  %1599 = vmatpush1.bf16.msra.mxu0 %v1542
  %1600 = vmatprep.subr.bf16.mxu0 0
  %1601 = vmatpush1.bf16.msra.mxu0 %v1543
  %1602 = vmatprep.mubr.bf16.mxu0 %v1447
  %1603 = vmatmul.mubr.bf16.gmra.mrb[0].mxu0 %v1446
  %v1604 = vpop.f32.mrb[0].mxu0
  %v1605 = vadd.f32 0.0, %v1604
  %v1606 = vpop.f32.mrb[0].mxu0
  %v1607 = vpop.f32.mrb[0].mxu0
  %v1608 = vadd.f32 0.0, %v1607
  %v1609 = vpop.f32.mrb[0].mxu0
  %1610 = vmatprep.mubr.bf16.mxu0 %v1450
  %1611 = vmatmul.mubr.bf16.gmra.mrb[0].mxu0 %v1449
  %v1612 = vpop.f32.mrb[0].mxu0
  %v1613 = vadd.f32 0.0, %v1612
  %v1614 = vpop.f32.mrb[0].mxu0
  %v1615 = vpop.f32.mrb[0].mxu0
  %v1616 = vpop.f32.mrb[0].mxu0
  %1617 = vdwg.mxu0
  %1618 = vmatprep.subr.bf16.mxu0 0
  %1619 = vmatpush1.bf16.msra.mxu0 %v1544
  %1620 = vmatprep.subr.bf16.mxu0 0
  %1621 = vmatpush1.bf16.msra.mxu0 %v1545
  %1622 = vmatprep.subr.bf16.mxu0 0
  %1623 = vmatpush1.bf16.msra.mxu0 0
  %1624 = vmatprep.subr.bf16.mxu0 0
  %1625 = vmatpush1.bf16.msra.mxu0 0
  %1626 = vmatprep.subr.bf16.mxu0 0
  %1627 = vmatpush1.bf16.msra.mxu0 0
  %1628 = vmatprep.subr.bf16.mxu0 0
  %1629 = vmatpush1.bf16.msra.mxu0 0
  %1630 = vmatprep.subr.bf16.mxu0 0
  %1631 = vmatpush1.bf16.msra.mxu0 0
  %1632 = vmatprep.subr.bf16.mxu0 0
  %1633 = vmatpush1.bf16.msra.mxu0 0
  %1634 = vmatprep.subr.bf16.mxu0 0
  %1635 = vmatpush1.bf16.msra.mxu0 0
  %1636 = vmatprep.subr.bf16.mxu0 0
  %1637 = vmatpush1.bf16.msra.mxu0 0
  %1638 = vmatprep.subr.bf16.mxu0 0
  %1639 = vmatpush1.bf16.msra.mxu0 0
  %1640 = vmatprep.subr.bf16.mxu0 0
  %1641 = vmatpush1.bf16.msra.mxu0 0
  %1642 = vmatprep.subr.bf16.mxu0 0
  %1643 = vmatpush1.bf16.msra.mxu0 0
  %1644 = vmatprep.subr.bf16.mxu0 0
  %1645 = vmatpush1.bf16.msra.mxu0 0
  %1646 = vmatprep.subr.bf16.mxu0 0
  %1647 = vmatpush1.bf16.msra.mxu0 0
  %1648 = vmatprep.subr.bf16.mxu0 0
  %1649 = vmatpush1.bf16.msra.mxu0 0
  %1650 = vmatprep.mubr.bf16.mxu0 0
  %1651 = vmatmul.mubr.bf16.gmra.mrb[0].mxu0 %v1565
  %v1652 = vpop.f32.mrb[0].mxu0
  %v1653 = vadd.f32 %v1605, %v1652
  %v1654 = vpop.f32.mrb[0].mxu0
  %v1655 = vpop.f32.mrb[0].mxu0
  %v1656 = vadd.f32 %v1608, %v1655
  %v1657 = vpop.f32.mrb[0].mxu0
  %1658 = vmatprep.mubr.bf16.mxu0 0
  %1659 = vmatmul.mubr.bf16.gmra.mrb[0].mxu0 %v1568
  %v1660 = vpop.f32.mrb[0].mxu0
  %v1661 = vadd.f32 %v1613, %v1660
  %v1662 = vpop.f32.mrb[0].mxu0
  %v1663 = vpop.f32.mrb[0].mxu0
  %v1664 = vpop.f32.mrb[0].mxu0
  %1665 = vdwg.mxu0
  %s1666 = scalar_lea.vmem %s5, 1
  %v1667 = vld [vmem:[%s1666] sm:$0x1]
  %s1668 = scalar_lea.vmem %s6, 1
  %v1669 = vld [vmem:[%s1668] sm:$0x1]
  %v1670 = vsel %vm45, %v1653, 0.0
  %v1671 = vsel %vm45, %v1656, 0.0
  %v1672 = vadd.f32 %v1670, %v1671
  %v1673 = vsel %vm45, %v1661, 0.0
  %v1674 = vadd.f32 %v1672, %v1673
  %v1675 = vrot.slane %v1674, 4
  %v1676 = vadd.f32 %v1674, %v1675
  %v1677 = vrot.slane %v1676, 2
  %v1678 = vadd.f32 %v1676, %v1677
  %v1679 = vrot.slane %v1678, 1
  %v1680 = vadd.f32 %v1678, %v1679
  %v1681 = vmul.f32 %v1680, 0.055555556
  %v1682 = vsub.f32 %v1653, %v1681
  %v1683 = vsub.f32 %v1656, %v1681
  %v1684 = vsub.f32 %v1661, %v1681
  %v1685 = vmul.f32 %v1682, %v1682
  %v1686 = vmul.f32 %v1683, %v1683
  %v1687 = vmul.f32 %v1684, %v1684
  %v1688 = vsel %vm45, %v1685, 0.0
  %v1689 = vsel %vm45, %v1686, 0.0
  %v1690 = vadd.f32 %v1688, %v1689
  %v1691 = vsel %vm45, %v1687, 0.0
  %v1692 = vadd.f32 %v1690, %v1691
  %v1693 = vrot.slane %v1692, 4
  %v1694 = vadd.f32 %v1692, %v1693
  %v1695 = vrot.slane %v1694, 2
  %v1696 = vadd.f32 %v1694, %v1695
  %v1697 = vrot.slane %v1696, 1
  %v1698 = vadd.f32 %v1696, %v1697
  %v1699 = vmul.f32 %v1681, 6.0
  %v1700 = vmul.f32 %v1699, %v1681
  %v1701 = vsub.f32 %v1698, %v1700
  %v1702 = vmul.f32 %v1701, 0.055555556
  %v1703 = vadd.f32 %v1702, 1e-05
  %v1704 = vrsqrt.pop %v1703
  %v1705 = vmul.f32 %v1667, %v1704
  %v1707 = vlaneseq
  %v1708 = vshrl.u32 %v1707, 7
  %v1709 = vsub.s32 0, %v1708
  %v1710 = vrot.slane %v1705, %v1709
  %v1712 = vmul.f32 %v1682, %v1710
  %v1713 = vmul.f32 %v1683, %v1710
  %v1714 = vmul.f32 %v1684, %v1710
  %v1716 = vlaneseq
  %v1717 = vshrl.u32 %v1716, 7
  %v1718 = vsub.s32 0, %v1717
  %v1719 = vrot.slane %v1669, %v1718
  %v1721 = vadd.f32 %v1712, %v1719
  %v1722 = vadd.f32 %v1713, %v1719
  %v1723 = vadd.f32 %v1714, %v1719
  %v1724 = vadd.f32 %v1721, %v571
  %v1725 = vadd.f32 %v1722, %v572
  %v1726 = vadd.f32 %v1723, %v573
  %v1727 = vmax.f32 %v1724, 0.0
  %v1728 = vmax.f32 %v1725, 0.0
  %v1729 = vmax.f32 %v1726, 0.0
  %s1730 = scalar_lea.vmem %s4, 288
  %v1731 = vld [vmem:[%s1730] sm:$0xf]
  %v1732 = vld [vmem:[%s1730 + $0x4] sm:$0xf]
  %v1733 = vld [vmem:[%s1730 + $0x8] sm:$0xf]
  %v1734 = vld [vmem:[%s1730 + $0xc] sm:$0xf]
  %v1735 = vld [vmem:[%s1730 + $0x10] sm:$0xf]
  %v1736 = vld [vmem:[%s1730 + $0x14] sm:$0xf]
  %v1737 = vld [vmem:[%s1730 + $0x18] sm:$0xf]
  %v1738 = vld [vmem:[%s1730 + $0x1c] sm:$0xf]
  %v1739 = vld [vmem:[%s1730 + $0x20] sm:$0xf]
  %v1740 = vld [vmem:[%s1730 + $0x24] sm:$0xf]
  %v1741 = vld [vmem:[%s1730 + $0x28] sm:$0xf]
  %v1742 = vld [vmem:[%s1730 + $0x2c] sm:$0xf]
  %v1743 = vld [vmem:[%s1730 + $0x30] sm:$0xf]
  %v1744 = vld [vmem:[%s1730 + $0x34] sm:$0xf]
  %v1745 = vld [vmem:[%s1730 + $0x38] sm:$0xf]
  %v1746 = vld [vmem:[%s1730 + $0x3c] sm:$0xf]
  %v1747 = vld [vmem:[%s1730 + $0x40] sm:$0xf]
  %v1748 = vld [vmem:[%s1730 + $0x44] sm:$0xf]
  %v1749 = vld [vmem:[%s1730 + $0x48] sm:$0xf]
  %v1750 = vld [vmem:[%s1730 + $0x4c] sm:$0xf]
  %v1751 = vld [vmem:[%s1730 + $0x50] sm:$0xf]
  %v1752 = vld [vmem:[%s1730 + $0x54] sm:$0xf]
  %v1753 = vld [vmem:[%s1730 + $0x58] sm:$0xf]
  %v1754 = vld [vmem:[%s1730 + $0x5c] sm:$0xf]
  %v1755 = vld [vmem:[%s1730 + $0x60] sm:$0xf]
  %v1756 = vld [vmem:[%s1730 + $0x64] sm:$0xf]
  %v1757 = vld [vmem:[%s1730 + $0x68] sm:$0xf]
  %v1758 = vld [vmem:[%s1730 + $0x6c] sm:$0xf]
  %v1759 = vld [vmem:[%s1730 + $0x70] sm:$0xf]
  %v1760 = vld [vmem:[%s1730 + $0x74] sm:$0xf]
  %v1761 = vld [vmem:[%s1730 + $0x78] sm:$0xf]
  %v1762 = vld [vmem:[%s1730 + $0x7c] sm:$0xf]
  %v1763 = vld [vmem:[%s1730 + $0x80] sm:$0xf]
  %v1764 = vld [vmem:[%s1730 + $0x84] sm:$0xf]
  %v1765 = vld [vmem:[%s1730 + $0x88] sm:$0xf]
  %v1766 = vld [vmem:[%s1730 + $0x8c] sm:$0xf]
  %1767 = vst.msk [vmem:[#allocation2 + $0x8] sm:$0xff] %vm45, %v1727
  %1768 = vst.msk [vmem:[#allocation2 + $0x10] sm:$0xff] %vm45, %v1728
  %1769 = vst.msk [vmem:[#allocation2 + $0x18] sm:$0xff] %vm45, %v1729
  %v1770 = vld [vmem:[#allocation2 + $0x4] sm:$0xff]
  %v1771 = vld [vmem:[#allocation2 + $0xc] sm:$0xff]
  %v1772 = vld [vmem:[#allocation2 + $0x14] sm:$0xff]
  %v1773 = vmul.f32 %v71, %v1770
  %v1774 = vmul.f32 %v76, %v1771
  %v1775 = vmul.f32 %v81, %v1772
  %v1776 = vpack.c.bf16 %v1774, %v1773
  %v1777 = vpack.c.bf16 %v1775, %v1775
  %v1780 = vunpack.c.l.b16 %v1776
  %v1781 = vunpack.c.h.b16 %v1776
  %v1782 = vunpack.c.l.b16 %v1777
  %v1783 = vpack.c.b16 %v1780, %v1780
  %v1784 = vpack.c.b16 %v1781, %v1781
  %v1785 = vpack.c.b16 %v1782, %v1782
  %1789 = vst.msk [vmem:[#allocation3] sm:$0xf] %vm632, %v1783
  %1790 = vst.msk [vmem:[#allocation3 + $0xc] sm:$0xf] %vm632, %v1784
  %1791 = vst.msk [vmem:[#allocation3 + $0x18] sm:$0xf] %vm632, %v1785
  %v1792 = vld [vmem:[#allocation2 + $0x5] sm:$0xff]
  %v1793 = vld [vmem:[#allocation2 + $0xd] sm:$0xff]
  %v1794 = vld [vmem:[#allocation2 + $0x15] sm:$0xff]
  %v1795 = vmul.f32 %v108, %v1792
  %v1796 = vmul.f32 %v112, %v1793
  %v1797 = vmul.f32 %v116, %v1794
  %v1798 = vpack.c.bf16 %v1796, %v1795
  %v1799 = vpack.c.bf16 %v1797, %v1797
  %v1802 = vunpack.c.l.b16 %v1798
  %v1803 = vunpack.c.h.b16 %v1798
  %v1804 = vunpack.c.l.b16 %v1799
  %v1805 = vpack.c.b16 %v1802, %v1802
  %v1806 = vpack.c.b16 %v1803, %v1803
  %v1807 = vpack.c.b16 %v1804, %v1804
  %1808 = vrot.lane.b32.xlu0 %v1805, 32
  %v1809 = vpop.permute.xlu0 %1808
  %1810 = vrot.lane.b32.xlu0 %v1806, 32
  %v1811 = vpop.permute.xlu0 %1810
  %1812 = vrot.lane.b32.xlu0 %v1807, 32
  %v1813 = vpop.permute.xlu0 %1812
  %1817 = vst.msk [vmem:[#allocation3] sm:$0xf] %vm661, %v1809
  %1818 = vst.msk [vmem:[#allocation3 + $0xc] sm:$0xf] %vm661, %v1811
  %1819 = vst.msk [vmem:[#allocation3 + $0x18] sm:$0xf] %vm661, %v1813
  %v1820 = vld [vmem:[#allocation2 + $0x6] sm:$0xff]
  %v1821 = vld [vmem:[#allocation2 + $0xe] sm:$0xff]
  %v1822 = vld [vmem:[#allocation2 + $0x16] sm:$0xff]
  %v1823 = vmul.f32 %v149, %v1820
  %v1824 = vmul.f32 %v153, %v1821
  %v1825 = vmul.f32 %v157, %v1822
  %v1826 = vpack.c.bf16 %v1824, %v1823
  %v1827 = vpack.c.bf16 %v1825, %v1825
  %v1830 = vunpack.c.l.b16 %v1826
  %v1831 = vunpack.c.h.b16 %v1826
  %v1832 = vunpack.c.l.b16 %v1827
  %v1833 = vpack.c.b16 %v1830, %v1830
  %v1834 = vpack.c.b16 %v1831, %v1831
  %v1835 = vpack.c.b16 %v1832, %v1832
  %1836 = vrot.lane.b32.xlu0 %v1833, 64
  %v1837 = vpop.permute.xlu0 %1836
  %1838 = vrot.lane.b32.xlu0 %v1834, 64
  %v1839 = vpop.permute.xlu0 %1838
  %1840 = vrot.lane.b32.xlu0 %v1835, 64
  %v1841 = vpop.permute.xlu0 %1840
  %1845 = vst.msk [vmem:[#allocation3] sm:$0xf] %vm690, %v1837
  %1846 = vst.msk [vmem:[#allocation3 + $0xc] sm:$0xf] %vm690, %v1839
  %1847 = vst.msk [vmem:[#allocation3 + $0x18] sm:$0xf] %vm690, %v1841
  %v1848 = vld [vmem:[#allocation2 + $0x7] sm:$0xff]
  %v1849 = vld [vmem:[#allocation2 + $0xf] sm:$0xff]
  %v1850 = vld [vmem:[#allocation2 + $0x17] sm:$0xff]
  %v1851 = vmul.f32 %v190, %v1848
  %v1852 = vmul.f32 %v194, %v1849
  %v1853 = vmul.f32 %v198, %v1850
  %v1854 = vpack.c.bf16 %v1852, %v1851
  %v1855 = vpack.c.bf16 %v1853, %v1853
  %v1858 = vunpack.c.l.b16 %v1854
  %v1859 = vunpack.c.h.b16 %v1854
  %v1860 = vunpack.c.l.b16 %v1855
  %v1861 = vpack.c.b16 %v1858, %v1858
  %v1862 = vpack.c.b16 %v1859, %v1859
  %v1863 = vpack.c.b16 %v1860, %v1860
  %1864 = vrot.lane.b32.xlu0 %v1861, 96
  %v1865 = vpop.permute.xlu0 %1864
  %1866 = vrot.lane.b32.xlu0 %v1862, 96
  %v1867 = vpop.permute.xlu0 %1866
  %1868 = vrot.lane.b32.xlu0 %v1863, 96
  %v1869 = vpop.permute.xlu0 %1868
  %1873 = vst.msk [vmem:[#allocation3] sm:$0xf] %vm719, %v1865
  %1874 = vst.msk [vmem:[#allocation3 + $0xc] sm:$0xf] %vm719, %v1867
  %1875 = vst.msk [vmem:[#allocation3 + $0x18] sm:$0xf] %vm719, %v1869
  %v1876 = vld [vmem:[#allocation2 + $0x8] sm:$0xff]
  %v1877 = vld [vmem:[#allocation2 + $0x10] sm:$0xff]
  %v1878 = vld [vmem:[#allocation2 + $0x18] sm:$0xff]
  %v1879 = vmul.f32 %v231, %v1876
  %v1880 = vmul.f32 %v235, %v1877
  %v1881 = vmul.f32 %v239, %v1878
  %v1882 = vpack.c.bf16 %v1880, %v1879
  %v1883 = vpack.c.bf16 %v1881, %v1881
  %v1886 = vunpack.c.l.b16 %v1882
  %v1887 = vunpack.c.h.b16 %v1882
  %v1888 = vunpack.c.l.b16 %v1883
  %v1889 = vpack.c.b16 %v1886, %v1886
  %v1890 = vpack.c.b16 %v1887, %v1887
  %v1891 = vpack.c.b16 %v1888, %v1888
  %1895 = vst.msk [vmem:[#allocation3 + $0x4] sm:$0xf] %vm632, %v1889
  %1896 = vst.msk [vmem:[#allocation3 + $0x10] sm:$0xf] %vm632, %v1890
  %1897 = vst.msk [vmem:[#allocation3 + $0x1c] sm:$0xf] %vm632, %v1891
  %v1898 = vld [vmem:[#allocation2 + $0x9] sm:$0xff]
  %v1899 = vld [vmem:[#allocation2 + $0x11] sm:$0xff]
  %v1900 = vld [vmem:[#allocation2 + $0x19] sm:$0xff]
  %v1901 = vmul.f32 %v272, %v1898
  %v1902 = vmul.f32 %v276, %v1899
  %v1903 = vmul.f32 %v280, %v1900
  %v1904 = vpack.c.bf16 %v1902, %v1901
  %v1905 = vpack.c.bf16 %v1903, %v1903
  %v1908 = vunpack.c.l.b16 %v1904
  %v1909 = vunpack.c.h.b16 %v1904
  %v1910 = vunpack.c.l.b16 %v1905
  %v1911 = vpack.c.b16 %v1908, %v1908
  %v1912 = vpack.c.b16 %v1909, %v1909
  %v1913 = vpack.c.b16 %v1910, %v1910
  %1914 = vrot.lane.b32.xlu0 %v1911, 32
  %v1915 = vpop.permute.xlu0 %1914
  %1916 = vrot.lane.b32.xlu0 %v1912, 32
  %v1917 = vpop.permute.xlu0 %1916
  %1918 = vrot.lane.b32.xlu0 %v1913, 32
  %v1919 = vpop.permute.xlu0 %1918
  %1923 = vst.msk [vmem:[#allocation3 + $0x4] sm:$0xf] %vm661, %v1915
  %1924 = vst.msk [vmem:[#allocation3 + $0x10] sm:$0xf] %vm661, %v1917
  %1925 = vst.msk [vmem:[#allocation3 + $0x1c] sm:$0xf] %vm661, %v1919
  %v1926 = vld [vmem:[#allocation2 + $0xa] sm:$0xff]
  %v1927 = vld [vmem:[#allocation2 + $0x12] sm:$0xff]
  %v1928 = vld [vmem:[#allocation2 + $0x1a] sm:$0xff]
  %v1929 = vmul.f32 %v313, %v1926
  %v1930 = vmul.f32 %v317, %v1927
  %v1931 = vmul.f32 %v321, %v1928
  %v1932 = vpack.c.bf16 %v1930, %v1929
  %v1933 = vpack.c.bf16 %v1931, %v1931
  %v1936 = vunpack.c.l.b16 %v1932
  %v1937 = vunpack.c.h.b16 %v1932
  %v1938 = vunpack.c.l.b16 %v1933
  %v1939 = vpack.c.b16 %v1936, %v1936
  %v1940 = vpack.c.b16 %v1937, %v1937
  %v1941 = vpack.c.b16 %v1938, %v1938
  %1942 = vrot.lane.b32.xlu0 %v1939, 64
  %v1943 = vpop.permute.xlu0 %1942
  %1944 = vrot.lane.b32.xlu0 %v1940, 64
  %v1945 = vpop.permute.xlu0 %1944
  %1946 = vrot.lane.b32.xlu0 %v1941, 64
  %v1947 = vpop.permute.xlu0 %1946
  %1951 = vst.msk [vmem:[#allocation3 + $0x4] sm:$0xf] %vm690, %v1943
  %1952 = vst.msk [vmem:[#allocation3 + $0x10] sm:$0xf] %vm690, %v1945
  %1953 = vst.msk [vmem:[#allocation3 + $0x1c] sm:$0xf] %vm690, %v1947
  %v1954 = vld [vmem:[#allocation2 + $0xb] sm:$0xff]
  %v1955 = vld [vmem:[#allocation2 + $0x13] sm:$0xff]
  %v1956 = vld [vmem:[#allocation2 + $0x1b] sm:$0xff]
  %v1957 = vmul.f32 %v354, %v1954
  %v1958 = vmul.f32 %v358, %v1955
  %v1959 = vmul.f32 %v362, %v1956
  %v1960 = vpack.c.bf16 %v1958, %v1957
  %v1961 = vpack.c.bf16 %v1959, %v1959
  %v1964 = vunpack.c.l.b16 %v1960
  %v1965 = vunpack.c.h.b16 %v1960
  %v1966 = vunpack.c.l.b16 %v1961
  %v1967 = vpack.c.b16 %v1964, %v1964
  %v1968 = vpack.c.b16 %v1965, %v1965
  %v1969 = vpack.c.b16 %v1966, %v1966
  %1970 = vrot.lane.b32.xlu0 %v1967, 96
  %v1971 = vpop.permute.xlu0 %1970
  %1972 = vrot.lane.b32.xlu0 %v1968, 96
  %v1973 = vpop.permute.xlu0 %1972
  %1974 = vrot.lane.b32.xlu0 %v1969, 96
  %v1975 = vpop.permute.xlu0 %1974
  %1979 = vst.msk [vmem:[#allocation3 + $0x4] sm:$0xf] %vm719, %v1971
  %1980 = vst.msk [vmem:[#allocation3 + $0x10] sm:$0xf] %vm719, %v1973
  %1981 = vst.msk [vmem:[#allocation3 + $0x1c] sm:$0xf] %vm719, %v1975
  %v1982 = vld [vmem:[#allocation2 + $0xc] sm:$0xff]
  %v1983 = vld [vmem:[#allocation2 + $0x14] sm:$0xff]
  %v1984 = vld [vmem:[#allocation2 + $0x1c] sm:$0xff]
  %v1985 = vmul.f32 %v395, %v1982
  %v1986 = vmul.f32 %v399, %v1983
  %v1987 = vmul.f32 %v403, %v1984
  %v1988 = vpack.c.bf16 %v1986, %v1985
  %v1989 = vpack.c.bf16 %v1987, %v1987
  %v1992 = vunpack.c.l.b16 %v1988
  %v1993 = vunpack.c.h.b16 %v1988
  %v1994 = vunpack.c.l.b16 %v1989
  %v1995 = vpack.c.b16 %v1992, %v1992
  %v1996 = vpack.c.b16 %v1993, %v1993
  %v1997 = vpack.c.b16 %v1994, %v1994
  %2001 = vst.msk [vmem:[#allocation3 + $0x8] sm:$0xf] %vm632, %v1995
  %2002 = vst.msk [vmem:[#allocation3 + $0x14] sm:$0xf] %vm632, %v1996
  %2003 = vst.msk [vmem:[#allocation3 + $0x20] sm:$0xf] %vm632, %v1997
  %v2004 = vld [vmem:[#allocation3] sm:$0xff]
  %v2005 = vld [vmem:[#allocation3 + $0x8] sm:$0xf]
  %v2006 = vld [vmem:[#allocation3 + $0xc] sm:$0xff]
  %v2007 = vld [vmem:[#allocation3 + $0x14] sm:$0xf]
  %v2008 = vld [vmem:[#allocation3 + $0x18] sm:$0xff]
  %v2009 = vld [vmem:[#allocation3 + $0x20] sm:$0xf]
  %v2016 = vunpack.c.l.b16 %v2004
  %v2017 = vunpack.c.h.b16 %v2004
  %v2018 = vunpack.c.l.b16 %v2005
  %v2019 = vunpack.c.l.b16 %v2006
  %v2020 = vunpack.c.h.b16 %v2006
  %v2021 = vunpack.c.l.b16 %v2007
  %v2022 = vunpack.c.l.b16 %v2008
  %v2023 = vunpack.c.h.b16 %v2008
  %v2024 = vunpack.c.l.b16 %v2009
  %v2025 = vpack.c.b16 %v2019, %v2016
  %v2026 = vpack.c.b16 %v2020, %v2017
  %v2027 = vpack.c.b16 %v2021, %v2018
  %v2028 = vpack.c.b16 %v2022, %v2022
  %v2029 = vpack.c.b16 %v2023, %v2023
  %v2030 = vpack.c.b16 %v2024, %v2024
  %v2071 = vunpack.c.l.b16 %v1731
  %v2072 = vunpack.c.l.b16 %v1732
  %v2073 = vunpack.c.l.b16 %v1733
  %v2074 = vunpack.c.l.b16 %v1734
  %v2075 = vunpack.c.l.b16 %v1735
  %v2076 = vunpack.c.l.b16 %v1736
  %v2077 = vunpack.c.l.b16 %v1737
  %v2078 = vunpack.c.l.b16 %v1738
  %v2079 = vunpack.c.l.b16 %v1739
  %v2080 = vunpack.c.l.b16 %v1740
  %v2081 = vunpack.c.l.b16 %v1741
  %v2082 = vunpack.c.l.b16 %v1742
  %v2083 = vunpack.c.l.b16 %v1743
  %v2084 = vunpack.c.l.b16 %v1744
  %v2085 = vunpack.c.l.b16 %v1745
  %v2086 = vunpack.c.l.b16 %v1746
  %v2087 = vunpack.c.l.b16 %v1747
  %v2088 = vunpack.c.l.b16 %v1748
  %v2089 = vunpack.c.l.b16 %v1749
  %v2090 = vunpack.c.l.b16 %v1750
  %v2091 = vunpack.c.l.b16 %v1751
  %v2092 = vunpack.c.l.b16 %v1752
  %v2093 = vunpack.c.l.b16 %v1753
  %v2094 = vunpack.c.l.b16 %v1754
  %v2095 = vunpack.c.l.b16 %v1755
  %v2096 = vunpack.c.l.b16 %v1756
  %v2097 = vunpack.c.l.b16 %v1757
  %v2098 = vunpack.c.l.b16 %v1758
  %v2099 = vunpack.c.l.b16 %v1759
  %v2100 = vunpack.c.l.b16 %v1760
  %v2101 = vunpack.c.l.b16 %v1761
  %v2102 = vunpack.c.l.b16 %v1762
  %v2103 = vunpack.c.l.b16 %v1763
  %v2104 = vunpack.c.l.b16 %v1764
  %v2105 = vunpack.c.l.b16 %v1765
  %v2106 = vunpack.c.l.b16 %v1766
  %v2107 = vpack.c.b16 %v2072, %v2071
  %v2108 = vpack.c.b16 %v2074, %v2073
  %v2109 = vpack.c.b16 %v2076, %v2075
  %v2110 = vpack.c.b16 %v2078, %v2077
  %v2111 = vpack.c.b16 %v2080, %v2079
  %v2112 = vpack.c.b16 %v2082, %v2081
  %v2113 = vpack.c.b16 %v2084, %v2083
  %v2114 = vpack.c.b16 %v2086, %v2085
  %v2115 = vpack.c.b16 %v2088, %v2087
  %v2116 = vpack.c.b16 %v2090, %v2089
  %v2117 = vpack.c.b16 %v2092, %v2091
  %v2118 = vpack.c.b16 %v2094, %v2093
  %v2119 = vpack.c.b16 %v2096, %v2095
  %v2120 = vpack.c.b16 %v2098, %v2097
  %v2121 = vpack.c.b16 %v2100, %v2099
  %v2122 = vpack.c.b16 %v2102, %v2101
  %v2123 = vpack.c.b16 %v2104, %v2103
  %v2124 = vpack.c.b16 %v2106, %v2105
  %v2144 = vsel %vm45, %v2027, 0
  %v2147 = vsel %vm45, %v2030, 0
  %2149 = vmatprep.subr.bf16.mxu0 0
  %2150 = vmatpush1.bf16.msra.mxu0 %v2107
  %2151 = vmatprep.subr.bf16.mxu0 0
  %2152 = vmatpush1.bf16.msra.mxu0 %v2108
  %2153 = vmatprep.subr.bf16.mxu0 0
  %2154 = vmatpush1.bf16.msra.mxu0 %v2109
  %2155 = vmatprep.subr.bf16.mxu0 0
  %2156 = vmatpush1.bf16.msra.mxu0 %v2110
  %2157 = vmatprep.subr.bf16.mxu0 0
  %2158 = vmatpush1.bf16.msra.mxu0 %v2111
  %2159 = vmatprep.subr.bf16.mxu0 0
  %2160 = vmatpush1.bf16.msra.mxu0 %v2112
  %2161 = vmatprep.subr.bf16.mxu0 0
  %2162 = vmatpush1.bf16.msra.mxu0 %v2113
  %2163 = vmatprep.subr.bf16.mxu0 0
  %2164 = vmatpush1.bf16.msra.mxu0 %v2114
  %2165 = vmatprep.subr.bf16.mxu0 0
  %2166 = vmatpush1.bf16.msra.mxu0 %v2115
  %2167 = vmatprep.subr.bf16.mxu0 0
  %2168 = vmatpush1.bf16.msra.mxu0 %v2116
  %2169 = vmatprep.subr.bf16.mxu0 0
  %2170 = vmatpush1.bf16.msra.mxu0 %v2117
  %2171 = vmatprep.subr.bf16.mxu0 0
  %2172 = vmatpush1.bf16.msra.mxu0 %v2118
  %2173 = vmatprep.subr.bf16.mxu0 0
  %2174 = vmatpush1.bf16.msra.mxu0 %v2119
  %2175 = vmatprep.subr.bf16.mxu0 0
  %2176 = vmatpush1.bf16.msra.mxu0 %v2120
  %2177 = vmatprep.subr.bf16.mxu0 0
  %2178 = vmatpush1.bf16.msra.mxu0 %v2121
  %2179 = vmatprep.subr.bf16.mxu0 0
  %2180 = vmatpush1.bf16.msra.mxu0 %v2122
  %2181 = vmatprep.mubr.bf16.mxu0 %v2026
  %2182 = vmatmul.mubr.bf16.gmra.mrb[0].mxu0 %v2025
  %v2183 = vpop.f32.mrb[0].mxu0
  %v2184 = vadd.f32 0.0, %v2183
  %v2185 = vpop.f32.mrb[0].mxu0
  %v2186 = vpop.f32.mrb[0].mxu0
  %v2187 = vadd.f32 0.0, %v2186
  %v2188 = vpop.f32.mrb[0].mxu0
  %2189 = vmatprep.mubr.bf16.mxu0 %v2029
  %2190 = vmatmul.mubr.bf16.gmra.mrb[0].mxu0 %v2028
  %v2191 = vpop.f32.mrb[0].mxu0
  %v2192 = vadd.f32 0.0, %v2191
  %v2193 = vpop.f32.mrb[0].mxu0
  %v2194 = vpop.f32.mrb[0].mxu0
  %v2195 = vpop.f32.mrb[0].mxu0
  %2196 = vdwg.mxu0
  %2197 = vmatprep.subr.bf16.mxu0 0
  %2198 = vmatpush1.bf16.msra.mxu0 %v2123
  %2199 = vmatprep.subr.bf16.mxu0 0
  %2200 = vmatpush1.bf16.msra.mxu0 %v2124
  %2201 = vmatprep.subr.bf16.mxu0 0
  %2202 = vmatpush1.bf16.msra.mxu0 0
  %2203 = vmatprep.subr.bf16.mxu0 0
  %2204 = vmatpush1.bf16.msra.mxu0 0
  %2205 = vmatprep.subr.bf16.mxu0 0
  %2206 = vmatpush1.bf16.msra.mxu0 0
  %2207 = vmatprep.subr.bf16.mxu0 0
  %2208 = vmatpush1.bf16.msra.mxu0 0
  %2209 = vmatprep.subr.bf16.mxu0 0
  %2210 = vmatpush1.bf16.msra.mxu0 0
  %2211 = vmatprep.subr.bf16.mxu0 0
  %2212 = vmatpush1.bf16.msra.mxu0 0
  %2213 = vmatprep.subr.bf16.mxu0 0
  %2214 = vmatpush1.bf16.msra.mxu0 0
  %2215 = vmatprep.subr.bf16.mxu0 0
  %2216 = vmatpush1.bf16.msra.mxu0 0
  %2217 = vmatprep.subr.bf16.mxu0 0
  %2218 = vmatpush1.bf16.msra.mxu0 0
  %2219 = vmatprep.subr.bf16.mxu0 0
  %2220 = vmatpush1.bf16.msra.mxu0 0
  %2221 = vmatprep.subr.bf16.mxu0 0
  %2222 = vmatpush1.bf16.msra.mxu0 0
  %2223 = vmatprep.subr.bf16.mxu0 0
  %2224 = vmatpush1.bf16.msra.mxu0 0
  %2225 = vmatprep.subr.bf16.mxu0 0
  %2226 = vmatpush1.bf16.msra.mxu0 0
  %2227 = vmatprep.subr.bf16.mxu0 0
  %2228 = vmatpush1.bf16.msra.mxu0 0
  %2229 = vmatprep.mubr.bf16.mxu0 0
  %2230 = vmatmul.mubr.bf16.gmra.mrb[0].mxu0 %v2144
  %v2231 = vpop.f32.mrb[0].mxu0
  %v2232 = vadd.f32 %v2184, %v2231
  %v2233 = vpop.f32.mrb[0].mxu0
  %v2234 = vpop.f32.mrb[0].mxu0
  %v2235 = vadd.f32 %v2187, %v2234
  %v2236 = vpop.f32.mrb[0].mxu0
  %2237 = vmatprep.mubr.bf16.mxu0 0
  %2238 = vmatmul.mubr.bf16.gmra.mrb[0].mxu0 %v2147
  %v2239 = vpop.f32.mrb[0].mxu0
  %v2240 = vadd.f32 %v2192, %v2239
  %v2241 = vpop.f32.mrb[0].mxu0
  %v2242 = vpop.f32.mrb[0].mxu0
  %v2243 = vpop.f32.mrb[0].mxu0
  %2244 = vdwg.mxu0
  %s2245 = scalar_lea.vmem %s5, 2
  %v2246 = vld [vmem:[%s2245] sm:$0x1]
  %s2247 = scalar_lea.vmem %s6, 2
  %v2248 = vld [vmem:[%s2247] sm:$0x1]
  %v2249 = vsel %vm45, %v2232, 0.0
  %v2250 = vsel %vm45, %v2235, 0.0
  %v2251 = vadd.f32 %v2249, %v2250
  %v2252 = vsel %vm45, %v2240, 0.0
  %v2253 = vadd.f32 %v2251, %v2252
  %v2254 = vrot.slane %v2253, 4
  %v2255 = vadd.f32 %v2253, %v2254
  %v2256 = vrot.slane %v2255, 2
  %v2257 = vadd.f32 %v2255, %v2256
  %v2258 = vrot.slane %v2257, 1
  %v2259 = vadd.f32 %v2257, %v2258
  %v2260 = vmul.f32 %v2259, 0.055555556
  %v2261 = vsub.f32 %v2232, %v2260
  %v2262 = vsub.f32 %v2235, %v2260
  %v2263 = vsub.f32 %v2240, %v2260
  %v2264 = vmul.f32 %v2261, %v2261
  %v2265 = vmul.f32 %v2262, %v2262
  %v2266 = vmul.f32 %v2263, %v2263
  %v2267 = vsel %vm45, %v2264, 0.0
  %v2268 = vsel %vm45, %v2265, 0.0
  %v2269 = vadd.f32 %v2267, %v2268
  %v2270 = vsel %vm45, %v2266, 0.0
  %v2271 = vadd.f32 %v2269, %v2270
  %v2272 = vrot.slane %v2271, 4
  %v2273 = vadd.f32 %v2271, %v2272
  %v2274 = vrot.slane %v2273, 2
  %v2275 = vadd.f32 %v2273, %v2274
  %v2276 = vrot.slane %v2275, 1
  %v2277 = vadd.f32 %v2275, %v2276
  %v2278 = vmul.f32 %v2260, 6.0
  %v2279 = vmul.f32 %v2278, %v2260
  %v2280 = vsub.f32 %v2277, %v2279
  %v2281 = vmul.f32 %v2280, 0.055555556
  %v2282 = vadd.f32 %v2281, 1e-05
  %v2283 = vrsqrt.pop %v2282
  %v2284 = vmul.f32 %v2246, %v2283
  %v2286 = vlaneseq
  %v2287 = vshrl.u32 %v2286, 7
  %v2288 = vsub.s32 0, %v2287
  %v2289 = vrot.slane %v2284, %v2288
  %v2291 = vmul.f32 %v2261, %v2289
  %v2292 = vmul.f32 %v2262, %v2289
  %v2293 = vmul.f32 %v2263, %v2289
  %v2295 = vlaneseq
  %v2296 = vshrl.u32 %v2295, 7
  %v2297 = vsub.s32 0, %v2296
  %v2298 = vrot.slane %v2248, %v2297
  %v2300 = vadd.f32 %v2291, %v2298
  %v2301 = vadd.f32 %v2292, %v2298
  %v2302 = vadd.f32 %v2293, %v2298
  %v2303 = vmax.f32 %v2300, 0.0
  %v2304 = vmax.f32 %v2301, 0.0
  %v2305 = vmax.f32 %v2302, 0.0
  %s2306 = scalar_lea.vmem %s4, 432
  %v2307 = vld [vmem:[%s2306] sm:$0xf]
  %v2308 = vld [vmem:[%s2306 + $0x4] sm:$0xf]
  %v2309 = vld [vmem:[%s2306 + $0x8] sm:$0xf]
  %v2310 = vld [vmem:[%s2306 + $0xc] sm:$0xf]
  %v2311 = vld [vmem:[%s2306 + $0x10] sm:$0xf]
  %v2312 = vld [vmem:[%s2306 + $0x14] sm:$0xf]
  %v2313 = vld [vmem:[%s2306 + $0x18] sm:$0xf]
  %v2314 = vld [vmem:[%s2306 + $0x1c] sm:$0xf]
  %v2315 = vld [vmem:[%s2306 + $0x20] sm:$0xf]
  %v2316 = vld [vmem:[%s2306 + $0x24] sm:$0xf]
  %v2317 = vld [vmem:[%s2306 + $0x28] sm:$0xf]
  %v2318 = vld [vmem:[%s2306 + $0x2c] sm:$0xf]
  %v2319 = vld [vmem:[%s2306 + $0x30] sm:$0xf]
  %v2320 = vld [vmem:[%s2306 + $0x34] sm:$0xf]
  %v2321 = vld [vmem:[%s2306 + $0x38] sm:$0xf]
  %v2322 = vld [vmem:[%s2306 + $0x3c] sm:$0xf]
  %v2323 = vld [vmem:[%s2306 + $0x40] sm:$0xf]
  %v2324 = vld [vmem:[%s2306 + $0x44] sm:$0xf]
  %v2325 = vld [vmem:[%s2306 + $0x48] sm:$0xf]
  %v2326 = vld [vmem:[%s2306 + $0x4c] sm:$0xf]
  %v2327 = vld [vmem:[%s2306 + $0x50] sm:$0xf]
  %v2328 = vld [vmem:[%s2306 + $0x54] sm:$0xf]
  %v2329 = vld [vmem:[%s2306 + $0x58] sm:$0xf]
  %v2330 = vld [vmem:[%s2306 + $0x5c] sm:$0xf]
  %v2331 = vld [vmem:[%s2306 + $0x60] sm:$0xf]
  %v2332 = vld [vmem:[%s2306 + $0x64] sm:$0xf]
  %v2333 = vld [vmem:[%s2306 + $0x68] sm:$0xf]
  %v2334 = vld [vmem:[%s2306 + $0x6c] sm:$0xf]
  %v2335 = vld [vmem:[%s2306 + $0x70] sm:$0xf]
  %v2336 = vld [vmem:[%s2306 + $0x74] sm:$0xf]
  %v2337 = vld [vmem:[%s2306 + $0x78] sm:$0xf]
  %v2338 = vld [vmem:[%s2306 + $0x7c] sm:$0xf]
  %v2339 = vld [vmem:[%s2306 + $0x80] sm:$0xf]
  %v2340 = vld [vmem:[%s2306 + $0x84] sm:$0xf]
  %v2341 = vld [vmem:[%s2306 + $0x88] sm:$0xf]
  %v2342 = vld [vmem:[%s2306 + $0x8c] sm:$0xf]
  %2343 = vst.msk [vmem:[#allocation2 + $0x8] sm:$0xff] %vm45, %v2303
  %2344 = vst.msk [vmem:[#allocation2 + $0x10] sm:$0xff] %vm45, %v2304
  %2345 = vst.msk [vmem:[#allocation2 + $0x18] sm:$0xff] %vm45, %v2305
  %v2346 = vld [vmem:[#allocation2 + $0x4] sm:$0xff]
  %v2347 = vld [vmem:[#allocation2 + $0xc] sm:$0xff]
  %v2348 = vld [vmem:[#allocation2 + $0x14] sm:$0xff]
  %v2349 = vmul.f32 %v71, %v2346
  %v2350 = vmul.f32 %v76, %v2347
  %v2351 = vmul.f32 %v81, %v2348
  %v2352 = vpack.c.bf16 %v2350, %v2349
  %v2353 = vpack.c.bf16 %v2351, %v2351
  %v2356 = vunpack.c.l.b16 %v2352
  %v2357 = vunpack.c.h.b16 %v2352
  %v2358 = vunpack.c.l.b16 %v2353
  %v2359 = vpack.c.b16 %v2356, %v2356
  %v2360 = vpack.c.b16 %v2357, %v2357
  %v2361 = vpack.c.b16 %v2358, %v2358
  %2365 = vst.msk [vmem:[#allocation3] sm:$0xf] %vm632, %v2359
  %2366 = vst.msk [vmem:[#allocation3 + $0xc] sm:$0xf] %vm632, %v2360
  %2367 = vst.msk [vmem:[#allocation3 + $0x18] sm:$0xf] %vm632, %v2361
  %v2368 = vld [vmem:[#allocation2 + $0x5] sm:$0xff]
  %v2369 = vld [vmem:[#allocation2 + $0xd] sm:$0xff]
  %v2370 = vld [vmem:[#allocation2 + $0x15] sm:$0xff]
  %v2371 = vmul.f32 %v108, %v2368
  %v2372 = vmul.f32 %v112, %v2369
  %v2373 = vmul.f32 %v116, %v2370
  %v2374 = vpack.c.bf16 %v2372, %v2371
  %v2375 = vpack.c.bf16 %v2373, %v2373
  %v2378 = vunpack.c.l.b16 %v2374
  %v2379 = vunpack.c.h.b16 %v2374
  %v2380 = vunpack.c.l.b16 %v2375
  %v2381 = vpack.c.b16 %v2378, %v2378
  %v2382 = vpack.c.b16 %v2379, %v2379
  %v2383 = vpack.c.b16 %v2380, %v2380
  %2384 = vrot.lane.b32.xlu0 %v2381, 32
  %v2385 = vpop.permute.xlu0 %2384
  %2386 = vrot.lane.b32.xlu0 %v2382, 32
  %v2387 = vpop.permute.xlu0 %2386
  %2388 = vrot.lane.b32.xlu0 %v2383, 32
  %v2389 = vpop.permute.xlu0 %2388
  %2393 = vst.msk [vmem:[#allocation3] sm:$0xf] %vm661, %v2385
  %2394 = vst.msk [vmem:[#allocation3 + $0xc] sm:$0xf] %vm661, %v2387
  %2395 = vst.msk [vmem:[#allocation3 + $0x18] sm:$0xf] %vm661, %v2389
  %v2396 = vld [vmem:[#allocation2 + $0x6] sm:$0xff]
  %v2397 = vld [vmem:[#allocation2 + $0xe] sm:$0xff]
  %v2398 = vld [vmem:[#allocation2 + $0x16] sm:$0xff]
  %v2399 = vmul.f32 %v149, %v2396
  %v2400 = vmul.f32 %v153, %v2397
  %v2401 = vmul.f32 %v157, %v2398
  %v2402 = vpack.c.bf16 %v2400, %v2399
  %v2403 = vpack.c.bf16 %v2401, %v2401
  %v2406 = vunpack.c.l.b16 %v2402
  %v2407 = vunpack.c.h.b16 %v2402
  %v2408 = vunpack.c.l.b16 %v2403
  %v2409 = vpack.c.b16 %v2406, %v2406
  %v2410 = vpack.c.b16 %v2407, %v2407
  %v2411 = vpack.c.b16 %v2408, %v2408
  %2412 = vrot.lane.b32.xlu0 %v2409, 64
  %v2413 = vpop.permute.xlu0 %2412
  %2414 = vrot.lane.b32.xlu0 %v2410, 64
  %v2415 = vpop.permute.xlu0 %2414
  %2416 = vrot.lane.b32.xlu0 %v2411, 64
  %v2417 = vpop.permute.xlu0 %2416
  %2421 = vst.msk [vmem:[#allocation3] sm:$0xf] %vm690, %v2413
  %2422 = vst.msk [vmem:[#allocation3 + $0xc] sm:$0xf] %vm690, %v2415
  %2423 = vst.msk [vmem:[#allocation3 + $0x18] sm:$0xf] %vm690, %v2417
  %v2424 = vld [vmem:[#allocation2 + $0x7] sm:$0xff]
  %v2425 = vld [vmem:[#allocation2 + $0xf] sm:$0xff]
  %v2426 = vld [vmem:[#allocation2 + $0x17] sm:$0xff]
  %v2427 = vmul.f32 %v190, %v2424
  %v2428 = vmul.f32 %v194, %v2425
  %v2429 = vmul.f32 %v198, %v2426
  %v2430 = vpack.c.bf16 %v2428, %v2427
  %v2431 = vpack.c.bf16 %v2429, %v2429
  %v2434 = vunpack.c.l.b16 %v2430
  %v2435 = vunpack.c.h.b16 %v2430
  %v2436 = vunpack.c.l.b16 %v2431
  %v2437 = vpack.c.b16 %v2434, %v2434
  %v2438 = vpack.c.b16 %v2435, %v2435
  %v2439 = vpack.c.b16 %v2436, %v2436
  %2440 = vrot.lane.b32.xlu0 %v2437, 96
  %v2441 = vpop.permute.xlu0 %2440
  %2442 = vrot.lane.b32.xlu0 %v2438, 96
  %v2443 = vpop.permute.xlu0 %2442
  %2444 = vrot.lane.b32.xlu0 %v2439, 96
  %v2445 = vpop.permute.xlu0 %2444
  %2449 = vst.msk [vmem:[#allocation3] sm:$0xf] %vm719, %v2441
  %2450 = vst.msk [vmem:[#allocation3 + $0xc] sm:$0xf] %vm719, %v2443
  %2451 = vst.msk [vmem:[#allocation3 + $0x18] sm:$0xf] %vm719, %v2445
  %v2452 = vld [vmem:[#allocation2 + $0x8] sm:$0xff]
  %v2453 = vld [vmem:[#allocation2 + $0x10] sm:$0xff]
  %v2454 = vld [vmem:[#allocation2 + $0x18] sm:$0xff]
  %v2455 = vmul.f32 %v231, %v2452
  %v2456 = vmul.f32 %v235, %v2453
  %v2457 = vmul.f32 %v239, %v2454
  %v2458 = vpack.c.bf16 %v2456, %v2455
  %v2459 = vpack.c.bf16 %v2457, %v2457
  %v2462 = vunpack.c.l.b16 %v2458
  %v2463 = vunpack.c.h.b16 %v2458
  %v2464 = vunpack.c.l.b16 %v2459
  %v2465 = vpack.c.b16 %v2462, %v2462
  %v2466 = vpack.c.b16 %v2463, %v2463
  %v2467 = vpack.c.b16 %v2464, %v2464
  %2471 = vst.msk [vmem:[#allocation3 + $0x4] sm:$0xf] %vm632, %v2465
  %2472 = vst.msk [vmem:[#allocation3 + $0x10] sm:$0xf] %vm632, %v2466
  %2473 = vst.msk [vmem:[#allocation3 + $0x1c] sm:$0xf] %vm632, %v2467
  %v2474 = vld [vmem:[#allocation2 + $0x9] sm:$0xff]
  %v2475 = vld [vmem:[#allocation2 + $0x11] sm:$0xff]
  %v2476 = vld [vmem:[#allocation2 + $0x19] sm:$0xff]
  %v2477 = vmul.f32 %v272, %v2474
  %v2478 = vmul.f32 %v276, %v2475
  %v2479 = vmul.f32 %v280, %v2476
  %v2480 = vpack.c.bf16 %v2478, %v2477
  %v2481 = vpack.c.bf16 %v2479, %v2479
  %v2484 = vunpack.c.l.b16 %v2480
  %v2485 = vunpack.c.h.b16 %v2480
  %v2486 = vunpack.c.l.b16 %v2481
  %v2487 = vpack.c.b16 %v2484, %v2484
  %v2488 = vpack.c.b16 %v2485, %v2485
  %v2489 = vpack.c.b16 %v2486, %v2486
  %2490 = vrot.lane.b32.xlu0 %v2487, 32
  %v2491 = vpop.permute.xlu0 %2490
  %2492 = vrot.lane.b32.xlu0 %v2488, 32
  %v2493 = vpop.permute.xlu0 %2492
  %2494 = vrot.lane.b32.xlu0 %v2489, 32
  %v2495 = vpop.permute.xlu0 %2494
  %2499 = vst.msk [vmem:[#allocation3 + $0x4] sm:$0xf] %vm661, %v2491
  %2500 = vst.msk [vmem:[#allocation3 + $0x10] sm:$0xf] %vm661, %v2493
  %2501 = vst.msk [vmem:[#allocation3 + $0x1c] sm:$0xf] %vm661, %v2495
  %v2502 = vld [vmem:[#allocation2 + $0xa] sm:$0xff]
  %v2503 = vld [vmem:[#allocation2 + $0x12] sm:$0xff]
  %v2504 = vld [vmem:[#allocation2 + $0x1a] sm:$0xff]
  %v2505 = vmul.f32 %v313, %v2502
  %v2506 = vmul.f32 %v317, %v2503
  %v2507 = vmul.f32 %v321, %v2504
  %v2508 = vpack.c.bf16 %v2506, %v2505
  %v2509 = vpack.c.bf16 %v2507, %v2507
  %v2512 = vunpack.c.l.b16 %v2508
  %v2513 = vunpack.c.h.b16 %v2508
  %v2514 = vunpack.c.l.b16 %v2509
  %v2515 = vpack.c.b16 %v2512, %v2512
  %v2516 = vpack.c.b16 %v2513, %v2513
  %v2517 = vpack.c.b16 %v2514, %v2514
  %2518 = vrot.lane.b32.xlu0 %v2515, 64
  %v2519 = vpop.permute.xlu0 %2518
  %2520 = vrot.lane.b32.xlu0 %v2516, 64
  %v2521 = vpop.permute.xlu0 %2520
  %2522 = vrot.lane.b32.xlu0 %v2517, 64
  %v2523 = vpop.permute.xlu0 %2522
  %2527 = vst.msk [vmem:[#allocation3 + $0x4] sm:$0xf] %vm690, %v2519
  %2528 = vst.msk [vmem:[#allocation3 + $0x10] sm:$0xf] %vm690, %v2521
  %2529 = vst.msk [vmem:[#allocation3 + $0x1c] sm:$0xf] %vm690, %v2523
  %v2530 = vld [vmem:[#allocation2 + $0xb] sm:$0xff]
  %v2531 = vld [vmem:[#allocation2 + $0x13] sm:$0xff]
  %v2532 = vld [vmem:[#allocation2 + $0x1b] sm:$0xff]
  %v2533 = vmul.f32 %v354, %v2530
  %v2534 = vmul.f32 %v358, %v2531
  %v2535 = vmul.f32 %v362, %v2532
  %v2536 = vpack.c.bf16 %v2534, %v2533
  %v2537 = vpack.c.bf16 %v2535, %v2535
  %v2540 = vunpack.c.l.b16 %v2536
  %v2541 = vunpack.c.h.b16 %v2536
  %v2542 = vunpack.c.l.b16 %v2537
  %v2543 = vpack.c.b16 %v2540, %v2540
  %v2544 = vpack.c.b16 %v2541, %v2541
  %v2545 = vpack.c.b16 %v2542, %v2542
  %2546 = vrot.lane.b32.xlu0 %v2543, 96
  %v2547 = vpop.permute.xlu0 %2546
  %2548 = vrot.lane.b32.xlu0 %v2544, 96
  %v2549 = vpop.permute.xlu0 %2548
  %2550 = vrot.lane.b32.xlu0 %v2545, 96
  %v2551 = vpop.permute.xlu0 %2550
  %2555 = vst.msk [vmem:[#allocation3 + $0x4] sm:$0xf] %vm719, %v2547
  %2556 = vst.msk [vmem:[#allocation3 + $0x10] sm:$0xf] %vm719, %v2549
  %2557 = vst.msk [vmem:[#allocation3 + $0x1c] sm:$0xf] %vm719, %v2551
  %v2558 = vld [vmem:[#allocation2 + $0xc] sm:$0xff]
  %v2559 = vld [vmem:[#allocation2 + $0x14] sm:$0xff]
  %v2560 = vld [vmem:[#allocation2 + $0x1c] sm:$0xff]
  %v2561 = vmul.f32 %v395, %v2558
  %v2562 = vmul.f32 %v399, %v2559
  %v2563 = vmul.f32 %v403, %v2560
  %v2564 = vpack.c.bf16 %v2562, %v2561
  %v2565 = vpack.c.bf16 %v2563, %v2563
  %v2568 = vunpack.c.l.b16 %v2564
  %v2569 = vunpack.c.h.b16 %v2564
  %v2570 = vunpack.c.l.b16 %v2565
  %v2571 = vpack.c.b16 %v2568, %v2568
  %v2572 = vpack.c.b16 %v2569, %v2569
  %v2573 = vpack.c.b16 %v2570, %v2570
  %2577 = vst.msk [vmem:[#allocation3 + $0x8] sm:$0xf] %vm632, %v2571
  %2578 = vst.msk [vmem:[#allocation3 + $0x14] sm:$0xf] %vm632, %v2572
  %2579 = vst.msk [vmem:[#allocation3 + $0x20] sm:$0xf] %vm632, %v2573
  %v2580 = vld [vmem:[#allocation3] sm:$0xff]
  %v2581 = vld [vmem:[#allocation3 + $0x8] sm:$0xf]
  %v2582 = vld [vmem:[#allocation3 + $0xc] sm:$0xff]
  %v2583 = vld [vmem:[#allocation3 + $0x14] sm:$0xf]
  %v2584 = vld [vmem:[#allocation3 + $0x18] sm:$0xff]
  %v2585 = vld [vmem:[#allocation3 + $0x20] sm:$0xf]
  %v2592 = vunpack.c.l.b16 %v2580
  %v2593 = vunpack.c.h.b16 %v2580
  %v2594 = vunpack.c.l.b16 %v2581
  %v2595 = vunpack.c.l.b16 %v2582
  %v2596 = vunpack.c.h.b16 %v2582
  %v2597 = vunpack.c.l.b16 %v2583
  %v2598 = vunpack.c.l.b16 %v2584
  %v2599 = vunpack.c.h.b16 %v2584
  %v2600 = vunpack.c.l.b16 %v2585
  %v2601 = vpack.c.b16 %v2595, %v2592
  %v2602 = vpack.c.b16 %v2596, %v2593
  %v2603 = vpack.c.b16 %v2597, %v2594
  %v2604 = vpack.c.b16 %v2598, %v2598
  %v2605 = vpack.c.b16 %v2599, %v2599
  %v2606 = vpack.c.b16 %v2600, %v2600
  %v2647 = vunpack.c.l.b16 %v2307
  %v2648 = vunpack.c.l.b16 %v2308
  %v2649 = vunpack.c.l.b16 %v2309
  %v2650 = vunpack.c.l.b16 %v2310
  %v2651 = vunpack.c.l.b16 %v2311
  %v2652 = vunpack.c.l.b16 %v2312
  %v2653 = vunpack.c.l.b16 %v2313
  %v2654 = vunpack.c.l.b16 %v2314
  %v2655 = vunpack.c.l.b16 %v2315
  %v2656 = vunpack.c.l.b16 %v2316
  %v2657 = vunpack.c.l.b16 %v2317
  %v2658 = vunpack.c.l.b16 %v2318
  %v2659 = vunpack.c.l.b16 %v2319
  %v2660 = vunpack.c.l.b16 %v2320
  %v2661 = vunpack.c.l.b16 %v2321
  %v2662 = vunpack.c.l.b16 %v2322
  %v2663 = vunpack.c.l.b16 %v2323
  %v2664 = vunpack.c.l.b16 %v2324
  %v2665 = vunpack.c.l.b16 %v2325
  %v2666 = vunpack.c.l.b16 %v2326
  %v2667 = vunpack.c.l.b16 %v2327
  %v2668 = vunpack.c.l.b16 %v2328
  %v2669 = vunpack.c.l.b16 %v2329
  %v2670 = vunpack.c.l.b16 %v2330
  %v2671 = vunpack.c.l.b16 %v2331
  %v2672 = vunpack.c.l.b16 %v2332
  %v2673 = vunpack.c.l.b16 %v2333
  %v2674 = vunpack.c.l.b16 %v2334
  %v2675 = vunpack.c.l.b16 %v2335
  %v2676 = vunpack.c.l.b16 %v2336
  %v2677 = vunpack.c.l.b16 %v2337
  %v2678 = vunpack.c.l.b16 %v2338
  %v2679 = vunpack.c.l.b16 %v2339
  %v2680 = vunpack.c.l.b16 %v2340
  %v2681 = vunpack.c.l.b16 %v2341
  %v2682 = vunpack.c.l.b16 %v2342
  %v2683 = vpack.c.b16 %v2648, %v2647
  %v2684 = vpack.c.b16 %v2650, %v2649
  %v2685 = vpack.c.b16 %v2652, %v2651
  %v2686 = vpack.c.b16 %v2654, %v2653
  %v2687 = vpack.c.b16 %v2656, %v2655
  %v2688 = vpack.c.b16 %v2658, %v2657
  %v2689 = vpack.c.b16 %v2660, %v2659
  %v2690 = vpack.c.b16 %v2662, %v2661
  %v2691 = vpack.c.b16 %v2664, %v2663
  %v2692 = vpack.c.b16 %v2666, %v2665
  %v2693 = vpack.c.b16 %v2668, %v2667
  %v2694 = vpack.c.b16 %v2670, %v2669
  %v2695 = vpack.c.b16 %v2672, %v2671
  %v2696 = vpack.c.b16 %v2674, %v2673
  %v2697 = vpack.c.b16 %v2676, %v2675
  %v2698 = vpack.c.b16 %v2678, %v2677
  %v2699 = vpack.c.b16 %v2680, %v2679
  %v2700 = vpack.c.b16 %v2682, %v2681
  %v2720 = vsel %vm45, %v2603, 0
  %v2723 = vsel %vm45, %v2606, 0
  %2725 = vmatprep.subr.bf16.mxu0 0
  %2726 = vmatpush1.bf16.msra.mxu0 %v2683
  %2727 = vmatprep.subr.bf16.mxu0 0
  %2728 = vmatpush1.bf16.msra.mxu0 %v2684
  %2729 = vmatprep.subr.bf16.mxu0 0
  %2730 = vmatpush1.bf16.msra.mxu0 %v2685
  %2731 = vmatprep.subr.bf16.mxu0 0
  %2732 = vmatpush1.bf16.msra.mxu0 %v2686
  %2733 = vmatprep.subr.bf16.mxu0 0
  %2734 = vmatpush1.bf16.msra.mxu0 %v2687
  %2735 = vmatprep.subr.bf16.mxu0 0
  %2736 = vmatpush1.bf16.msra.mxu0 %v2688
  %2737 = vmatprep.subr.bf16.mxu0 0
  %2738 = vmatpush1.bf16.msra.mxu0 %v2689
  %2739 = vmatprep.subr.bf16.mxu0 0
  %2740 = vmatpush1.bf16.msra.mxu0 %v2690
  %2741 = vmatprep.subr.bf16.mxu0 0
  %2742 = vmatpush1.bf16.msra.mxu0 %v2691
  %2743 = vmatprep.subr.bf16.mxu0 0
  %2744 = vmatpush1.bf16.msra.mxu0 %v2692
  %2745 = vmatprep.subr.bf16.mxu0 0
  %2746 = vmatpush1.bf16.msra.mxu0 %v2693
  %2747 = vmatprep.subr.bf16.mxu0 0
  %2748 = vmatpush1.bf16.msra.mxu0 %v2694
  %2749 = vmatprep.subr.bf16.mxu0 0
  %2750 = vmatpush1.bf16.msra.mxu0 %v2695
  %2751 = vmatprep.subr.bf16.mxu0 0
  %2752 = vmatpush1.bf16.msra.mxu0 %v2696
  %2753 = vmatprep.subr.bf16.mxu0 0
  %2754 = vmatpush1.bf16.msra.mxu0 %v2697
  %2755 = vmatprep.subr.bf16.mxu0 0
  %2756 = vmatpush1.bf16.msra.mxu0 %v2698
  %2757 = vmatprep.mubr.bf16.mxu0 %v2602
  %2758 = vmatmul.mubr.bf16.gmra.mrb[0].mxu0 %v2601
  %v2759 = vpop.f32.mrb[0].mxu0
  %v2760 = vadd.f32 0.0, %v2759
  %v2761 = vpop.f32.mrb[0].mxu0
  %v2762 = vpop.f32.mrb[0].mxu0
  %v2763 = vadd.f32 0.0, %v2762
  %v2764 = vpop.f32.mrb[0].mxu0
  %2765 = vmatprep.mubr.bf16.mxu0 %v2605
  %2766 = vmatmul.mubr.bf16.gmra.mrb[0].mxu0 %v2604
  %v2767 = vpop.f32.mrb[0].mxu0
  %v2768 = vadd.f32 0.0, %v2767
  %v2769 = vpop.f32.mrb[0].mxu0
  %v2770 = vpop.f32.mrb[0].mxu0
  %v2771 = vpop.f32.mrb[0].mxu0
  %2772 = vdwg.mxu0
  %2773 = vmatprep.subr.bf16.mxu0 0
  %2774 = vmatpush1.bf16.msra.mxu0 %v2699
  %2775 = vmatprep.subr.bf16.mxu0 0
  %2776 = vmatpush1.bf16.msra.mxu0 %v2700
  %2777 = vmatprep.subr.bf16.mxu0 0
  %2778 = vmatpush1.bf16.msra.mxu0 0
  %2779 = vmatprep.subr.bf16.mxu0 0
  %2780 = vmatpush1.bf16.msra.mxu0 0
  %2781 = vmatprep.subr.bf16.mxu0 0
  %2782 = vmatpush1.bf16.msra.mxu0 0
  %2783 = vmatprep.subr.bf16.mxu0 0
  %2784 = vmatpush1.bf16.msra.mxu0 0
  %2785 = vmatprep.subr.bf16.mxu0 0
  %2786 = vmatpush1.bf16.msra.mxu0 0
  %2787 = vmatprep.subr.bf16.mxu0 0
  %2788 = vmatpush1.bf16.msra.mxu0 0
  %2789 = vmatprep.subr.bf16.mxu0 0
  %2790 = vmatpush1.bf16.msra.mxu0 0
  %2791 = vmatprep.subr.bf16.mxu0 0
  %2792 = vmatpush1.bf16.msra.mxu0 0
  %2793 = vmatprep.subr.bf16.mxu0 0
  %2794 = vmatpush1.bf16.msra.mxu0 0
  %2795 = vmatprep.subr.bf16.mxu0 0
  %2796 = vmatpush1.bf16.msra.mxu0 0
  %2797 = vmatprep.subr.bf16.mxu0 0
  %2798 = vmatpush1.bf16.msra.mxu0 0
  %2799 = vmatprep.subr.bf16.mxu0 0
  %2800 = vmatpush1.bf16.msra.mxu0 0
  %2801 = vmatprep.subr.bf16.mxu0 0
  %2802 = vmatpush1.bf16.msra.mxu0 0
  %2803 = vmatprep.subr.bf16.mxu0 0
  %2804 = vmatpush1.bf16.msra.mxu0 0
  %2805 = vmatprep.mubr.bf16.mxu0 0
  %2806 = vmatmul.mubr.bf16.gmra.mrb[0].mxu0 %v2720
  %v2807 = vpop.f32.mrb[0].mxu0
  %v2808 = vadd.f32 %v2760, %v2807
  %v2809 = vpop.f32.mrb[0].mxu0
  %v2810 = vpop.f32.mrb[0].mxu0
  %v2811 = vadd.f32 %v2763, %v2810
  %v2812 = vpop.f32.mrb[0].mxu0
  %2813 = vmatprep.mubr.bf16.mxu0 0
  %2814 = vmatmul.mubr.bf16.gmra.mrb[0].mxu0 %v2723
  %v2815 = vpop.f32.mrb[0].mxu0
  %v2816 = vadd.f32 %v2768, %v2815
  %v2817 = vpop.f32.mrb[0].mxu0
  %v2818 = vpop.f32.mrb[0].mxu0
  %v2819 = vpop.f32.mrb[0].mxu0
  %2820 = vdwg.mxu0
  %s2821 = scalar_lea.vmem %s5, 3
  %v2822 = vld [vmem:[%s2821] sm:$0x1]
  %s2823 = scalar_lea.vmem %s6, 3
  %v2824 = vld [vmem:[%s2823] sm:$0x1]
  %v2825 = vsel %vm45, %v2808, 0.0
  %v2826 = vsel %vm45, %v2811, 0.0
  %v2827 = vadd.f32 %v2825, %v2826
  %v2828 = vsel %vm45, %v2816, 0.0
  %v2829 = vadd.f32 %v2827, %v2828
  %v2830 = vrot.slane %v2829, 4
  %v2831 = vadd.f32 %v2829, %v2830
  %v2832 = vrot.slane %v2831, 2
  %v2833 = vadd.f32 %v2831, %v2832
  %v2834 = vrot.slane %v2833, 1
  %v2835 = vadd.f32 %v2833, %v2834
  %v2836 = vmul.f32 %v2835, 0.055555556
  %v2837 = vsub.f32 %v2808, %v2836
  %v2838 = vsub.f32 %v2811, %v2836
  %v2839 = vsub.f32 %v2816, %v2836
  %v2840 = vmul.f32 %v2837, %v2837
  %v2841 = vmul.f32 %v2838, %v2838
  %v2842 = vmul.f32 %v2839, %v2839
  %v2843 = vsel %vm45, %v2840, 0.0
  %v2844 = vsel %vm45, %v2841, 0.0
  %v2845 = vadd.f32 %v2843, %v2844
  %v2846 = vsel %vm45, %v2842, 0.0
  %v2847 = vadd.f32 %v2845, %v2846
  %v2848 = vrot.slane %v2847, 4
  %v2849 = vadd.f32 %v2847, %v2848
  %v2850 = vrot.slane %v2849, 2
  %v2851 = vadd.f32 %v2849, %v2850
  %v2852 = vrot.slane %v2851, 1
  %v2853 = vadd.f32 %v2851, %v2852
  %v2854 = vmul.f32 %v2836, 6.0
  %v2855 = vmul.f32 %v2854, %v2836
  %v2856 = vsub.f32 %v2853, %v2855
  %v2857 = vmul.f32 %v2856, 0.055555556
  %v2858 = vadd.f32 %v2857, 1e-05
  %v2859 = vrsqrt.pop %v2858
  %v2860 = vmul.f32 %v2822, %v2859
  %v2862 = vlaneseq
  %v2863 = vshrl.u32 %v2862, 7
  %v2864 = vsub.s32 0, %v2863
  %v2865 = vrot.slane %v2860, %v2864
  %v2867 = vmul.f32 %v2837, %v2865
  %v2868 = vmul.f32 %v2838, %v2865
  %v2869 = vmul.f32 %v2839, %v2865
  %v2871 = vlaneseq
  %v2872 = vshrl.u32 %v2871, 7
  %v2873 = vsub.s32 0, %v2872
  %v2874 = vrot.slane %v2824, %v2873
  %v2876 = vadd.f32 %v2867, %v2874
  %v2877 = vadd.f32 %v2868, %v2874
  %v2878 = vadd.f32 %v2869, %v2874
  %v2879 = vadd.f32 %v2876, %v1727
  %v2880 = vadd.f32 %v2877, %v1728
  %v2881 = vadd.f32 %v2878, %v1729
  %v2882 = vmax.f32 %v2879, 0.0
  %v2883 = vmax.f32 %v2880, 0.0
  %v2884 = vmax.f32 %v2881, 0.0
  %v2885 = vld [vmem:[%s7] sm:$0xf]
  %v2886 = vld [vmem:[%s7 + $0x4] sm:$0xf]
  %v2887 = vld [vmem:[%s7 + $0x8] sm:$0xf]
  %v2888 = vld [vmem:[%s7 + $0xc] sm:$0xf]
  %v2889 = vld [vmem:[%s7 + $0x10] sm:$0xf]
  %v2890 = vld [vmem:[%s7 + $0x14] sm:$0xf]
  %v2891 = vld [vmem:[%s7 + $0x18] sm:$0xf]
  %v2892 = vld [vmem:[%s7 + $0x1c] sm:$0xf]
  %v2893 = vld [vmem:[%s7 + $0x20] sm:$0xf]
  %v2894 = vld [vmem:[%s7 + $0x24] sm:$0xf]
  %v2895 = vld [vmem:[%s7 + $0x28] sm:$0xf]
  %v2896 = vld [vmem:[%s7 + $0x2c] sm:$0xf]
  %v2897 = vld [vmem:[%s7 + $0x30] sm:$0xf]
  %v2898 = vld [vmem:[%s7 + $0x34] sm:$0xf]
  %v2899 = vld [vmem:[%s7 + $0x38] sm:$0xf]
  %v2900 = vld [vmem:[%s7 + $0x3c] sm:$0xf]
  %v2901 = vld [vmem:[%s7 + $0x40] sm:$0xf]
  %v2902 = vld [vmem:[%s7 + $0x44] sm:$0xf]
  %v2903 = vld [vmem:[%s7 + $0x48] sm:$0xf]
  %v2904 = vld [vmem:[%s7 + $0x4c] sm:$0xf]
  %v2905 = vld [vmem:[%s7 + $0x50] sm:$0xf]
  %v2906 = vld [vmem:[%s7 + $0x54] sm:$0xf]
  %v2907 = vld [vmem:[%s7 + $0x58] sm:$0xf]
  %v2908 = vld [vmem:[%s7 + $0x5c] sm:$0xf]
  %v2909 = vld [vmem:[%s7 + $0x60] sm:$0xf]
  %v2910 = vld [vmem:[%s7 + $0x64] sm:$0xf]
  %v2911 = vld [vmem:[%s7 + $0x68] sm:$0xf]
  %v2912 = vld [vmem:[%s7 + $0x6c] sm:$0xf]
  %v2913 = vld [vmem:[%s7 + $0x70] sm:$0xf]
  %v2914 = vld [vmem:[%s7 + $0x74] sm:$0xf]
  %v2915 = vld [vmem:[%s7 + $0x78] sm:$0xf]
  %v2916 = vld [vmem:[%s7 + $0x7c] sm:$0xf]
  %v2917 = vld [vmem:[%s7 + $0x80] sm:$0xf]
  %v2918 = vld [vmem:[%s7 + $0x84] sm:$0xf]
  %v2919 = vld [vmem:[%s7 + $0x88] sm:$0xf]
  %v2920 = vld [vmem:[%s7 + $0x8c] sm:$0xf]
  %2921 = vst.msk [vmem:[#allocation2 + $0x8] sm:$0xff] %vm45, %v2882
  %2922 = vst.msk [vmem:[#allocation2 + $0x10] sm:$0xff] %vm45, %v2883
  %2923 = vst.msk [vmem:[#allocation2 + $0x18] sm:$0xff] %vm45, %v2884
  %v2924 = vld [vmem:[#allocation2 + $0x4] sm:$0xff]
  %v2925 = vld [vmem:[#allocation2 + $0xc] sm:$0xff]
  %v2926 = vld [vmem:[#allocation2 + $0x14] sm:$0xff]
  %v2927 = vmul.f32 %v71, %v2924
  %v2928 = vmul.f32 %v76, %v2925
  %v2929 = vmul.f32 %v81, %v2926
  %v2930 = vpack.c.bf16 %v2928, %v2927
  %v2931 = vpack.c.bf16 %v2929, %v2929
  %v2934 = vunpack.c.l.b16 %v2930
  %v2935 = vunpack.c.h.b16 %v2930
  %v2936 = vunpack.c.l.b16 %v2931
  %v2937 = vpack.c.b16 %v2934, %v2934
  %v2938 = vpack.c.b16 %v2935, %v2935
  %v2939 = vpack.c.b16 %v2936, %v2936
  %2943 = vst.msk [vmem:[#allocation3] sm:$0xf] %vm632, %v2937
  %2944 = vst.msk [vmem:[#allocation3 + $0xc] sm:$0xf] %vm632, %v2938
  %2945 = vst.msk [vmem:[#allocation3 + $0x18] sm:$0xf] %vm632, %v2939
  %v2946 = vld [vmem:[#allocation2 + $0x5] sm:$0xff]
  %v2947 = vld [vmem:[#allocation2 + $0xd] sm:$0xff]
  %v2948 = vld [vmem:[#allocation2 + $0x15] sm:$0xff]
  %v2949 = vmul.f32 %v108, %v2946
  %v2950 = vmul.f32 %v112, %v2947
  %v2951 = vmul.f32 %v116, %v2948
  %v2952 = vpack.c.bf16 %v2950, %v2949
  %v2953 = vpack.c.bf16 %v2951, %v2951
  %v2956 = vunpack.c.l.b16 %v2952
  %v2957 = vunpack.c.h.b16 %v2952
  %v2958 = vunpack.c.l.b16 %v2953
  %v2959 = vpack.c.b16 %v2956, %v2956
  %v2960 = vpack.c.b16 %v2957, %v2957
  %v2961 = vpack.c.b16 %v2958, %v2958
  %2962 = vrot.lane.b32.xlu0 %v2959, 32
  %v2963 = vpop.permute.xlu0 %2962
  %2964 = vrot.lane.b32.xlu0 %v2960, 32
  %v2965 = vpop.permute.xlu0 %2964
  %2966 = vrot.lane.b32.xlu0 %v2961, 32
  %v2967 = vpop.permute.xlu0 %2966
  %2971 = vst.msk [vmem:[#allocation3] sm:$0xf] %vm661, %v2963
  %2972 = vst.msk [vmem:[#allocation3 + $0xc] sm:$0xf] %vm661, %v2965
  %2973 = vst.msk [vmem:[#allocation3 + $0x18] sm:$0xf] %vm661, %v2967
  %v2974 = vld [vmem:[#allocation2 + $0x6] sm:$0xff]
  %v2975 = vld [vmem:[#allocation2 + $0xe] sm:$0xff]
  %v2976 = vld [vmem:[#allocation2 + $0x16] sm:$0xff]
  %v2977 = vmul.f32 %v149, %v2974
  %v2978 = vmul.f32 %v153, %v2975
  %v2979 = vmul.f32 %v157, %v2976
  %v2980 = vpack.c.bf16 %v2978, %v2977
  %v2981 = vpack.c.bf16 %v2979, %v2979
  %v2984 = vunpack.c.l.b16 %v2980
  %v2985 = vunpack.c.h.b16 %v2980
  %v2986 = vunpack.c.l.b16 %v2981
  %v2987 = vpack.c.b16 %v2984, %v2984
  %v2988 = vpack.c.b16 %v2985, %v2985
  %v2989 = vpack.c.b16 %v2986, %v2986
  %2990 = vrot.lane.b32.xlu0 %v2987, 64
  %v2991 = vpop.permute.xlu0 %2990
  %2992 = vrot.lane.b32.xlu0 %v2988, 64
  %v2993 = vpop.permute.xlu0 %2992
  %2994 = vrot.lane.b32.xlu0 %v2989, 64
  %v2995 = vpop.permute.xlu0 %2994
  %2999 = vst.msk [vmem:[#allocation3] sm:$0xf] %vm690, %v2991
  %3000 = vst.msk [vmem:[#allocation3 + $0xc] sm:$0xf] %vm690, %v2993
  %3001 = vst.msk [vmem:[#allocation3 + $0x18] sm:$0xf] %vm690, %v2995
  %v3002 = vld [vmem:[#allocation2 + $0x7] sm:$0xff]
  %v3003 = vld [vmem:[#allocation2 + $0xf] sm:$0xff]
  %v3004 = vld [vmem:[#allocation2 + $0x17] sm:$0xff]
  %v3005 = vmul.f32 %v190, %v3002
  %v3006 = vmul.f32 %v194, %v3003
  %v3007 = vmul.f32 %v198, %v3004
  %v3008 = vpack.c.bf16 %v3006, %v3005
  %v3009 = vpack.c.bf16 %v3007, %v3007
  %v3012 = vunpack.c.l.b16 %v3008
  %v3013 = vunpack.c.h.b16 %v3008
  %v3014 = vunpack.c.l.b16 %v3009
  %v3015 = vpack.c.b16 %v3012, %v3012
  %v3016 = vpack.c.b16 %v3013, %v3013
  %v3017 = vpack.c.b16 %v3014, %v3014
  %3018 = vrot.lane.b32.xlu0 %v3015, 96
  %v3019 = vpop.permute.xlu0 %3018
  %3020 = vrot.lane.b32.xlu0 %v3016, 96
  %v3021 = vpop.permute.xlu0 %3020
  %3022 = vrot.lane.b32.xlu0 %v3017, 96
  %v3023 = vpop.permute.xlu0 %3022
  %3027 = vst.msk [vmem:[#allocation3] sm:$0xf] %vm719, %v3019
  %3028 = vst.msk [vmem:[#allocation3 + $0xc] sm:$0xf] %vm719, %v3021
  %3029 = vst.msk [vmem:[#allocation3 + $0x18] sm:$0xf] %vm719, %v3023
  %v3030 = vld [vmem:[#allocation2 + $0x8] sm:$0xff]
  %v3031 = vld [vmem:[#allocation2 + $0x10] sm:$0xff]
  %v3032 = vld [vmem:[#allocation2 + $0x18] sm:$0xff]
  %v3033 = vmul.f32 %v231, %v3030
  %v3034 = vmul.f32 %v235, %v3031
  %v3035 = vmul.f32 %v239, %v3032
  %v3036 = vpack.c.bf16 %v3034, %v3033
  %v3037 = vpack.c.bf16 %v3035, %v3035
  %v3040 = vunpack.c.l.b16 %v3036
  %v3041 = vunpack.c.h.b16 %v3036
  %v3042 = vunpack.c.l.b16 %v3037
  %v3043 = vpack.c.b16 %v3040, %v3040
  %v3044 = vpack.c.b16 %v3041, %v3041
  %v3045 = vpack.c.b16 %v3042, %v3042
  %3049 = vst.msk [vmem:[#allocation3 + $0x4] sm:$0xf] %vm632, %v3043
  %3050 = vst.msk [vmem:[#allocation3 + $0x10] sm:$0xf] %vm632, %v3044
  %3051 = vst.msk [vmem:[#allocation3 + $0x1c] sm:$0xf] %vm632, %v3045
  %v3052 = vld [vmem:[#allocation2 + $0x9] sm:$0xff]
  %v3053 = vld [vmem:[#allocation2 + $0x11] sm:$0xff]
  %v3054 = vld [vmem:[#allocation2 + $0x19] sm:$0xff]
  %v3055 = vmul.f32 %v272, %v3052
  %v3056 = vmul.f32 %v276, %v3053
  %v3057 = vmul.f32 %v280, %v3054
  %v3058 = vpack.c.bf16 %v3056, %v3055
  %v3059 = vpack.c.bf16 %v3057, %v3057
  %v3062 = vunpack.c.l.b16 %v3058
  %v3063 = vunpack.c.h.b16 %v3058
  %v3064 = vunpack.c.l.b16 %v3059
  %v3065 = vpack.c.b16 %v3062, %v3062
  %v3066 = vpack.c.b16 %v3063, %v3063
  %v3067 = vpack.c.b16 %v3064, %v3064
  %3068 = vrot.lane.b32.xlu0 %v3065, 32
  %v3069 = vpop.permute.xlu0 %3068
  %3070 = vrot.lane.b32.xlu0 %v3066, 32
  %v3071 = vpop.permute.xlu0 %3070
  %3072 = vrot.lane.b32.xlu0 %v3067, 32
  %v3073 = vpop.permute.xlu0 %3072
  %3077 = vst.msk [vmem:[#allocation3 + $0x4] sm:$0xf] %vm661, %v3069
  %3078 = vst.msk [vmem:[#allocation3 + $0x10] sm:$0xf] %vm661, %v3071
  %3079 = vst.msk [vmem:[#allocation3 + $0x1c] sm:$0xf] %vm661, %v3073
  %v3080 = vld [vmem:[#allocation2 + $0xa] sm:$0xff]
  %v3081 = vld [vmem:[#allocation2 + $0x12] sm:$0xff]
  %v3082 = vld [vmem:[#allocation2 + $0x1a] sm:$0xff]
  %v3083 = vmul.f32 %v313, %v3080
  %v3084 = vmul.f32 %v317, %v3081
  %v3085 = vmul.f32 %v321, %v3082
  %v3086 = vpack.c.bf16 %v3084, %v3083
  %v3087 = vpack.c.bf16 %v3085, %v3085
  %v3090 = vunpack.c.l.b16 %v3086
  %v3091 = vunpack.c.h.b16 %v3086
  %v3092 = vunpack.c.l.b16 %v3087
  %v3093 = vpack.c.b16 %v3090, %v3090
  %v3094 = vpack.c.b16 %v3091, %v3091
  %v3095 = vpack.c.b16 %v3092, %v3092
  %3096 = vrot.lane.b32.xlu0 %v3093, 64
  %v3097 = vpop.permute.xlu0 %3096
  %3098 = vrot.lane.b32.xlu0 %v3094, 64
  %v3099 = vpop.permute.xlu0 %3098
  %3100 = vrot.lane.b32.xlu0 %v3095, 64
  %v3101 = vpop.permute.xlu0 %3100
  %3105 = vst.msk [vmem:[#allocation3 + $0x4] sm:$0xf] %vm690, %v3097
  %3106 = vst.msk [vmem:[#allocation3 + $0x10] sm:$0xf] %vm690, %v3099
  %3107 = vst.msk [vmem:[#allocation3 + $0x1c] sm:$0xf] %vm690, %v3101
  %v3108 = vld [vmem:[#allocation2 + $0xb] sm:$0xff]
  %v3109 = vld [vmem:[#allocation2 + $0x13] sm:$0xff]
  %v3110 = vld [vmem:[#allocation2 + $0x1b] sm:$0xff]
  %v3111 = vmul.f32 %v354, %v3108
  %v3112 = vmul.f32 %v358, %v3109
  %v3113 = vmul.f32 %v362, %v3110
  %v3114 = vpack.c.bf16 %v3112, %v3111
  %v3115 = vpack.c.bf16 %v3113, %v3113
  %v3118 = vunpack.c.l.b16 %v3114
  %v3119 = vunpack.c.h.b16 %v3114
  %v3120 = vunpack.c.l.b16 %v3115
  %v3121 = vpack.c.b16 %v3118, %v3118
  %v3122 = vpack.c.b16 %v3119, %v3119
  %v3123 = vpack.c.b16 %v3120, %v3120
  %3124 = vrot.lane.b32.xlu0 %v3121, 96
  %v3125 = vpop.permute.xlu0 %3124
  %3126 = vrot.lane.b32.xlu0 %v3122, 96
  %v3127 = vpop.permute.xlu0 %3126
  %3128 = vrot.lane.b32.xlu0 %v3123, 96
  %v3129 = vpop.permute.xlu0 %3128
  %3133 = vst.msk [vmem:[#allocation3 + $0x4] sm:$0xf] %vm719, %v3125
  %3134 = vst.msk [vmem:[#allocation3 + $0x10] sm:$0xf] %vm719, %v3127
  %3135 = vst.msk [vmem:[#allocation3 + $0x1c] sm:$0xf] %vm719, %v3129
  %v3136 = vld [vmem:[#allocation2 + $0xc] sm:$0xff]
  %v3137 = vld [vmem:[#allocation2 + $0x14] sm:$0xff]
  %v3138 = vld [vmem:[#allocation2 + $0x1c] sm:$0xff]
  %v3139 = vmul.f32 %v395, %v3136
  %v3140 = vmul.f32 %v399, %v3137
  %v3141 = vmul.f32 %v403, %v3138
  %v3142 = vpack.c.bf16 %v3140, %v3139
  %v3143 = vpack.c.bf16 %v3141, %v3141
  %v3146 = vunpack.c.l.b16 %v3142
  %v3147 = vunpack.c.h.b16 %v3142
  %v3148 = vunpack.c.l.b16 %v3143
  %v3149 = vpack.c.b16 %v3146, %v3146
  %v3150 = vpack.c.b16 %v3147, %v3147
  %v3151 = vpack.c.b16 %v3148, %v3148
  %3155 = vst.msk [vmem:[#allocation3 + $0x8] sm:$0xf] %vm632, %v3149
  %3156 = vst.msk [vmem:[#allocation3 + $0x14] sm:$0xf] %vm632, %v3150
  %3157 = vst.msk [vmem:[#allocation3 + $0x20] sm:$0xf] %vm632, %v3151
  %v3158 = vld [vmem:[#allocation3] sm:$0xff]
  %v3159 = vld [vmem:[#allocation3 + $0x8] sm:$0xf]
  %v3160 = vld [vmem:[#allocation3 + $0xc] sm:$0xff]
  %v3161 = vld [vmem:[#allocation3 + $0x14] sm:$0xf]
  %v3162 = vld [vmem:[#allocation3 + $0x18] sm:$0xff]
  %v3163 = vld [vmem:[#allocation3 + $0x20] sm:$0xf]
  %v3170 = vunpack.c.l.b16 %v3158
  %v3171 = vunpack.c.h.b16 %v3158
  %v3172 = vunpack.c.l.b16 %v3159
  %v3173 = vunpack.c.l.b16 %v3160
  %v3174 = vunpack.c.h.b16 %v3160
  %v3175 = vunpack.c.l.b16 %v3161
  %v3176 = vunpack.c.l.b16 %v3162
  %v3177 = vunpack.c.h.b16 %v3162
  %v3178 = vunpack.c.l.b16 %v3163
  %v3179 = vpack.c.b16 %v3173, %v3170
  %v3180 = vpack.c.b16 %v3174, %v3171
  %v3181 = vpack.c.b16 %v3175, %v3172
  %v3182 = vpack.c.b16 %v3176, %v3176
  %v3183 = vpack.c.b16 %v3177, %v3177
  %v3184 = vpack.c.b16 %v3178, %v3178
  %v3225 = vunpack.c.l.b16 %v2885
  %v3226 = vunpack.c.l.b16 %v2886
  %v3227 = vunpack.c.l.b16 %v2887
  %v3228 = vunpack.c.l.b16 %v2888
  %v3229 = vunpack.c.l.b16 %v2889
  %v3230 = vunpack.c.l.b16 %v2890
  %v3231 = vunpack.c.l.b16 %v2891
  %v3232 = vunpack.c.l.b16 %v2892
  %v3233 = vunpack.c.l.b16 %v2893
  %v3234 = vunpack.c.l.b16 %v2894
  %v3235 = vunpack.c.l.b16 %v2895
  %v3236 = vunpack.c.l.b16 %v2896
  %v3237 = vunpack.c.l.b16 %v2897
  %v3238 = vunpack.c.l.b16 %v2898
  %v3239 = vunpack.c.l.b16 %v2899
  %v3240 = vunpack.c.l.b16 %v2900
  %v3241 = vunpack.c.l.b16 %v2901
  %v3242 = vunpack.c.l.b16 %v2902
  %v3243 = vunpack.c.l.b16 %v2903
  %v3244 = vunpack.c.l.b16 %v2904
  %v3245 = vunpack.c.l.b16 %v2905
  %v3246 = vunpack.c.l.b16 %v2906
  %v3247 = vunpack.c.l.b16 %v2907
  %v3248 = vunpack.c.l.b16 %v2908
  %v3249 = vunpack.c.l.b16 %v2909
  %v3250 = vunpack.c.l.b16 %v2910
  %v3251 = vunpack.c.l.b16 %v2911
  %v3252 = vunpack.c.l.b16 %v2912
  %v3253 = vunpack.c.l.b16 %v2913
  %v3254 = vunpack.c.l.b16 %v2914
  %v3255 = vunpack.c.l.b16 %v2915
  %v3256 = vunpack.c.l.b16 %v2916
  %v3257 = vunpack.c.l.b16 %v2917
  %v3258 = vunpack.c.l.b16 %v2918
  %v3259 = vunpack.c.l.b16 %v2919
  %v3260 = vunpack.c.l.b16 %v2920
  %v3261 = vpack.c.b16 %v3226, %v3225
  %v3262 = vpack.c.b16 %v3228, %v3227
  %v3263 = vpack.c.b16 %v3230, %v3229
  %v3264 = vpack.c.b16 %v3232, %v3231
  %v3265 = vpack.c.b16 %v3234, %v3233
  %v3266 = vpack.c.b16 %v3236, %v3235
  %v3267 = vpack.c.b16 %v3238, %v3237
  %v3268 = vpack.c.b16 %v3240, %v3239
  %v3269 = vpack.c.b16 %v3242, %v3241
  %v3270 = vpack.c.b16 %v3244, %v3243
  %v3271 = vpack.c.b16 %v3246, %v3245
  %v3272 = vpack.c.b16 %v3248, %v3247
  %v3273 = vpack.c.b16 %v3250, %v3249
  %v3274 = vpack.c.b16 %v3252, %v3251
  %v3275 = vpack.c.b16 %v3254, %v3253
  %v3276 = vpack.c.b16 %v3256, %v3255
  %v3277 = vpack.c.b16 %v3258, %v3257
  %v3278 = vpack.c.b16 %v3260, %v3259
  %v3298 = vsel %vm45, %v3181, 0
  %v3301 = vsel %vm45, %v3184, 0
  %3303 = vmatprep.subr.bf16.mxu0 0
  %3304 = vmatpush1.bf16.msra.mxu0 %v3261
  %3305 = vmatprep.subr.bf16.mxu0 0
  %3306 = vmatpush1.bf16.msra.mxu0 %v3262
  %3307 = vmatprep.subr.bf16.mxu0 0
  %3308 = vmatpush1.bf16.msra.mxu0 %v3263
  %3309 = vmatprep.subr.bf16.mxu0 0
  %3310 = vmatpush1.bf16.msra.mxu0 %v3264
  %3311 = vmatprep.subr.bf16.mxu0 0
  %3312 = vmatpush1.bf16.msra.mxu0 %v3265
  %3313 = vmatprep.subr.bf16.mxu0 0
  %3314 = vmatpush1.bf16.msra.mxu0 %v3266
  %3315 = vmatprep.subr.bf16.mxu0 0
  %3316 = vmatpush1.bf16.msra.mxu0 %v3267
  %3317 = vmatprep.subr.bf16.mxu0 0
  %3318 = vmatpush1.bf16.msra.mxu0 %v3268
  %3319 = vmatprep.subr.bf16.mxu0 0
  %3320 = vmatpush1.bf16.msra.mxu0 %v3269
  %3321 = vmatprep.subr.bf16.mxu0 0
  %3322 = vmatpush1.bf16.msra.mxu0 %v3270
  %3323 = vmatprep.subr.bf16.mxu0 0
  %3324 = vmatpush1.bf16.msra.mxu0 %v3271
  %3325 = vmatprep.subr.bf16.mxu0 0
  %3326 = vmatpush1.bf16.msra.mxu0 %v3272
  %3327 = vmatprep.subr.bf16.mxu0 0
  %3328 = vmatpush1.bf16.msra.mxu0 %v3273
  %3329 = vmatprep.subr.bf16.mxu0 0
  %3330 = vmatpush1.bf16.msra.mxu0 %v3274
  %3331 = vmatprep.subr.bf16.mxu0 0
  %3332 = vmatpush1.bf16.msra.mxu0 %v3275
  %3333 = vmatprep.subr.bf16.mxu0 0
  %3334 = vmatpush1.bf16.msra.mxu0 %v3276
  %3335 = vmatprep.mubr.bf16.mxu0 %v3180
  %3336 = vmatmul.mubr.bf16.gmra.mrb[0].mxu0 %v3179
  %v3337 = vpop.f32.mrb[0].mxu0
  %v3338 = vadd.f32 0.0, %v3337
  %v3339 = vpop.f32.mrb[0].mxu0
  %v3340 = vpop.f32.mrb[0].mxu0
  %v3341 = vadd.f32 0.0, %v3340
  %v3342 = vpop.f32.mrb[0].mxu0
  %3343 = vmatprep.mubr.bf16.mxu0 %v3183
  %3344 = vmatmul.mubr.bf16.gmra.mrb[0].mxu0 %v3182
  %v3345 = vpop.f32.mrb[0].mxu0
  %v3346 = vadd.f32 0.0, %v3345
  %v3347 = vpop.f32.mrb[0].mxu0
  %v3348 = vpop.f32.mrb[0].mxu0
  %v3349 = vpop.f32.mrb[0].mxu0
  %3350 = vdwg.mxu0
  %3351 = vmatprep.subr.bf16.mxu0 0
  %3352 = vmatpush1.bf16.msra.mxu0 %v3277
  %3353 = vmatprep.subr.bf16.mxu0 0
  %3354 = vmatpush1.bf16.msra.mxu0 %v3278
  %3355 = vmatprep.subr.bf16.mxu0 0
  %3356 = vmatpush1.bf16.msra.mxu0 0
  %3357 = vmatprep.subr.bf16.mxu0 0
  %3358 = vmatpush1.bf16.msra.mxu0 0
  %3359 = vmatprep.subr.bf16.mxu0 0
  %3360 = vmatpush1.bf16.msra.mxu0 0
  %3361 = vmatprep.subr.bf16.mxu0 0
  %3362 = vmatpush1.bf16.msra.mxu0 0
  %3363 = vmatprep.subr.bf16.mxu0 0
  %3364 = vmatpush1.bf16.msra.mxu0 0
  %3365 = vmatprep.subr.bf16.mxu0 0
  %3366 = vmatpush1.bf16.msra.mxu0 0
  %3367 = vmatprep.subr.bf16.mxu0 0
  %3368 = vmatpush1.bf16.msra.mxu0 0
  %3369 = vmatprep.subr.bf16.mxu0 0
  %3370 = vmatpush1.bf16.msra.mxu0 0
  %3371 = vmatprep.subr.bf16.mxu0 0
  %3372 = vmatpush1.bf16.msra.mxu0 0
  %3373 = vmatprep.subr.bf16.mxu0 0
  %3374 = vmatpush1.bf16.msra.mxu0 0
  %3375 = vmatprep.subr.bf16.mxu0 0
  %3376 = vmatpush1.bf16.msra.mxu0 0
  %3377 = vmatprep.subr.bf16.mxu0 0
  %3378 = vmatpush1.bf16.msra.mxu0 0
  %3379 = vmatprep.subr.bf16.mxu0 0
  %3380 = vmatpush1.bf16.msra.mxu0 0
  %3381 = vmatprep.subr.bf16.mxu0 0
  %3382 = vmatpush1.bf16.msra.mxu0 0
  %3383 = vmatprep.mubr.bf16.mxu0 0
  %3384 = vmatmul.mubr.bf16.gmra.mrb[0].mxu0 %v3298
  %v3385 = vpop.f32.mrb[0].mxu0
  %v3386 = vadd.f32 %v3338, %v3385
  %v3387 = vpop.f32.mrb[0].mxu0
  %v3388 = vpop.f32.mrb[0].mxu0
  %v3389 = vadd.f32 %v3341, %v3388
  %v3390 = vpop.f32.mrb[0].mxu0
  %3391 = vmatprep.mubr.bf16.mxu0 0
  %3392 = vmatmul.mubr.bf16.gmra.mrb[0].mxu0 %v3301
  %v3393 = vpop.f32.mrb[0].mxu0
  %v3394 = vadd.f32 %v3346, %v3393
  %v3395 = vpop.f32.mrb[0].mxu0
  %v3396 = vpop.f32.mrb[0].mxu0
  %v3397 = vpop.f32.mrb[0].mxu0
  %3398 = vdwg.mxu0
  %v3399 = vld [vmem:[%s8] sm:$0x1]
  %v3400 = vld [vmem:[%s9] sm:$0x1]
  %vm3401 = vcmask 285696
  %v3402 = vsel %vm3401, %v3386, 0.0
  %v3403 = vsel %vm3401, %v3389, 0.0
  %v3404 = vadd.f32 %v3402, %v3403
  %v3405 = vsel %vm3401, %v3394, 0.0
  %v3406 = vadd.f32 %v3404, %v3405
  %v3407 = vrot.slane %v3406, 4
  %v3408 = vadd.f32 %v3406, %v3407
  %v3409 = vrot.slane %v3408, 2
  %v3410 = vadd.f32 %v3408, %v3409
  %v3411 = vrot.slane %v3410, 1
  %v3412 = vadd.f32 %v3410, %v3411
  %v3413 = vmul.f32 %v3412, 0.055555556
  %v3414 = vsub.f32 %v3386, %v3413
  %v3415 = vsub.f32 %v3389, %v3413
  %v3416 = vsub.f32 %v3394, %v3413
  %v3417 = vmul.f32 %v3414, %v3414
  %v3418 = vmul.f32 %v3415, %v3415
  %v3419 = vmul.f32 %v3416, %v3416
  %v3420 = vsel %vm3401, %v3417, 0.0
  %v3421 = vsel %vm3401, %v3418, 0.0
  %v3422 = vadd.f32 %v3420, %v3421
  %v3423 = vsel %vm3401, %v3419, 0.0
  %v3424 = vadd.f32 %v3422, %v3423
  %v3425 = vrot.slane %v3424, 4
  %v3426 = vadd.f32 %v3424, %v3425
  %v3427 = vrot.slane %v3426, 2
  %v3428 = vadd.f32 %v3426, %v3427
  %v3429 = vrot.slane %v3428, 1
  %v3430 = vadd.f32 %v3428, %v3429
  %v3431 = vmul.f32 %v3413, 6.0
  %v3432 = vmul.f32 %v3431, %v3413
  %v3433 = vsub.f32 %v3430, %v3432
  %v3434 = vmul.f32 %v3433, 0.055555556
  %v3435 = vadd.f32 %v3434, 1e-05
  %v3436 = vrsqrt.pop %v3435
  %v3437 = vmul.f32 %v3399, %v3436
  %v3439 = vlaneseq
  %v3440 = vshrl.u32 %v3439, 7
  %v3441 = vsub.s32 0, %v3440
  %v3442 = vrot.slane %v3437, %v3441
  %v3444 = vmul.f32 %v3414, %v3442
  %v3445 = vmul.f32 %v3415, %v3442
  %v3446 = vmul.f32 %v3416, %v3442
  %v3448 = vlaneseq
  %v3449 = vshrl.u32 %v3448, 7
  %v3450 = vsub.s32 0, %v3449
  %v3451 = vrot.slane %v3400, %v3450
  %v3453 = vadd.f32 %v3444, %v3451
  %v3454 = vadd.f32 %v3445, %v3451
  %v3455 = vadd.f32 %v3446, %v3451
  %v3456 = vmax.f32 %v3453, 0.0
  %v3457 = vmax.f32 %v3454, 0.0
  %v3458 = vmax.f32 %v3455, 0.0
  %3459 = vst.msk [vmem:[#allocation4] sm:$0xff] %vm3401, %v3456
  %3460 = vst.msk [vmem:[#allocation4 + $0x8] sm:$0xff] %vm3401, %v3457
  %3461 = vst.msk [vmem:[#allocation4 + $0x10] sm:$0xff] %vm3401, %v3458
  %v3462 = vld [vmem:[#allocation4] ss:$9 sm:$0x3]
  %v3463 = vpack.c.bf16 %v3462, %v3462
  %vm3464 = vcmask 278528
  %3465 = vst.msk [vmem:[#allocation5] sm:$0x1] %vm3464, %v3463
  %s3466 = scalar_lea.vmem [#allocation4], 1
  %v3467 = vld [vmem:[%s3466] ss:$9 sm:$0x3]
  %v3468 = vpack.c.bf16 %v3467, %v3467
  %v3471 = vunpack.c.l.s4 1966171168
  %v3472 = vunpack.c.0.s8 %v3471
  %v3473 = vlaneseq
  %v3474 = vshrl.u32 %v3473, 7
  %v3475 = vsub.s32 %v3472, %v3474
  %v3476 = vrot.slane %v3468, %v3475
  %v3478 = vunpack.c.l.s4 1966171168
  %v3479 = vunpack.c.0.s8 %v3478
  %v3480 = vlaneseq
  %v3481 = vshrl.u32 %v3480, 7
  %v3482 = vsub.s32 %v3479, %v3481
  %v3483 = vrot.slane %v3476, %v3482
  %3484 = vrot.lane.b32.xlu0 %v3483, 35
  %v3485 = vpop.permute.xlu0 %3484
  %vm3487 = vcmask 565528
  %3488 = vst.msk [vmem:[#allocation5] sm:$0x1] %vm3487, %v3485
  %s3489 = scalar_lea.vmem [#allocation4], 2
  %v3490 = vld [vmem:[%s3489] ss:$9 sm:$0x3]
  %v3491 = vpack.c.bf16 %v3490, %v3490
  %v3494 = vunpack.c.l.s4 1966171168
  %v3495 = vunpack.c.0.s8 %v3494
  %v3496 = vlaneseq
  %v3497 = vshrl.u32 %v3496, 7
  %v3498 = vsub.s32 %v3495, %v3497
  %v3499 = vrot.slane %v3491, %v3498
  %v3501 = vunpack.c.l.s4 1966171168
  %v3502 = vunpack.c.0.s8 %v3501
  %v3503 = vlaneseq
  %v3504 = vshrl.u32 %v3503, 7
  %v3505 = vsub.s32 %v3502, %v3504
  %v3506 = vrot.slane %v3499, %v3505
  %3507 = vrot.lane.b32.xlu0 %v3506, 70
  %v3508 = vpop.permute.xlu0 %3507
  %vm3510 = vcmask 852528
  %3511 = vst.msk [vmem:[#allocation5] sm:$0x1] %vm3510, %v3508
  %s3512 = scalar_lea.vmem [#allocation4], 3
  %v3513 = vld [vmem:[%s3512] ss:$9 sm:$0x3]
  %v3514 = vpack.c.bf16 %v3513, %v3513
  %v3517 = vunpack.c.l.s4 1966171168
  %v3518 = vunpack.c.0.s8 %v3517
  %v3519 = vlaneseq
  %v3520 = vshrl.u32 %v3519, 7
  %v3521 = vsub.s32 %v3518, %v3520
  %v3522 = vrot.slane %v3514, %v3521
  %v3524 = vunpack.c.l.s4 1966171168
  %v3525 = vunpack.c.0.s8 %v3524
  %v3526 = vlaneseq
  %v3527 = vshrl.u32 %v3526, 7
  %v3528 = vsub.s32 %v3525, %v3527
  %v3529 = vrot.slane %v3522, %v3528
  %3530 = vrot.lane.b32.xlu0 %v3529, 105
  %v3531 = vpop.permute.xlu0 %3530
  %v3532 = vrot.slane %v3531, 7
  %vm3533 = vcmask 859136
  %v3534 = vsel %vm3533, %v3532, %v3531
  %vm3536 = vcmask 1041224
  %vm3537 = vcmask 91137
  %vm3538 = vmor %vm3537, %vm3536
  %3539 = vst.msk [vmem:[#allocation5] sm:$0x3] %vm3538, %v3534
  %s3540 = scalar_lea.vmem [#allocation4], 4
  %v3541 = vld [vmem:[%s3540] ss:$9 sm:$0x3]
  %v3542 = vpack.c.bf16 %v3541, %v3541
  %v3545 = vunpack.c.l.s4 1966171168
  %v3546 = vunpack.c.0.s8 %v3545
  %v3547 = vlaneseq
  %v3548 = vshrl.u32 %v3547, 7
  %v3549 = vsub.s32 %v3546, %v3548
  %v3550 = vrot.slane %v3542, %v3549
  %v3552 = vunpack.c.l.s4 1966171168
  %v3553 = vunpack.c.0.s8 %v3552
  %v3554 = vlaneseq
  %v3555 = vshrl.u32 %v3554, 7
  %v3556 = vsub.s32 %v3553, %v3555
  %v3557 = vrot.slane %v3550, %v3556
  %3558 = vrot.lane.b32.xlu0 %v3557, 12
  %v3559 = vpop.permute.xlu0 %3558
  %vm3561 = vcmask 376928
  %3562 = vst.msk [vmem:[#allocation5 + $0x1] sm:$0x1] %vm3561, %v3559
  %s3563 = scalar_lea.vmem [#allocation4], 5
  %v3564 = vld [vmem:[%s3563] ss:$9 sm:$0x3]
  %v3565 = vpack.c.bf16 %v3564, %v3564
  %v3568 = vunpack.c.l.s4 1966171168
  %v3569 = vunpack.c.0.s8 %v3568
  %v3570 = vlaneseq
  %v3571 = vshrl.u32 %v3570, 7
  %v3572 = vsub.s32 %v3569, %v3571
  %v3573 = vrot.slane %v3565, %v3572
  %v3575 = vunpack.c.l.s4 1966171168
  %v3576 = vunpack.c.0.s8 %v3575
  %v3577 = vlaneseq
  %v3578 = vshrl.u32 %v3577, 7
  %v3579 = vsub.s32 %v3576, %v3578
  %v3580 = vrot.slane %v3573, %v3579
  %3581 = vrot.lane.b32.xlu0 %v3580, 47
  %v3582 = vpop.permute.xlu0 %3581
  %vm3584 = vcmask 663928
  %3585 = vst.msk [vmem:[#allocation5 + $0x1] sm:$0x1] %vm3584, %v3582
  %s3586 = scalar_lea.vmem [#allocation4], 6
  %v3587 = vld [vmem:[%s3586] ss:$9 sm:$0x3]
  %v3588 = vpack.c.bf16 %v3587, %v3587
  %v3591 = vunpack.c.l.s4 1966171168
  %v3592 = vunpack.c.0.s8 %v3591
  %v3593 = vlaneseq
  %v3594 = vshrl.u32 %v3593, 7
  %v3595 = vsub.s32 %v3592, %v3594
  %v3596 = vrot.slane %v3588, %v3595
  %v3598 = vunpack.c.l.s4 1966171168
  %v3599 = vunpack.c.0.s8 %v3598
  %v3600 = vlaneseq
  %v3601 = vshrl.u32 %v3600, 7
  %v3602 = vsub.s32 %v3599, %v3601
  %v3603 = vrot.slane %v3596, %v3602
  %3604 = vrot.lane.b32.xlu0 %v3603, 82
  %v3605 = vpop.permute.xlu0 %3604
  %vm3607 = vcmask 950928
  %3608 = vst.msk [vmem:[#allocation5 + $0x1] sm:$0x1] %vm3607, %v3605
  %s3609 = scalar_lea.vmem [#allocation4], 7
  %v3610 = vld [vmem:[%s3609] ss:$9 sm:$0x3]
  %v3611 = vpack.c.bf16 %v3610, %v3610
  %v3614 = vunpack.c.l.s4 1966171168
  %v3615 = vunpack.c.0.s8 %v3614
  %v3616 = vlaneseq
  %v3617 = vshrl.u32 %v3616, 7
  %v3618 = vsub.s32 %v3615, %v3617
  %v3619 = vrot.slane %v3611, %v3618
  %v3621 = vunpack.c.l.s4 1966171168
  %v3622 = vunpack.c.0.s8 %v3621
  %v3623 = vlaneseq
  %v3624 = vshrl.u32 %v3623, 7
  %v3625 = vsub.s32 %v3622, %v3624
  %v3626 = vrot.slane %v3619, %v3625
  %3627 = vrot.lane.b32.xlu0 %v3626, 117
  %v3628 = vpop.permute.xlu0 %3627
  %v3629 = vrot.slane %v3628, 7
  %vm3630 = vcmask 957440
  %v3631 = vsel %vm3630, %v3629, %v3628
  %vm3633 = vcmask 1041320
  %vm3634 = vcmask 189441
  %vm3635 = vmor %vm3634, %vm3633
  %3636 = vst.msk [vmem:[#allocation5 + $0x1] sm:$0x3] %vm3635, %v3631
  %s3637 = scalar_lea.vmem [#allocation4], 8
  %v3638 = vld [vmem:[%s3637] ss:$9 sm:$0x3]
  %v3639 = vpack.c.bf16 %v3638, %v3638
  %v3642 = vunpack.c.l.s4 1966171168
  %v3643 = vunpack.c.0.s8 %v3642
  %v3644 = vlaneseq
  %v3645 = vshrl.u32 %v3644, 7
  %v3646 = vsub.s32 %v3643, %v3645
  %v3647 = vrot.slane %v3639, %v3646
  %v3649 = vunpack.c.l.s4 1966171168
  %v3650 = vunpack.c.0.s8 %v3649
  %v3651 = vlaneseq
  %v3652 = vshrl.u32 %v3651, 7
  %v3653 = vsub.s32 %v3650, %v3652
  %v3654 = vrot.slane %v3647, %v3653
  %3655 = vrot.lane.b32.xlu0 %v3654, 24
  %v3656 = vpop.permute.xlu0 %3655
  %vm3658 = vcmask 475328
  %3659 = vst.msk [vmem:[#allocation5 + $0x2] sm:$0x1] %vm3658, %v3656
  %v3660 = vld [vmem:[#allocation5] sm:$0x7]
  %v3661 = vld [vmem:[%s10] sm:$0xf]
  %v3662 = vld [vmem:[%s10 + $0x4] sm:$0xf]
  %v3663 = vld [vmem:[%s10 + $0x8] sm:$0xf]
  %v3664 = vld [vmem:[%s10 + $0xc] sm:$0xf]
  %v3665 = vld [vmem:[%s10 + $0x10] sm:$0xf]
  %v3666 = vld [vmem:[%s10 + $0x14] sm:$0xf]
  %v3667 = vld [vmem:[%s10 + $0x18] sm:$0xf]
  %v3668 = vld [vmem:[%s10 + $0x1c] sm:$0xf]
  %v3669 = vld [vmem:[%s10 + $0x20] sm:$0xf]
  %v3670 = vld [vmem:[%s10 + $0x24] sm:$0xf]
  %v3671 = vld [vmem:[%s10 + $0x28] sm:$0xf]
  %v3672 = vld [vmem:[%s10 + $0x2c] sm:$0xf]
  %v3673 = vld [vmem:[%s10 + $0x30] sm:$0xf]
  %v3674 = vld [vmem:[%s10 + $0x34] sm:$0xf]
  %v3675 = vld [vmem:[%s10 + $0x38] sm:$0xf]
  %v3676 = vld [vmem:[%s10 + $0x3c] sm:$0xf]
  %v3677 = vld [vmem:[%s10 + $0x40] sm:$0xf]
  %v3678 = vld [vmem:[%s10 + $0x44] sm:$0xf]
  %v3679 = vld [vmem:[%s10 + $0x48] sm:$0xf]
  %v3680 = vld [vmem:[%s10 + $0x4c] sm:$0xf]
  %v3681 = vld [vmem:[%s10 + $0x50] sm:$0xf]
  %v3682 = vld [vmem:[%s10 + $0x54] sm:$0xf]
  %v3683 = vld [vmem:[%s10 + $0x58] sm:$0xf]
  %v3684 = vld [vmem:[%s10 + $0x5c] sm:$0xf]
  %v3685 = vld [vmem:[%s10 + $0x60] sm:$0xf]
  %v3686 = vld [vmem:[%s10 + $0x64] sm:$0xf]
  %v3687 = vld [vmem:[%s10 + $0x68] sm:$0xf]
  %v3688 = vld [vmem:[%s10 + $0x6c] sm:$0xf]
  %v3689 = vld [vmem:[%s10 + $0x70] sm:$0xf]
  %v3690 = vld [vmem:[%s10 + $0x74] sm:$0xf]
  %v3691 = vld [vmem:[%s10 + $0x78] sm:$0xf]
  %v3692 = vld [vmem:[%s10 + $0x7c] sm:$0xf]
  %v3693 = vld [vmem:[%s10 + $0x80] sm:$0xf]
  %v3694 = vld [vmem:[%s10 + $0x84] sm:$0xf]
  %v3695 = vld [vmem:[%s10 + $0x88] sm:$0xf]
  %v3696 = vld [vmem:[%s10 + $0x8c] sm:$0xf]
  %v3697 = vld [vmem:[%s10 + $0x90] sm:$0xf]
  %v3698 = vld [vmem:[%s10 + $0x94] sm:$0xf]
  %v3699 = vld [vmem:[%s10 + $0x98] sm:$0xf]
  %v3700 = vld [vmem:[%s10 + $0x9c] sm:$0x3]
  %v3701 = vld [vmem:[%s11] sm:$0x1]
  %v3703 = vlaneseq
  %v3704 = vshrl.u32 %v3703, 7
  %v3705 = vsub.s32 0, %v3704
  %v3706 = vrot.slane %v3701, %v3705
  %v3710 = vunpack.c.l.s4 1966171168
  %v3711 = vunpack.c.0.s8 %v3710
  %v3712 = vlaneseq
  %v3713 = vshrl.u32 %v3712, 7
  %v3714 = vsub.s32 %v3711, %v3713
  %v3715 = vrot.slane %v3660, %v3714
  %v3716 = vcombine.high %v3715, %v3715
  %v3718 = vunpack.c.l.s4 1966171168
  %v3719 = vunpack.c.0.s8 %v3718
  %v3720 = vlaneseq
  %v3721 = vshrl.u32 %v3720, 7
  %v3722 = vsub.s32 %v3719, %v3721
  %v3723 = vrot.slane %v3715, %v3722
  %v3725 = vunpack.c.l.s4 1966171168
  %v3726 = vunpack.c.0.s8 %v3725
  %v3727 = vlaneseq
  %v3728 = vshrl.u32 %v3727, 7
  %v3729 = vsub.s32 %v3726, %v3728
  %v3730 = vrot.slane %v3716, %v3729
  %v3731 = vcombine.high %v3723, %v3723
  %v3774 = vunpack.c.l.b16 %v3661
  %v3775 = vunpack.c.l.b16 %v3662
  %v3776 = vunpack.c.l.b16 %v3663
  %v3777 = vunpack.c.l.b16 %v3664
  %v3778 = vunpack.c.l.b16 %v3665
  %v3779 = vunpack.c.l.b16 %v3666
  %v3780 = vunpack.c.l.b16 %v3667
  %v3781 = vunpack.c.l.b16 %v3668
  %v3782 = vunpack.c.l.b16 %v3669
  %v3783 = vunpack.c.l.b16 %v3670
  %v3784 = vunpack.c.l.b16 %v3671
  %v3785 = vunpack.c.l.b16 %v3672
  %v3786 = vunpack.c.l.b16 %v3673
  %v3787 = vunpack.c.l.b16 %v3674
  %v3788 = vunpack.c.l.b16 %v3675
  %v3789 = vunpack.c.l.b16 %v3676
  %v3790 = vunpack.c.l.b16 %v3677
  %v3791 = vunpack.c.l.b16 %v3678
  %v3792 = vunpack.c.l.b16 %v3679
  %v3793 = vunpack.c.l.b16 %v3680
  %v3794 = vunpack.c.l.b16 %v3681
  %v3795 = vunpack.c.l.b16 %v3682
  %v3796 = vunpack.c.l.b16 %v3683
  %v3797 = vunpack.c.l.b16 %v3684
  %v3798 = vunpack.c.l.b16 %v3685
  %v3799 = vunpack.c.l.b16 %v3686
  %v3800 = vunpack.c.l.b16 %v3687
  %v3801 = vunpack.c.l.b16 %v3688
  %v3802 = vunpack.c.l.b16 %v3689
  %v3803 = vunpack.c.l.b16 %v3690
  %v3804 = vunpack.c.l.b16 %v3691
  %v3805 = vunpack.c.l.b16 %v3692
  %v3806 = vunpack.c.l.b16 %v3693
  %v3807 = vunpack.c.l.b16 %v3694
  %v3808 = vunpack.c.l.b16 %v3695
  %v3809 = vunpack.c.l.b16 %v3696
  %v3810 = vunpack.c.l.b16 %v3697
  %v3811 = vunpack.c.l.b16 %v3698
  %v3812 = vunpack.c.l.b16 %v3699
  %v3813 = vunpack.c.l.b16 %v3700
  %v3814 = vpack.c.b16 %v3775, %v3774
  %v3815 = vpack.c.b16 %v3777, %v3776
  %v3816 = vpack.c.b16 %v3779, %v3778
  %v3817 = vpack.c.b16 %v3781, %v3780
  %v3818 = vpack.c.b16 %v3783, %v3782
  %v3819 = vpack.c.b16 %v3785, %v3784
  %v3820 = vpack.c.b16 %v3787, %v3786
  %v3821 = vpack.c.b16 %v3789, %v3788
  %v3822 = vpack.c.b16 %v3791, %v3790
  %v3823 = vpack.c.b16 %v3793, %v3792
  %v3824 = vpack.c.b16 %v3795, %v3794
  %v3825 = vpack.c.b16 %v3797, %v3796
  %v3826 = vpack.c.b16 %v3799, %v3798
  %v3827 = vpack.c.b16 %v3801, %v3800
  %v3828 = vpack.c.b16 %v3803, %v3802
  %v3829 = vpack.c.b16 %v3805, %v3804
  %v3830 = vpack.c.b16 %v3807, %v3806
  %v3831 = vpack.c.b16 %v3809, %v3808
  %v3832 = vpack.c.b16 %v3811, %v3810
  %v3833 = vpack.c.b16 %v3813, %v3812
  %vm3853 = vcmask 482304
  %v3855 = vsel %vm3853, %v3731, 0
  %v3858 = vand.u32 %v3833, %v463
  %3860 = vmatprep.subr.bf16.mxu0 0
  %3861 = vmatpush1.bf16.msra.mxu0 %v3814
  %3862 = vmatprep.subr.bf16.mxu0 0
  %3863 = vmatpush1.bf16.msra.mxu0 %v3815
  %3864 = vmatprep.subr.bf16.mxu0 0
  %3865 = vmatpush1.bf16.msra.mxu0 %v3816
  %3866 = vmatprep.subr.bf16.mxu0 0
  %3867 = vmatpush1.bf16.msra.mxu0 %v3817
  %3868 = vmatprep.subr.bf16.mxu0 0
  %3869 = vmatpush1.bf16.msra.mxu0 %v3818
  %3870 = vmatprep.subr.bf16.mxu0 0
  %3871 = vmatpush1.bf16.msra.mxu0 %v3819
  %3872 = vmatprep.subr.bf16.mxu0 0
  %3873 = vmatpush1.bf16.msra.mxu0 %v3820
  %3874 = vmatprep.subr.bf16.mxu0 0
  %3875 = vmatpush1.bf16.msra.mxu0 %v3821
  %3876 = vmatprep.subr.bf16.mxu0 0
  %3877 = vmatpush1.bf16.msra.mxu0 %v3822
  %3878 = vmatprep.subr.bf16.mxu0 0
  %3879 = vmatpush1.bf16.msra.mxu0 %v3823
  %3880 = vmatprep.subr.bf16.mxu0 0
  %3881 = vmatpush1.bf16.msra.mxu0 %v3824
  %3882 = vmatprep.subr.bf16.mxu0 0
  %3883 = vmatpush1.bf16.msra.mxu0 %v3825
  %3884 = vmatprep.subr.bf16.mxu0 0
  %3885 = vmatpush1.bf16.msra.mxu0 %v3826
  %3886 = vmatprep.subr.bf16.mxu0 0
  %3887 = vmatpush1.bf16.msra.mxu0 %v3827
  %3888 = vmatprep.subr.bf16.mxu0 0
  %3889 = vmatpush1.bf16.msra.mxu0 %v3828
  %3890 = vmatprep.subr.bf16.mxu0 0
  %3891 = vmatpush1.bf16.msra.mxu0 %v3829
  %3892 = vmatprep.mubr.bf16.mxu0 %v3730
  %3893 = vmatmul.mubr.bf16.gmra.mrb[0].mxu0 %v3723
  %v3894 = vpop.f32.mrb[0].mxu0
  %v3895 = vadd.f32 %v3706, %v3894
  %v3896 = vpop.f32.mrb[0].mxu0
  %v3897 = vpop.f32.mrb[0].mxu0
  %v3898 = vpop.f32.mrb[0].mxu0
  %3899 = vdwg.mxu0
  %3900 = vmatprep.subr.bf16.mxu0 0
  %3901 = vmatpush1.bf16.msra.mxu0 %v3830
  %3902 = vmatprep.subr.bf16.mxu0 0
  %3903 = vmatpush1.bf16.msra.mxu0 %v3831
  %3904 = vmatprep.subr.bf16.mxu0 0
  %3905 = vmatpush1.bf16.msra.mxu0 %v3832
  %3906 = vmatprep.subr.bf16.mxu0 0
  %3907 = vmatpush1.bf16.msra.mxu0 %v3858
  %3908 = vmatprep.subr.bf16.mxu0 0
  %3909 = vmatpush1.bf16.msra.mxu0 0
  %3910 = vmatprep.subr.bf16.mxu0 0
  %3911 = vmatpush1.bf16.msra.mxu0 0
  %3912 = vmatprep.subr.bf16.mxu0 0
  %3913 = vmatpush1.bf16.msra.mxu0 0
  %3914 = vmatprep.subr.bf16.mxu0 0
  %3915 = vmatpush1.bf16.msra.mxu0 0
  %3916 = vmatprep.subr.bf16.mxu0 0
  %3917 = vmatpush1.bf16.msra.mxu0 0
  %3918 = vmatprep.subr.bf16.mxu0 0
  %3919 = vmatpush1.bf16.msra.mxu0 0
  %3920 = vmatprep.subr.bf16.mxu0 0
  %3921 = vmatpush1.bf16.msra.mxu0 0
  %3922 = vmatprep.subr.bf16.mxu0 0
  %3923 = vmatpush1.bf16.msra.mxu0 0
  %3924 = vmatprep.subr.bf16.mxu0 0
  %3925 = vmatpush1.bf16.msra.mxu0 0
  %3926 = vmatprep.subr.bf16.mxu0 0
  %3927 = vmatpush1.bf16.msra.mxu0 0
  %3928 = vmatprep.subr.bf16.mxu0 0
  %3929 = vmatpush1.bf16.msra.mxu0 0
  %3930 = vmatprep.subr.bf16.mxu0 0
  %3931 = vmatpush1.bf16.msra.mxu0 0
  %3932 = vmatprep.mubr.bf16.mxu0 0
  %3933 = vmatmul.mubr.bf16.gmra.mrb[0].mxu0 %v3855
  %v3934 = vpop.f32.mrb[0].mxu0
  %v3935 = vadd.f32 %v3895, %v3934
  %v3936 = vpop.f32.mrb[0].mxu0
  %v3937 = vpop.f32.mrb[0].mxu0
  %v3938 = vpop.f32.mrb[0].mxu0
  %3939 = vdwg.mxu0
  %vm3940 = vcmask 74752
  %3941 = vst.msk [vmem:[%s13] sm:$0x3] %vm3940, %v3935
  // Predicated region
  $region54: #{resnet_forward.1} parent=0 // pred_check
    _
  $region55: #{resnet_forward.1} parent=0 // pred_check_branch
    %3943 = sbr.rel (0) target = $region57
  $region56: #{resnet_forward.1} parent=0 // pred_region
    _
  $region57: #{resnet_forward.1} parent=0 // pred_fallthru
    _
  // Predicated region
  $region58: #{resnet_forward.1} parent=0 // pred_check
    _
  $region59: #{resnet_forward.1} parent=0 // pred_check_branch
    %3945 = sbr.rel (0) target = $region61
  $region60: #{resnet_forward.1} parent=0 // pred_region
    _
  $region61: #{resnet_forward.1} parent=0 // pred_fallthru
    _

</llo_original>
